<compile_context>
chip_gen: v7x
topology: tpu7x:2x2x1
jax: 0.10.0
libtpu: 0.0.40
codegen_flags: <defaults>
</compile_context>

<pallas_src>
import functools

import jax
import jax.numpy as jnp
from jax.experimental import pallas as pl
from jax.experimental.pallas import tpu as pltpu


def _layer_norm(v, gamma, beta, eps):
    # variance as E[x^2] - mu^2 (both cross-lane reductions issue together),
    # clamped at 0 to guard against catastrophic cancellation -> NaN in rsqrt.
    mu = jnp.mean(v, axis=-1, keepdims=True)
    ms = jnp.mean(v * v, axis=-1, keepdims=True)
    var = jnp.maximum(ms - mu * mu, 0.0)
    return (v - mu) * jax.lax.rsqrt(var + eps) * gamma + beta


def encoder_stack_kernel(x_ref, wqkv_ref, bqkv_ref, wo_ref, bo_ref,
                         g1_ref, be1_ref, w1_ref, b1_ref, w2_ref, b2_ref,
                         g2_ref, be2_ref, o_ref, h_scr, ctx_scr,
                         *, num_head, eps, b_blk, seq_len):
    layer = pl.program_id(1)
    n_layers = pl.num_programs(1)
    T = seq_len
    rows = b_blk * T
    D = h_scr.shape[-1]
    H = num_head
    dh = D // H

    # layer 0: load this batch block's activations into the f32 carry buffer
    @pl.when(layer == 0)
    def _():
        h_scr[...] = x_ref[...].reshape(rows, D).astype(jnp.float32)

    x = h_scr[...]                                    # (rows, D) f32
    xb = x.astype(jnp.bfloat16)

    # ---- Multi-head self-attention ------------------------------------
    # Fused QKV projection: one (rows, D)@(D, 3D) bf16 MXU matmul; the
    # 1/sqrt(dh) softmax scale is pre-folded into the Q columns of wqkv/bqkv.
    qkv = jnp.dot(xb, wqkv_ref[0],
                  preferred_element_type=jnp.float32) + bqkv_ref[0]    # (rows, 3D) f32
    # cast to bf16 once, then view per-sample for the attention matmuls
    qkv_b = qkv.astype(jnp.bfloat16).reshape(b_blk, T, 3 * D)

    # TODO(synk): convert to lax.fori_loop(..., unroll=True) for configs with H >= 8.
    for h in range(H):                                # static unroll (tiny H)
        q_h = qkv_b[:, :, h * dh:(h + 1) * dh]                     # (b_blk, T, dh)
        k_h = qkv_b[:, :, D + h * dh:D + (h + 1) * dh]
        v_h = qkv_b[:, :, 2 * D + h * dh:2 * D + (h + 1) * dh]
        # per-sample scores = q_h @ k_h^T (batched over the batch-block dim)
        s = jax.lax.dot_general(q_h, k_h, (((2,), (2,)), ((0,), (0,))),
                                preferred_element_type=jnp.float32)  # (b_blk, T, T)
        s = s - jnp.max(s, axis=-1, keepdims=True)
        p = jnp.exp(s)
        inv = pl.reciprocal(jnp.sum(p, axis=-1, keepdims=True), approx=True)
        p = (p * inv).astype(jnp.bfloat16)
        ctx_h = jax.lax.dot_general(p, v_h, (((2,), (1,)), ((0,), (0,))),
                                    preferred_element_type=jnp.float32)  # (b_blk, T, dh)
        # write this head's context straight into the bf16 scratch slab
        ctx_scr[:, h * dh:(h + 1) * dh] = ctx_h.reshape(rows, dh).astype(jnp.bfloat16)

    # ONE full-K output projection (rows, D)@(D, D) from the context scratch
    attn = jnp.dot(ctx_scr[...], wo_ref[0],
                   preferred_element_type=jnp.float32) + bo_ref[0]

    # ---- residual + LayerNorm 1  (dropout = identity in eval mode) -----
    h1 = _layer_norm(x + attn, g1_ref[0], be1_ref[0], eps)

    # ---- FeedForward: relu(h @ W1 + b1) @ W2 + b2 -----------------------
    ff = jnp.dot(h1.astype(jnp.bfloat16), w1_ref[0],
                 preferred_element_type=jnp.float32) + b1_ref[0]
    ff = jnp.maximum(ff, 0.0)
    ff = jnp.dot(ff.astype(jnp.bfloat16), w2_ref[0],
                 preferred_element_type=jnp.float32) + b2_ref[0]

    # ---- residual + LayerNorm 2 -----------------------------------------
    out = _layer_norm(h1 + ff, g2_ref[0], be2_ref[0], eps)

    h_scr[...] = out                              # carry to the next layer

    # only the final layer's activations ever need to reach HBM
    @pl.when(layer == n_layers - 1)
    def _():
        o_ref[...] = out.reshape(b_blk, T, D).astype(o_ref.dtype)


def _pick_batch_block(B, T, rows_cap=512):
    """Largest divisor of B keeping the folded activation slab <= rows_cap rows."""
    best = 1
    for cand in range(1, B + 1):
        if B % cand == 0 and cand * T <= rows_cap:
            best = cand
    return best


def _vmem_limit_bytes():
    """Per-generation VMEM budget: ~75% of the core's capacity, capped at 96 MiB."""
    cap = 64 * 1024 * 1024
    try:
        info = pltpu.get_tpu_info()
        cap = int(getattr(info, "vmem_capacity_bytes", cap))
    except Exception:
        pass
    return min((cap * 3) // 4, 96 * 1024 * 1024)


def encoder_stack_forward(x, kp, *, num_head, eps):
    """x: (B, T, D) f32 activations; kp: dict of layer-stacked kernel params."""
    B, T, D = x.shape
    names = ["wqkv", "bqkv", "wo", "bo", "g1", "be1",
             "w1", "b1", "w2", "b2", "g2", "be2"]
    plist = [kp[n] for n in names]
    n_layers = plist[0].shape[0]
    d_ff = kp["w1"].shape[-1]

    b_blk = _pick_batch_block(B, T)
    n_bblocks = B // b_blk
    rows = b_blk * T

    def stacked_spec(arr):
        # block = one layer's full parameter, indexed by the (inner) layer axis
        return pl.BlockSpec((1,) + arr.shape[1:], lambda b, l: (l, 0, 0))

    in_specs = [pl.BlockSpec((b_blk, T, D), lambda b, l: (b, 0, 0))]
    in_specs += [stacked_spec(a) for a in plist]
    out_specs = pl.BlockSpec((b_blk, T, D), lambda b, l: (b, 0, 0))

    # advisory cost estimate so XLA can overlap surrounding ops
    flops = B * n_layers * (8 * T * D * D + 4 * T * T * D + 4 * T * D * d_ff)
    transcendentals = B * n_layers * (num_head * T * T + num_head * T + 2 * T)
    weight_bytes = sum(int(a.size) * a.dtype.itemsize for a in plist)
    bytes_accessed = n_bblocks * weight_bytes + 2 * B * T * D * 4

    kernel = functools.partial(encoder_stack_kernel, num_head=num_head, eps=eps,
                               b_blk=b_blk, seq_len=T)
    return pl.pallas_call(
        kernel,
        out_shape=jax.ShapeDtypeStruct((B, T, D), x.dtype),
        grid=(n_bblocks, n_layers),
        in_specs=in_specs,
        out_specs=out_specs,
        scratch_shapes=[pltpu.VMEM((rows, D), jnp.float32),    # activation carry
                        pltpu.VMEM((rows, D), jnp.bfloat16)],  # per-head context slab
        compiler_params=pltpu.CompilerParams(
            dimension_semantics=("parallel", "arbitrary"),
            vmem_limit_bytes=_vmem_limit_bytes(),
        ),
        cost_estimate=pl.CostEstimate(
            flops=int(flops),
            transcendentals=int(transcendentals),
            bytes_accessed=int(bytes_accessed),
        ),
    )(x, *plist)


def prepare_kernel_params(params, num_head):
    """Stack per-layer params along a layer axis, fuse QKV, fold the softmax
    scale into the Q projection, and cast matmul weights to bf16."""
    blocks = params["blocks"]
    d_model = params["token_emb"].shape[1]
    dh = d_model // num_head
    scale = 1.0 / (dh ** 0.5)

    def stack(name):
        return jnp.stack([b[name] for b in blocks], axis=0)

    wq = stack("wq") * scale
    bq = stack("bq") * scale
    wqkv = jnp.concatenate([wq, stack("wk"), stack("wv")], axis=-1)   # (N, D, 3D)
    bqkv = jnp.concatenate([bq, stack("bk"), stack("bv")], axis=-1)   # (N, 1, 3D)
    return {
        "wqkv": wqkv.astype(jnp.bfloat16),
        "bqkv": bqkv.astype(jnp.float32),
        "wo": stack("wo").astype(jnp.bfloat16),
        "bo": stack("bo").astype(jnp.float32),
        "g1": stack("g1").astype(jnp.float32),
        "be1": stack("be1").astype(jnp.float32),
        "w1": stack("w1").astype(jnp.bfloat16),
        "b1": stack("b1").astype(jnp.float32),
        "w2": stack("w2").astype(jnp.bfloat16),
        "b2": stack("b2").astype(jnp.float32),
        "g2": stack("g2").astype(jnp.float32),
        "be2": stack("be2").astype(jnp.float32),
    }


def encoder_forward(ids, params, *, num_head, eps):
    B, T = ids.shape
    # embedding lookup (gather) kept as JAX glue
    tok = jnp.take(params["token_emb"], ids, axis=0)            # (B, T, D)
    pos = params["pos_emb"][:T][None, :, :]                     # (1, T, D)
    x = (tok + pos).astype(jnp.float32)
    kp = prepare_kernel_params(params, num_head)
    return encoder_stack_forward(x, kp, num_head=num_head, eps=eps)


def init_params(key, N, vocab_size, d_model, d_ff, max_seq_len):
    keys = jax.random.split(key, 2 + N)
    params = {
        "token_emb": 0.02 * jax.random.normal(keys[0], (vocab_size, d_model), jnp.float32),
        "pos_emb":   0.02 * jax.random.normal(keys[1], (max_seq_len, d_model), jnp.float32),
        "blocks": [],
    }
    s_dm = 1.0 / (d_model ** 0.5)
    s_ff = 1.0 / (d_ff ** 0.5)
    for i in range(N):
        bk = jax.random.split(keys[2 + i], 6)
        blk = {
            "wq": s_dm * jax.random.normal(bk[0], (d_model, d_model), jnp.float32),
            "bq": jnp.zeros((1, d_model), jnp.float32),
            "wk": s_dm * jax.random.normal(bk[1], (d_model, d_model), jnp.float32),
            "bk": jnp.zeros((1, d_model), jnp.float32),
            "wv": s_dm * jax.random.normal(bk[2], (d_model, d_model), jnp.float32),
            "bv": jnp.zeros((1, d_model), jnp.float32),
            "wo": s_dm * jax.random.normal(bk[3], (d_model, d_model), jnp.float32),
            "bo": jnp.zeros((1, d_model), jnp.float32),
            "g1": jnp.ones((1, d_model), jnp.float32),
            "be1": jnp.zeros((1, d_model), jnp.float32),
            "w1": s_dm * jax.random.normal(bk[4], (d_model, d_ff), jnp.float32),
            "b1": jnp.zeros((1, d_ff), jnp.float32),
            "w2": s_ff * jax.random.normal(bk[5], (d_ff, d_model), jnp.float32),
            "b2": jnp.zeros((1, d_model), jnp.float32),
            "g2": jnp.ones((1, d_model), jnp.float32),
            "be2": jnp.zeros((1, d_model), jnp.float32),
        }
        params["blocks"].append(blk)
    return params


if __name__ == "__main__":
    # small config consistent with Encoder(N, vocab_size, d_model, d_ff, num_head);
    # d_model / num_head = 128 keeps the per-head slices lane-aligned.
    N, vocab_size, d_model, d_ff, num_head = 2, 64, 256, 512, 2
    max_seq_len, eps = 32, 1e-5
    B, T = 2, 16

    key = jax.random.PRNGKey(0)
    k_param, k_ids = jax.random.split(key)
    params = init_params(k_param, N, vocab_size, d_model, d_ff, max_seq_len)
    ids = jax.random.randint(k_ids, (B, T), 0, vocab_size, dtype=jnp.int32)

    fwd = jax.jit(functools.partial(encoder_forward, num_head=num_head, eps=eps))
    out = fwd(ids, params)
    jax.block_until_ready(out)
    assert out.shape == (B, T, d_model) and out.dtype == jnp.float32
    assert bool(jnp.all(jnp.isfinite(out)))
    print("KERNEL_OK")
</pallas_src>

<mosaic_0001>
module attributes {stable_mosaic.version = 11 : i64} {
  func.func @encoder_stack_kernel(%arg0: i32, %arg1: i32, %arg2: memref<2x16x256xf32, #tpu.memory_space<vmem>>, %arg3: memref<1x256x768xbf16, #tpu.memory_space<vmem>>, %arg4: memref<1x1x768xf32, #tpu.memory_space<vmem>>, %arg5: memref<1x256x256xbf16, #tpu.memory_space<vmem>>, %arg6: memref<1x1x256xf32, #tpu.memory_space<vmem>>, %arg7: memref<1x1x256xf32, #tpu.memory_space<vmem>>, %arg8: memref<1x1x256xf32, #tpu.memory_space<vmem>>, %arg9: memref<1x256x512xbf16, #tpu.memory_space<vmem>>, %arg10: memref<1x1x512xf32, #tpu.memory_space<vmem>>, %arg11: memref<1x512x256xbf16, #tpu.memory_space<vmem>>, %arg12: memref<1x1x256xf32, #tpu.memory_space<vmem>>, %arg13: memref<1x1x256xf32, #tpu.memory_space<vmem>>, %arg14: memref<1x1x256xf32, #tpu.memory_space<vmem>>, %arg15: memref<2x16x256xf32, #tpu.memory_space<vmem>>, %arg16: memref<32x256xf32, #tpu.memory_space<vmem>>, %arg17: memref<32x256xbf16, #tpu.memory_space<vmem>>) attributes {dimension_semantics = [#tpu.dimension_semantics<parallel>, #tpu.dimension_semantics<arbitrary>], iteration_bounds = array<i64: 1, 2>, scalar_prefetch = 0 : i64, scratch_operands = 2 : i64, tpu.core_type = #tpu.core_type<tc>, window_params = [{transform_indices = @transform_0, window_bounds = array<i64: 2, 16, 256>}, {transform_indices = @transform_1, window_bounds = array<i64: 1, 256, 768>}, {transform_indices = @transform_2, window_bounds = array<i64: 1, 1, 768>}, {transform_indices = @transform_3, window_bounds = array<i64: 1, 256, 256>}, {transform_indices = @transform_4, window_bounds = array<i64: 1, 1, 256>}, {transform_indices = @transform_5, window_bounds = array<i64: 1, 1, 256>}, {transform_indices = @transform_6, window_bounds = array<i64: 1, 1, 256>}, {transform_indices = @transform_7, window_bounds = array<i64: 1, 256, 512>}, {transform_indices = @transform_8, window_bounds = array<i64: 1, 1, 512>}, {transform_indices = @transform_9, window_bounds = array<i64: 1, 512, 256>}, {transform_indices = @transform_10, window_bounds = array<i64: 1, 1, 256>}, {transform_indices = @transform_11, window_bounds = array<i64: 1, 1, 256>}, {transform_indices = @transform_12, window_bounds = array<i64: 1, 1, 256>}, {transform_indices = @transform_13, window_bounds = array<i64: 2, 16, 256>}]} {
    %c0_i32 = arith.constant 0 : i32
    %0 = arith.cmpi eq, %arg1, %c0_i32 : i32
    %1 = arith.extui %0 : i1 to i32
    %c0_i32_0 = arith.constant 0 : i32
    %2 = arith.cmpi ne, %1, %c0_i32_0 : i32
    scf.if %2 {
      %c0_70 = arith.constant 0 : index
      %c0_71 = arith.constant 0 : index
      %c0_72 = arith.constant 0 : index
      %140 = vector.load %arg2[%c0_70, %c0_71, %c0_72] : memref<2x16x256xf32, #tpu.memory_space<vmem>>, vector<2x16x256xf32>
      %141 = vector.shape_cast %140 : vector<2x16x256xf32> to vector<32x256xf32>
      %c0_73 = arith.constant 0 : index
      %c0_74 = arith.constant 0 : index
      %142 = vector.load %arg16[%c0_73, %c0_74] : memref<32x256xf32, #tpu.memory_space<vmem>>, vector<32x256xf32>
      tpu.vector_store %arg16[%c0_73, %c0_74], %141 {strides = array<i32>} : memref<32x256xf32, #tpu.memory_space<vmem>>, vector<32x256xf32>,
    } else {
    }
    %c0 = arith.constant 0 : index
    %c0_1 = arith.constant 0 : index
    %3 = vector.load %arg16[%c0, %c0_1] : memref<32x256xf32, #tpu.memory_space<vmem>>, vector<32x256xf32>
    %4 = arith.truncf %3 : vector<32x256xf32> to vector<32x256xbf16>
    %c0_2 = arith.constant 0 : index
    %c0_3 = arith.constant 0 : index
    %c0_4 = arith.constant 0 : index
    %5 = vector.load %arg3[%c0_2, %c0_3, %c0_4] : memref<1x256x768xbf16, #tpu.memory_space<vmem>>, vector<1x256x768xbf16>
    %6 = vector.shape_cast %5 : vector<1x256x768xbf16> to vector<256x768xbf16>
    %cst = arith.constant dense<0.000000e+00> : vector<32x768xf32>
    %7 = tpu.matmul %4, %6, %cst {dimension_numbers = #tpu.dot_dimension_numbers<[1], [0], [0], [1], [0, 0, 1, 1], [], []>} : vector<32x256xbf16>, vector<256x768xbf16>, vector<32x768xf32> -> vector<32x768xf32>
    %c0_5 = arith.constant 0 : index
    %c0_6 = arith.constant 0 : index
    %c0_7 = arith.constant 0 : index
    %8 = vector.load %arg4[%c0_5, %c0_6, %c0_7] : memref<1x1x768xf32, #tpu.memory_space<vmem>>, vector<1x1x768xf32>
    %9 = vector.shape_cast %8 : vector<1x1x768xf32> to vector<1x768xf32>
    %10 = vector.broadcast %9 : vector<1x768xf32> to vector<32x768xf32>
    %11 = arith.addf %7, %10 : vector<32x768xf32>
    %12 = arith.truncf %11 : vector<32x768xf32> to vector<32x768xbf16>
    %13 = vector.shape_cast %12 : vector<32x768xbf16> to vector<2x16x768xbf16>
    %14 = vector.extract_strided_slice %13 {offsets = [0, 0, 0], sizes = [2, 16, 128], strides = [1, 1, 1]} : vector<2x16x768xbf16> to vector<2x16x128xbf16>
    %15 = vector.extract_strided_slice %13 {offsets = [0, 0, 256], sizes = [2, 16, 128], strides = [1, 1, 1]} : vector<2x16x768xbf16> to vector<2x16x128xbf16>
    %16 = vector.extract_strided_slice %13 {offsets = [0, 0, 512], sizes = [2, 16, 128], strides = [1, 1, 1]} : vector<2x16x768xbf16> to vector<2x16x128xbf16>
    %cst_8 = arith.constant dense<0.000000e+00> : vector<2x16x16xf32>
    %17 = tpu.matmul %14, %15, %cst_8 {dimension_numbers = #tpu.dot_dimension_numbers<[2], [2], [1], [1], [0, 0, 0, 1, 1, 1], [0], [0]>} : vector<2x16x128xbf16>, vector<2x16x128xbf16>, vector<2x16x16xf32> -> vector<2x16x16xf32>
    %cst_9 = arith.constant dense<0xFF800000> : vector<2x16xf32>
    %18 = vector.multi_reduction <maximumf>, %17, %cst_9 [2] : vector<2x16x16xf32> to vector<2x16xf32>
    %19 = vector.shape_cast %18 : vector<2x16xf32> to vector<2x16x1xf32>
    %20 = vector.broadcast %19 : vector<2x16x1xf32> to vector<2x16x16xf32>
    %21 = arith.subf %17, %20 : vector<2x16x16xf32>
    %22 = math.exp %21 : vector<2x16x16xf32>
    %cst_10 = arith.constant dense<0.000000e+00> : vector<2x16xf32>
    %23 = vector.multi_reduction <add>, %22, %cst_10 [2] : vector<2x16x16xf32> to vector<2x16xf32>
    %24 = vector.shape_cast %23 : vector<2x16xf32> to vector<2x16x1xf32>
    %25 = tpu.reciprocal %24 {approx = true} : vector<2x16x1xf32> -> vector<2x16x1xf32>
    %26 = vector.broadcast %25 : vector<2x16x1xf32> to vector<2x16x16xf32>
    %27 = arith.mulf %22, %26 : vector<2x16x16xf32>
    %28 = arith.truncf %27 : vector<2x16x16xf32> to vector<2x16x16xbf16>
    %cst_11 = arith.constant dense<0.000000e+00> : vector<2x16x128xf32>
    %29 = tpu.matmul %28, %16, %cst_11 {dimension_numbers = #tpu.dot_dimension_numbers<[2], [1], [1], [2], [0, 0, 0, 1, 1, 2], [0], [0]>} : vector<2x16x16xbf16>, vector<2x16x128xbf16>, vector<2x16x128xf32> -> vector<2x16x128xf32>
    %30 = vector.shape_cast %29 : vector<2x16x128xf32> to vector<32x128xf32>
    %31 = arith.truncf %30 : vector<32x128xf32> to vector<32x128xbf16>
    %c0_12 = arith.constant 0 : index
    %c0_13 = arith.constant 0 : index
    %32 = vector.load %arg17[%c0_12, %c0_13] : memref<32x256xbf16, #tpu.memory_space<vmem>>, vector<32x128xbf16>
    tpu.vector_store %arg17[%c0_12, %c0_13], %31 {strides = array<i32>} : memref<32x256xbf16, #tpu.memory_space<vmem>>, vector<32x128xbf16>,
    %33 = vector.extract_strided_slice %13 {offsets = [0, 0, 128], sizes = [2, 16, 128], strides = [1, 1, 1]} : vector<2x16x768xbf16> to vector<2x16x128xbf16>
    %34 = vector.extract_strided_slice %13 {offsets = [0, 0, 384], sizes = [2, 16, 128], strides = [1, 1, 1]} : vector<2x16x768xbf16> to vector<2x16x128xbf16>
    %35 = vector.extract_strided_slice %13 {offsets = [0, 0, 640], sizes = [2, 16, 128], strides = [1, 1, 1]} : vector<2x16x768xbf16> to vector<2x16x128xbf16>
    %cst_14 = arith.constant dense<0.000000e+00> : vector<2x16x16xf32>
    %36 = tpu.matmul %33, %34, %cst_14 {dimension_numbers = #tpu.dot_dimension_numbers<[2], [2], [1], [1], [0, 0, 0, 1, 1, 1], [0], [0]>} : vector<2x16x128xbf16>, vector<2x16x128xbf16>, vector<2x16x16xf32> -> vector<2x16x16xf32>
    %cst_15 = arith.constant dense<0xFF800000> : vector<2x16xf32>
    %37 = vector.multi_reduction <maximumf>, %36, %cst_15 [2] : vector<2x16x16xf32> to vector<2x16xf32>
    %38 = vector.shape_cast %37 : vector<2x16xf32> to vector<2x16x1xf32>
    %39 = vector.broadcast %38 : vector<2x16x1xf32> to vector<2x16x16xf32>
    %40 = arith.subf %36, %39 : vector<2x16x16xf32>
    %41 = math.exp %40 : vector<2x16x16xf32>
    %cst_16 = arith.constant dense<0.000000e+00> : vector<2x16xf32>
    %42 = vector.multi_reduction <add>, %41, %cst_16 [2] : vector<2x16x16xf32> to vector<2x16xf32>
    %43 = vector.shape_cast %42 : vector<2x16xf32> to vector<2x16x1xf32>
    %44 = tpu.reciprocal %43 {approx = true} : vector<2x16x1xf32> -> vector<2x16x1xf32>
    %45 = vector.broadcast %44 : vector<2x16x1xf32> to vector<2x16x16xf32>
    %46 = arith.mulf %41, %45 : vector<2x16x16xf32>
    %47 = arith.truncf %46 : vector<2x16x16xf32> to vector<2x16x16xbf16>
    %cst_17 = arith.constant dense<0.000000e+00> : vector<2x16x128xf32>
    %48 = tpu.matmul %47, %35, %cst_17 {dimension_numbers = #tpu.dot_dimension_numbers<[2], [1], [1], [2], [0, 0, 0, 1, 1, 2], [0], [0]>} : vector<2x16x16xbf16>, vector<2x16x128xbf16>, vector<2x16x128xf32> -> vector<2x16x128xf32>
    %49 = vector.shape_cast %48 : vector<2x16x128xf32> to vector<32x128xf32>
    %50 = arith.truncf %49 : vector<32x128xf32> to vector<32x128xbf16>
    %c0_18 = arith.constant 0 : index
    %c128 = arith.constant 128 : index
    %51 = vector.load %arg17[%c0_18, %c128] : memref<32x256xbf16, #tpu.memory_space<vmem>>, vector<32x128xbf16>
    tpu.vector_store %arg17[%c0_18, %c128], %50 {strides = array<i32>} : memref<32x256xbf16, #tpu.memory_space<vmem>>, vector<32x128xbf16>,
    %c0_19 = arith.constant 0 : index
    %c0_20 = arith.constant 0 : index
    %52 = vector.load %arg17[%c0_19, %c0_20] : memref<32x256xbf16, #tpu.memory_space<vmem>>, vector<32x256xbf16>
    %c0_21 = arith.constant 0 : index
    %c0_22 = arith.constant 0 : index
    %c0_23 = arith.constant 0 : index
    %53 = vector.load %arg5[%c0_21, %c0_22, %c0_23] : memref<1x256x256xbf16, #tpu.memory_space<vmem>>, vector<1x256x256xbf16>
    %54 = vector.shape_cast %53 : vector<1x256x256xbf16> to vector<256x256xbf16>
    %cst_24 = arith.constant dense<0.000000e+00> : vector<32x256xf32>
    %55 = tpu.matmul %52, %54, %cst_24 {dimension_numbers = #tpu.dot_dimension_numbers<[1], [0], [0], [1], [0, 0, 1, 1], [], []>} : vector<32x256xbf16>, vector<256x256xbf16>, vector<32x256xf32> -> vector<32x256xf32>
    %c0_25 = arith.constant 0 : index
    %c0_26 = arith.constant 0 : index
    %c0_27 = arith.constant 0 : index
    %56 = vector.load %arg6[%c0_25, %c0_26, %c0_27] : memref<1x1x256xf32, #tpu.memory_space<vmem>>, vector<1x1x256xf32>
    %57 = vector.shape_cast %56 : vector<1x1x256xf32> to vector<1x256xf32>
    %58 = vector.broadcast %57 : vector<1x256xf32> to vector<32x256xf32>
    %59 = arith.addf %55, %58 : vector<32x256xf32>
    %60 = arith.addf %3, %59 : vector<32x256xf32>
    %c0_28 = arith.constant 0 : index
    %c0_29 = arith.constant 0 : index
    %c0_30 = arith.constant 0 : index
    %61 = vector.load %arg7[%c0_28, %c0_29, %c0_30] : memref<1x1x256xf32, #tpu.memory_space<vmem>>, vector<1x1x256xf32>
    %62 = vector.shape_cast %61 : vector<1x1x256xf32> to vector<1x256xf32>
    %c0_31 = arith.constant 0 : index
    %c0_32 = arith.constant 0 : index
    %c0_33 = arith.constant 0 : index
    %63 = vector.load %arg8[%c0_31, %c0_32, %c0_33] : memref<1x1x256xf32, #tpu.memory_space<vmem>>, vector<1x1x256xf32>
    %64 = vector.shape_cast %63 : vector<1x1x256xf32> to vector<1x256xf32>
    %cst_34 = arith.constant dense<0.000000e+00> : vector<32xf32>
    %65 = vector.multi_reduction <add>, %60, %cst_34 [1] : vector<32x256xf32> to vector<32xf32>
    %66 = vector.shape_cast %65 : vector<32xf32> to vector<32x1xf32>
    %cst_35 = arith.constant 2.560000e+02 : f32
    %67 = vector.broadcast %cst_35 : f32 to vector<32x1xf32>
    %68 = arith.divf %66, %67 : vector<32x1xf32>
    %69 = arith.mulf %60, %60 : vector<32x256xf32>
    %cst_36 = arith.constant dense<0.000000e+00> : vector<32xf32>
    %70 = vector.multi_reduction <add>, %69, %cst_36 [1] : vector<32x256xf32> to vector<32xf32>
    %71 = vector.shape_cast %70 : vector<32xf32> to vector<32x1xf32>
    %cst_37 = arith.constant 2.560000e+02 : f32
    %72 = vector.broadcast %cst_37 : f32 to vector<32x1xf32>
    %73 = arith.divf %71, %72 : vector<32x1xf32>
    %74 = arith.mulf %68, %68 : vector<32x1xf32>
    %75 = arith.subf %73, %74 : vector<32x1xf32>
    %cst_38 = arith.constant 0.000000e+00 : f32
    %76 = vector.broadcast %cst_38 : f32 to vector<32x1xf32>
    %77 = arith.maximumf %75, %76 : vector<32x1xf32>
    %78 = vector.broadcast %68 : vector<32x1xf32> to vector<32x256xf32>
    %79 = arith.subf %60, %78 : vector<32x256xf32>
    %cst_39 = arith.constant 9.99999974E-6 : f32
    %80 = vector.broadcast %cst_39 : f32 to vector<32x1xf32>
    %81 = arith.addf %77, %80 : vector<32x1xf32>
    %82 = math.rsqrt %81 : vector<32x1xf32>
    %83 = vector.broadcast %82 : vector<32x1xf32> to vector<32x256xf32>
    %84 = arith.mulf %79, %83 : vector<32x256xf32>
    %85 = vector.broadcast %62 : vector<1x256xf32> to vector<32x256xf32>
    %86 = arith.mulf %84, %85 : vector<32x256xf32>
    %87 = vector.broadcast %64 : vector<1x256xf32> to vector<32x256xf32>
    %88 = arith.addf %86, %87 : vector<32x256xf32>
    %89 = arith.truncf %88 : vector<32x256xf32> to vector<32x256xbf16>
    %c0_40 = arith.constant 0 : index
    %c0_41 = arith.constant 0 : index
    %c0_42 = arith.constant 0 : index
    %90 = vector.load %arg9[%c0_40, %c0_41, %c0_42] : memref<1x256x512xbf16, #tpu.memory_space<vmem>>, vector<1x256x512xbf16>
    %91 = vector.shape_cast %90 : vector<1x256x512xbf16> to vector<256x512xbf16>
    %cst_43 = arith.constant dense<0.000000e+00> : vector<32x512xf32>
    %92 = tpu.matmul %89, %91, %cst_43 {dimension_numbers = #tpu.dot_dimension_numbers<[1], [0], [0], [1], [0, 0, 1, 1], [], []>} : vector<32x256xbf16>, vector<256x512xbf16>, vector<32x512xf32> -> vector<32x512xf32>
    %c0_44 = arith.constant 0 : index
    %c0_45 = arith.constant 0 : index
    %c0_46 = arith.constant 0 : index
    %93 = vector.load %arg10[%c0_44, %c0_45, %c0_46] : memref<1x1x512xf32, #tpu.memory_space<vmem>>, vector<1x1x512xf32>
    %94 = vector.shape_cast %93 : vector<1x1x512xf32> to vector<1x512xf32>
    %95 = vector.broadcast %94 : vector<1x512xf32> to vector<32x512xf32>
    %96 = arith.addf %92, %95 : vector<32x512xf32>
    %cst_47 = arith.constant 0.000000e+00 : f32
    %97 = vector.broadcast %cst_47 : f32 to vector<32x512xf32>
    %98 = arith.maximumf %96, %97 : vector<32x512xf32>
    %99 = arith.truncf %98 : vector<32x512xf32> to vector<32x512xbf16>
    %c0_48 = arith.constant 0 : index
    %c0_49 = arith.constant 0 : index
    %c0_50 = arith.constant 0 : index
    %100 = vector.load %arg11[%c0_48, %c0_49, %c0_50] : memref<1x512x256xbf16, #tpu.memory_space<vmem>>, vector<1x512x256xbf16>
    %101 = vector.shape_cast %100 : vector<1x512x256xbf16> to vector<512x256xbf16>
    %cst_51 = arith.constant dense<0.000000e+00> : vector<32x256xf32>
    %102 = tpu.matmul %99, %101, %cst_51 {dimension_numbers = #tpu.dot_dimension_numbers<[1], [0], [0], [1], [0, 0, 1, 1], [], []>} : vector<32x512xbf16>, vector<512x256xbf16>, vector<32x256xf32> -> vector<32x256xf32>
    %c0_52 = arith.constant 0 : index
    %c0_53 = arith.constant 0 : index
    %c0_54 = arith.constant 0 : index
    %103 = vector.load %arg12[%c0_52, %c0_53, %c0_54] : memref<1x1x256xf32, #tpu.memory_space<vmem>>, vector<1x1x256xf32>
    %104 = vector.shape_cast %103 : vector<1x1x256xf32> to vector<1x256xf32>
    %105 = vector.broadcast %104 : vector<1x256xf32> to vector<32x256xf32>
    %106 = arith.addf %102, %105 : vector<32x256xf32>
    %107 = arith.addf %88, %106 : vector<32x256xf32>
    %c0_55 = arith.constant 0 : index
    %c0_56 = arith.constant 0 : index
    %c0_57 = arith.constant 0 : index
    %108 = vector.load %arg13[%c0_55, %c0_56, %c0_57] : memref<1x1x256xf32, #tpu.memory_space<vmem>>, vector<1x1x256xf32>
    %109 = vector.shape_cast %108 : vector<1x1x256xf32> to vector<1x256xf32>
    %c0_58 = arith.constant 0 : index
    %c0_59 = arith.constant 0 : index
    %c0_60 = arith.constant 0 : index
    %110 = vector.load %arg14[%c0_58, %c0_59, %c0_60] : memref<1x1x256xf32, #tpu.memory_space<vmem>>, vector<1x1x256xf32>
    %111 = vector.shape_cast %110 : vector<1x1x256xf32> to vector<1x256xf32>
    %cst_61 = arith.constant dense<0.000000e+00> : vector<32xf32>
    %112 = vector.multi_reduction <add>, %107, %cst_61 [1] : vector<32x256xf32> to vector<32xf32>
    %113 = vector.shape_cast %112 : vector<32xf32> to vector<32x1xf32>
    %cst_62 = arith.constant 2.560000e+02 : f32
    %114 = vector.broadcast %cst_62 : f32 to vector<32x1xf32>
    %115 = arith.divf %113, %114 : vector<32x1xf32>
    %116 = arith.mulf %107, %107 : vector<32x256xf32>
    %cst_63 = arith.constant dense<0.000000e+00> : vector<32xf32>
    %117 = vector.multi_reduction <add>, %116, %cst_63 [1] : vector<32x256xf32> to vector<32xf32>
    %118 = vector.shape_cast %117 : vector<32xf32> to vector<32x1xf32>
    %cst_64 = arith.constant 2.560000e+02 : f32
    %119 = vector.broadcast %cst_64 : f32 to vector<32x1xf32>
    %120 = arith.divf %118, %119 : vector<32x1xf32>
    %121 = arith.mulf %115, %115 : vector<32x1xf32>
    %122 = arith.subf %120, %121 : vector<32x1xf32>
    %cst_65 = arith.constant 0.000000e+00 : f32
    %123 = vector.broadcast %cst_65 : f32 to vector<32x1xf32>
    %124 = arith.maximumf %122, %123 : vector<32x1xf32>
    %125 = vector.broadcast %115 : vector<32x1xf32> to vector<32x256xf32>
    %126 = arith.subf %107, %125 : vector<32x256xf32>
    %cst_66 = arith.constant 9.99999974E-6 : f32
    %127 = vector.broadcast %cst_66 : f32 to vector<32x1xf32>
    %128 = arith.addf %124, %127 : vector<32x1xf32>
    %129 = math.rsqrt %128 : vector<32x1xf32>
    %130 = vector.broadcast %129 : vector<32x1xf32> to vector<32x256xf32>
    %131 = arith.mulf %126, %130 : vector<32x256xf32>
    %132 = vector.broadcast %109 : vector<1x256xf32> to vector<32x256xf32>
    %133 = arith.mulf %131, %132 : vector<32x256xf32>
    %134 = vector.broadcast %111 : vector<1x256xf32> to vector<32x256xf32>
    %135 = arith.addf %133, %134 : vector<32x256xf32>
    %c0_67 = arith.constant 0 : index
    %c0_68 = arith.constant 0 : index
    %136 = vector.load %arg16[%c0_67, %c0_68] : memref<32x256xf32, #tpu.memory_space<vmem>>, vector<32x256xf32>
    tpu.vector_store %arg16[%c0_67, %c0_68], %135 {strides = array<i32>} : memref<32x256xf32, #tpu.memory_space<vmem>>, vector<32x256xf32>,
    %c1_i32 = arith.constant 1 : i32
    %137 = arith.cmpi eq, %arg1, %c1_i32 : i32
    %138 = arith.extui %137 : i1 to i32
    %c0_i32_69 = arith.constant 0 : i32
    %139 = arith.cmpi ne, %138, %c0_i32_69 : i32
    scf.if %139 {
      %140 = vector.shape_cast %135 : vector<32x256xf32> to vector<2x16x256xf32>
      %c0_70 = arith.constant 0 : index
      %c0_71 = arith.constant 0 : index
      %c0_72 = arith.constant 0 : index
      %141 = vector.load %arg15[%c0_70, %c0_71, %c0_72] : memref<2x16x256xf32, #tpu.memory_space<vmem>>, vector<2x16x256xf32>
      tpu.vector_store %arg15[%c0_70, %c0_71, %c0_72], %140 {strides = array<i32>} : memref<2x16x256xf32, #tpu.memory_space<vmem>>, vector<2x16x256xf32>,
    } else {
    }
    return
  }
  func.func @transform_0(%arg0: i32, %arg1: i32) -> (i32, i32, i32) {
    %c0_i32 = arith.constant 0 : i32
    %c0_i32_0 = arith.constant 0 : i32
    %c0_i32_1 = arith.constant 0 : i32
    return %arg0, %c0_i32, %c0_i32_0 : i32, i32, i32
  }
  func.func @transform_1(%arg0: i32, %arg1: i32) -> (i32, i32, i32) {
    %c0_i32 = arith.constant 0 : i32
    %c0_i32_0 = arith.constant 0 : i32
    %c0_i32_1 = arith.constant 0 : i32
    return %arg1, %c0_i32, %c0_i32_0 : i32, i32, i32
  }
  func.func @transform_2(%arg0: i32, %arg1: i32) -> (i32, i32, i32) {
    %c0_i32 = arith.constant 0 : i32
    %c0_i32_0 = arith.constant 0 : i32
    %c0_i32_1 = arith.constant 0 : i32
    return %arg1, %c0_i32, %c0_i32_0 : i32, i32, i32
  }
  func.func @transform_3(%arg0: i32, %arg1: i32) -> (i32, i32, i32) {
    %c0_i32 = arith.constant 0 : i32
    %c0_i32_0 = arith.constant 0 : i32
    %c0_i32_1 = arith.constant 0 : i32
    return %arg1, %c0_i32, %c0_i32_0 : i32, i32, i32
  }
  func.func @transform_4(%arg0: i32, %arg1: i32) -> (i32, i32, i32) {
    %c0_i32 = arith.constant 0 : i32
    %c0_i32_0 = arith.constant 0 : i32
    %c0_i32_1 = arith.constant 0 : i32
    return %arg1, %c0_i32, %c0_i32_0 : i32, i32, i32
  }
  func.func @transform_5(%arg0: i32, %arg1: i32) -> (i32, i32, i32) {
    %c0_i32 = arith.constant 0 : i32
    %c0_i32_0 = arith.constant 0 : i32
    %c0_i32_1 = arith.constant 0 : i32
    return %arg1, %c0_i32, %c0_i32_0 : i32, i32, i32
  }
  func.func @transform_6(%arg0: i32, %arg1: i32) -> (i32, i32, i32) {
    %c0_i32 = arith.constant 0 : i32
    %c0_i32_0 = arith.constant 0 : i32
    %c0_i32_1 = arith.constant 0 : i32
    return %arg1, %c0_i32, %c0_i32_0 : i32, i32, i32
  }
  func.func @transform_7(%arg0: i32, %arg1: i32) -> (i32, i32, i32) {
    %c0_i32 = arith.constant 0 : i32
    %c0_i32_0 = arith.constant 0 : i32
    %c0_i32_1 = arith.constant 0 : i32
    return %arg1, %c0_i32, %c0_i32_0 : i32, i32, i32
  }
  func.func @transform_8(%arg0: i32, %arg1: i32) -> (i32, i32, i32) {
    %c0_i32 = arith.constant 0 : i32
    %c0_i32_0 = arith.constant 0 : i32
    %c0_i32_1 = arith.constant 0 : i32
    return %arg1, %c0_i32, %c0_i32_0 : i32, i32, i32
  }
  func.func @transform_9(%arg0: i32, %arg1: i32) -> (i32, i32, i32) {
    %c0_i32 = arith.constant 0 : i32
    %c0_i32_0 = arith.constant 0 : i32
    %c0_i32_1 = arith.constant 0 : i32
    return %arg1, %c0_i32, %c0_i32_0 : i32, i32, i32
  }
  func.func @transform_10(%arg0: i32, %arg1: i32) -> (i32, i32, i32) {
    %c0_i32 = arith.constant 0 : i32
    %c0_i32_0 = arith.constant 0 : i32
    %c0_i32_1 = arith.constant 0 : i32
    return %arg1, %c0_i32, %c0_i32_0 : i32, i32, i32
  }
  func.func @transform_11(%arg0: i32, %arg1: i32) -> (i32, i32, i32) {
    %c0_i32 = arith.constant 0 : i32
    %c0_i32_0 = arith.constant 0 : i32
    %c0_i32_1 = arith.constant 0 : i32
    return %arg1, %c0_i32, %c0_i32_0 : i32, i32, i32
  }
  func.func @transform_12(%arg0: i32, %arg1: i32) -> (i32, i32, i32) {
    %c0_i32 = arith.constant 0 : i32
    %c0_i32_0 = arith.constant 0 : i32
    %c0_i32_1 = arith.constant 0 : i32
    return %arg1, %c0_i32, %c0_i32_0 : i32, i32, i32
  }
  func.func @transform_13(%arg0: i32, %arg1: i32) -> (i32, i32, i32) {
    %c0_i32 = arith.constant 0 : i32
    %c0_i32_0 = arith.constant 0 : i32
    %c0_i32_1 = arith.constant 0 : i32
    return %arg0, %c0_i32, %c0_i32_0 : i32, i32, i32
  }
}

</mosaic_0001>

<llo_original>
// kernel: encoder_forward.1
$region0: #{encoder_forward.1}
  #allocation0 [shape = 'u32[]', space=smem, size = 0x4, offset = 0x4, fixed_abs, tag = 'smem constant byte address 0x4 - core index']
  #allocation1 [shape = 'u32[144,128]{1,0:T(1,128)}', space=vmem, size = 0x12000, scoped, tag = 'internal scratch']
  #allocation2 [shape = 'f32[32,256]{1,0:T(8,128)}', space=vmem, size = 0x8000, scoped, tag = 'scratch operand']
  #allocation3 [shape = 'bf16[32,256]{1,0:T(16,128)(2,1)}', space=vmem, size = 0x4000, scoped, tag = 'scratch operand']
  %s0 = inlined_call_operand.vmem [shape: f32[2,16,256], index: 0, kind: input, shape index: {}]
  %s1 = inlined_call_operand.vmem [shape: bf16[2,256,768], index: 1, kind: input, shape index: {}]
  %s2 = inlined_call_operand.vmem [shape: f32[2,1,768], index: 2, kind: input, shape index: {}]
  %s3 = inlined_call_operand.vmem [shape: bf16[2,256,256], index: 3, kind: input, shape index: {}]
  %s4 = inlined_call_operand.vmem [shape: f32[2,1,256], index: 4, kind: input, shape index: {}]
  %s5 = inlined_call_operand.vmem [shape: f32[2,1,256], index: 5, kind: input, shape index: {}]
  %s6 = inlined_call_operand.vmem [shape: f32[2,1,256], index: 6, kind: input, shape index: {}]
  %s7 = inlined_call_operand.vmem [shape: bf16[2,256,512], index: 7, kind: input, shape index: {}]
  %s8 = inlined_call_operand.vmem [shape: f32[2,1,512], index: 8, kind: input, shape index: {}]
  %s9 = inlined_call_operand.vmem [shape: bf16[2,512,256], index: 9, kind: input, shape index: {}]
  %s10 = inlined_call_operand.vmem [shape: f32[2,1,256], index: 10, kind: input, shape index: {}]
  %s11 = inlined_call_operand.vmem [shape: f32[2,1,256], index: 11, kind: input, shape index: {}]
  %s12 = inlined_call_operand.vmem [shape: f32[2,1,256], index: 12, kind: input, shape index: {}]
  %s13 = inlined_call_operand.hbm [shape: f32[2,16,256], index: 13, kind: output, shape index: {}]
  %s14 = sld [smem:[#allocation0]]
  $region93: #{encoder_forward.1} parent=0
    _
  %s16 = ssub.s32 1, %s14
  %s17 = scalar_select 0, %s16, %s14
  $region1: #{encoder_forward.1} parent=0
    #allocation4 [shape = 'u8[32768]{0}', space=vmem, size = 0x8000, scoped, tag = 'output window, operand 0, single buffered']
    #allocation5 [shape = 's32[2]{0}', space=sflag, size = 0x8, scoped, tag = 'scoped memory for encoder_forward.1']
    %18 = vsyncpa [#allocation5], 0
    loop: start=0, step=1, limit=4
    $region2: #{encoder_forward.1} parent=1 // loop_pre_header
      _
    $region3: #{encoder_forward.1} parent=1 // loop_header
      %s20 = sphi 0, %s24
      %p21 = scmp.ge.s32.totalorder %s20, 4
      %s27 = sphi 0, %s39
      %s28 = sphi 0, %s35
      %s29 = sphi 0, %s27
      %s30 = sphi 0, %s28
      %s31 = sphi 0, %s29
      %s32 = sphi 0, %s30
      %s42 = sphi 0, %s44
      %s45 = sphi 0, %s42
      %s46 = sphi 0, %s45
      %s62 = sphi 0, %s46
      %s68 = sphi 0, %s70
      %s71 = sphi 0, %s68
      %s72 = sphi 0, %s71
      %s88 = sphi 0, %s72
      %s94 = sphi 0, %s96
      %s97 = sphi 0, %s94
      %s98 = sphi 0, %s97
      %s114 = sphi 0, %s98
      %s120 = sphi 0, %s122
      %s123 = sphi 0, %s120
      %s124 = sphi 0, %s123
      %s140 = sphi 0, %s124
      %s146 = sphi 0, %s148
      %s149 = sphi 0, %s146
      %s150 = sphi 0, %s149
      %s166 = sphi 0, %s150
      %s172 = sphi 0, %s174
      %s175 = sphi 0, %s172
      %s176 = sphi 0, %s175
      %s192 = sphi 0, %s176
      %s198 = sphi 0, %s200
      %s201 = sphi 0, %s198
      %s202 = sphi 0, %s201
      %s218 = sphi 0, %s202
      %s224 = sphi 0, %s226
      %s227 = sphi 0, %s224
      %s228 = sphi 0, %s227
      %s244 = sphi 0, %s228
      %s250 = sphi 0, %s252
      %s253 = sphi 0, %s250
      %s254 = sphi 0, %s253
      %s270 = sphi 0, %s254
      %s276 = sphi 0, %s278
      %s279 = sphi 0, %s276
      %s280 = sphi 0, %s279
      %s296 = sphi 0, %s280
      %s302 = sphi 0, %s304
      %s305 = sphi 0, %s302
      %s306 = sphi 0, %s305
      %s322 = sphi 0, %s306
      %s328 = sphi 0, %s330
      %s331 = sphi 0, %s328
      %s332 = sphi 0, %s331
      %s348 = sphi 0, %s332
      %s354 = sphi 0, %s356
      %s357 = sphi 0, %s354
      %s358 = sphi 0, %s357
      %s374 = sphi 0, %s358
      %s380 = sphi 0, %s382
      %s383 = sphi 0, %s380
      %s384 = sphi 0, %s383
      %s400 = sphi 0, %s384
    $region4: #{encoder_forward.1} parent=1 // loop_header_branch
      %23 = sbr.rel (%p21) target = $region8
    $region5: #{encoder_forward.1} parent=1 // loop_body
      %s25 = ssub.s32 %s20, 1
      %s26 = ssub.s32 %s20, 2
      %s33 = sadd.s32 1, %s28
      %p34 = scmp.ge.s32.totalorder %s33, 2
      %s35 = scalar_select %p34, 0, %s33
      %s36 = sadd.s32 1, %s27
      %s37 = scalar_select %p34, %s36, %s27
      %p38 = scmp.ge.s32.totalorder %s37, 1
      %s39 = scalar_select %p38, 0, %s37
      %s40 = ssub.s32 %s27, %s39
      %p41 = scmp.eq.s32.totalorder %s40, 0
      %s43 = sadd.s32 %s42, 1
      %s44 = scalar_select %p41, %s42, %s43
      %p47 = pneg %p41
      %p48 = scmp.eq.s32.totalorder %s20, 1
      %p49 = por %p47, %p48
      %p50 = scmp.ne.s32.totalorder %s42, %s45
      %p51 = scmp.eq.s32.totalorder %s20, 0
      %p52 = por %p50, %p51
      %p53 = scmp.ne.s32.totalorder %s42, %s45
      %p54 = scmp.eq.s32.totalorder %s25, 1
      %p55 = por %p53, %p54
      %p56 = scmp.ne.s32.totalorder %s45, %s46
      %p57 = scmp.eq.s32.totalorder %s25, 0
      %p58 = por %p56, %p57
      %p59 = scmp.ne.s32.totalorder %s45, %s46
      %p60 = scmp.eq.s32.totalorder %s26, 1
      %p61 = por %p59, %p60
      %p63 = scmp.ne.s32.totalorder %s46, %s62
      %p64 = scmp.eq.s32.totalorder %s26, 0
      %p65 = por %p63, %p64
      %s66 = ssub.s32 %s28, %s35
      %p67 = scmp.eq.s32.totalorder %s66, 0
      %s69 = sadd.s32 %s68, 1
      %s70 = scalar_select %p67, %s68, %s69
      %p73 = pneg %p67
      %p74 = scmp.eq.s32.totalorder %s20, 1
      %p75 = por %p73, %p74
      %p76 = scmp.ne.s32.totalorder %s68, %s71
      %p77 = scmp.eq.s32.totalorder %s20, 0
      %p78 = por %p76, %p77
      %p79 = scmp.ne.s32.totalorder %s68, %s71
      %p80 = scmp.eq.s32.totalorder %s25, 1
      %p81 = por %p79, %p80
      %p82 = scmp.ne.s32.totalorder %s71, %s72
      %p83 = scmp.eq.s32.totalorder %s25, 0
      %p84 = por %p82, %p83
      %p85 = scmp.ne.s32.totalorder %s71, %s72
      %p86 = scmp.eq.s32.totalorder %s26, 1
      %p87 = por %p85, %p86
      %p89 = scmp.ne.s32.totalorder %s72, %s88
      %p90 = scmp.eq.s32.totalorder %s26, 0
      %p91 = por %p89, %p90
      %s92 = ssub.s32 %s28, %s35
      %p93 = scmp.eq.s32.totalorder %s92, 0
      %s95 = sadd.s32 %s94, 1
      %s96 = scalar_select %p93, %s94, %s95
      %p99 = pneg %p93
      %p100 = scmp.eq.s32.totalorder %s20, 1
      %p101 = por %p99, %p100
      %p102 = scmp.ne.s32.totalorder %s94, %s97
      %p103 = scmp.eq.s32.totalorder %s20, 0
      %p104 = por %p102, %p103
      %p105 = scmp.ne.s32.totalorder %s94, %s97
      %p106 = scmp.eq.s32.totalorder %s25, 1
      %p107 = por %p105, %p106
      %p108 = scmp.ne.s32.totalorder %s97, %s98
      %p109 = scmp.eq.s32.totalorder %s25, 0
      %p110 = por %p108, %p109
      %p111 = scmp.ne.s32.totalorder %s97, %s98
      %p112 = scmp.eq.s32.totalorder %s26, 1
      %p113 = por %p111, %p112
      %p115 = scmp.ne.s32.totalorder %s98, %s114
      %p116 = scmp.eq.s32.totalorder %s26, 0
      %p117 = por %p115, %p116
      %s118 = ssub.s32 %s28, %s35
      %p119 = scmp.eq.s32.totalorder %s118, 0
      %s121 = sadd.s32 %s120, 1
      %s122 = scalar_select %p119, %s120, %s121
      %p125 = pneg %p119
      %p126 = scmp.eq.s32.totalorder %s20, 1
      %p127 = por %p125, %p126
      %p128 = scmp.ne.s32.totalorder %s120, %s123
      %p129 = scmp.eq.s32.totalorder %s20, 0
      %p130 = por %p128, %p129
      %p131 = scmp.ne.s32.totalorder %s120, %s123
      %p132 = scmp.eq.s32.totalorder %s25, 1
      %p133 = por %p131, %p132
      %p134 = scmp.ne.s32.totalorder %s123, %s124
      %p135 = scmp.eq.s32.totalorder %s25, 0
      %p136 = por %p134, %p135
      %p137 = scmp.ne.s32.totalorder %s123, %s124
      %p138 = scmp.eq.s32.totalorder %s26, 1
      %p139 = por %p137, %p138
      %p141 = scmp.ne.s32.totalorder %s124, %s140
      %p142 = scmp.eq.s32.totalorder %s26, 0
      %p143 = por %p141, %p142
      %s144 = ssub.s32 %s28, %s35
      %p145 = scmp.eq.s32.totalorder %s144, 0
      %s147 = sadd.s32 %s146, 1
      %s148 = scalar_select %p145, %s146, %s147
      %p151 = pneg %p145
      %p152 = scmp.eq.s32.totalorder %s20, 1
      %p153 = por %p151, %p152
      %p154 = scmp.ne.s32.totalorder %s146, %s149
      %p155 = scmp.eq.s32.totalorder %s20, 0
      %p156 = por %p154, %p155
      %p157 = scmp.ne.s32.totalorder %s146, %s149
      %p158 = scmp.eq.s32.totalorder %s25, 1
      %p159 = por %p157, %p158
      %p160 = scmp.ne.s32.totalorder %s149, %s150
      %p161 = scmp.eq.s32.totalorder %s25, 0
      %p162 = por %p160, %p161
      %p163 = scmp.ne.s32.totalorder %s149, %s150
      %p164 = scmp.eq.s32.totalorder %s26, 1
      %p165 = por %p163, %p164
      %p167 = scmp.ne.s32.totalorder %s150, %s166
      %p168 = scmp.eq.s32.totalorder %s26, 0
      %p169 = por %p167, %p168
      %s170 = ssub.s32 %s28, %s35
      %p171 = scmp.eq.s32.totalorder %s170, 0
      %s173 = sadd.s32 %s172, 1
      %s174 = scalar_select %p171, %s172, %s173
      %p177 = pneg %p171
      %p178 = scmp.eq.s32.totalorder %s20, 1
      %p179 = por %p177, %p178
      %p180 = scmp.ne.s32.totalorder %s172, %s175
      %p181 = scmp.eq.s32.totalorder %s20, 0
      %p182 = por %p180, %p181
      %p183 = scmp.ne.s32.totalorder %s172, %s175
      %p184 = scmp.eq.s32.totalorder %s25, 1
      %p185 = por %p183, %p184
      %p186 = scmp.ne.s32.totalorder %s175, %s176
      %p187 = scmp.eq.s32.totalorder %s25, 0
      %p188 = por %p186, %p187
      %p189 = scmp.ne.s32.totalorder %s175, %s176
      %p190 = scmp.eq.s32.totalorder %s26, 1
      %p191 = por %p189, %p190
      %p193 = scmp.ne.s32.totalorder %s176, %s192
      %p194 = scmp.eq.s32.totalorder %s26, 0
      %p195 = por %p193, %p194
      %s196 = ssub.s32 %s28, %s35
      %p197 = scmp.eq.s32.totalorder %s196, 0
      %s199 = sadd.s32 %s198, 1
      %s200 = scalar_select %p197, %s198, %s199
      %p203 = pneg %p197
      %p204 = scmp.eq.s32.totalorder %s20, 1
      %p205 = por %p203, %p204
      %p206 = scmp.ne.s32.totalorder %s198, %s201
      %p207 = scmp.eq.s32.totalorder %s20, 0
      %p208 = por %p206, %p207
      %p209 = scmp.ne.s32.totalorder %s198, %s201
      %p210 = scmp.eq.s32.totalorder %s25, 1
      %p211 = por %p209, %p210
      %p212 = scmp.ne.s32.totalorder %s201, %s202
      %p213 = scmp.eq.s32.totalorder %s25, 0
      %p214 = por %p212, %p213
      %p215 = scmp.ne.s32.totalorder %s201, %s202
      %p216 = scmp.eq.s32.totalorder %s26, 1
      %p217 = por %p215, %p216
      %p219 = scmp.ne.s32.totalorder %s202, %s218
      %p220 = scmp.eq.s32.totalorder %s26, 0
      %p221 = por %p219, %p220
      %s222 = ssub.s32 %s28, %s35
      %p223 = scmp.eq.s32.totalorder %s222, 0
      %s225 = sadd.s32 %s224, 1
      %s226 = scalar_select %p223, %s224, %s225
      %p229 = pneg %p223
      %p230 = scmp.eq.s32.totalorder %s20, 1
      %p231 = por %p229, %p230
      %p232 = scmp.ne.s32.totalorder %s224, %s227
      %p233 = scmp.eq.s32.totalorder %s20, 0
      %p234 = por %p232, %p233
      %p235 = scmp.ne.s32.totalorder %s224, %s227
      %p236 = scmp.eq.s32.totalorder %s25, 1
      %p237 = por %p235, %p236
      %p238 = scmp.ne.s32.totalorder %s227, %s228
      %p239 = scmp.eq.s32.totalorder %s25, 0
      %p240 = por %p238, %p239
      %p241 = scmp.ne.s32.totalorder %s227, %s228
      %p242 = scmp.eq.s32.totalorder %s26, 1
      %p243 = por %p241, %p242
      %p245 = scmp.ne.s32.totalorder %s228, %s244
      %p246 = scmp.eq.s32.totalorder %s26, 0
      %p247 = por %p245, %p246
      %s248 = ssub.s32 %s28, %s35
      %p249 = scmp.eq.s32.totalorder %s248, 0
      %s251 = sadd.s32 %s250, 1
      %s252 = scalar_select %p249, %s250, %s251
      %p255 = pneg %p249
      %p256 = scmp.eq.s32.totalorder %s20, 1
      %p257 = por %p255, %p256
      %p258 = scmp.ne.s32.totalorder %s250, %s253
      %p259 = scmp.eq.s32.totalorder %s20, 0
      %p260 = por %p258, %p259
      %p261 = scmp.ne.s32.totalorder %s250, %s253
      %p262 = scmp.eq.s32.totalorder %s25, 1
      %p263 = por %p261, %p262
      %p264 = scmp.ne.s32.totalorder %s253, %s254
      %p265 = scmp.eq.s32.totalorder %s25, 0
      %p266 = por %p264, %p265
      %p267 = scmp.ne.s32.totalorder %s253, %s254
      %p268 = scmp.eq.s32.totalorder %s26, 1
      %p269 = por %p267, %p268
      %p271 = scmp.ne.s32.totalorder %s254, %s270
      %p272 = scmp.eq.s32.totalorder %s26, 0
      %p273 = por %p271, %p272
      %s274 = ssub.s32 %s28, %s35
      %p275 = scmp.eq.s32.totalorder %s274, 0
      %s277 = sadd.s32 %s276, 1
      %s278 = scalar_select %p275, %s276, %s277
      %p281 = pneg %p275
      %p282 = scmp.eq.s32.totalorder %s20, 1
      %p283 = por %p281, %p282
      %p284 = scmp.ne.s32.totalorder %s276, %s279
      %p285 = scmp.eq.s32.totalorder %s20, 0
      %p286 = por %p284, %p285
      %p287 = scmp.ne.s32.totalorder %s276, %s279
      %p288 = scmp.eq.s32.totalorder %s25, 1
      %p289 = por %p287, %p288
      %p290 = scmp.ne.s32.totalorder %s279, %s280
      %p291 = scmp.eq.s32.totalorder %s25, 0
      %p292 = por %p290, %p291
      %p293 = scmp.ne.s32.totalorder %s279, %s280
      %p294 = scmp.eq.s32.totalorder %s26, 1
      %p295 = por %p293, %p294
      %p297 = scmp.ne.s32.totalorder %s280, %s296
      %p298 = scmp.eq.s32.totalorder %s26, 0
      %p299 = por %p297, %p298
      %s300 = ssub.s32 %s28, %s35
      %p301 = scmp.eq.s32.totalorder %s300, 0
      %s303 = sadd.s32 %s302, 1
      %s304 = scalar_select %p301, %s302, %s303
      %p307 = pneg %p301
      %p308 = scmp.eq.s32.totalorder %s20, 1
      %p309 = por %p307, %p308
      %p310 = scmp.ne.s32.totalorder %s302, %s305
      %p311 = scmp.eq.s32.totalorder %s20, 0
      %p312 = por %p310, %p311
      %p313 = scmp.ne.s32.totalorder %s302, %s305
      %p314 = scmp.eq.s32.totalorder %s25, 1
      %p315 = por %p313, %p314
      %p316 = scmp.ne.s32.totalorder %s305, %s306
      %p317 = scmp.eq.s32.totalorder %s25, 0
      %p318 = por %p316, %p317
      %p319 = scmp.ne.s32.totalorder %s305, %s306
      %p320 = scmp.eq.s32.totalorder %s26, 1
      %p321 = por %p319, %p320
      %p323 = scmp.ne.s32.totalorder %s306, %s322
      %p324 = scmp.eq.s32.totalorder %s26, 0
      %p325 = por %p323, %p324
      %s326 = ssub.s32 %s28, %s35
      %p327 = scmp.eq.s32.totalorder %s326, 0
      %s329 = sadd.s32 %s328, 1
      %s330 = scalar_select %p327, %s328, %s329
      %p333 = pneg %p327
      %p334 = scmp.eq.s32.totalorder %s20, 1
      %p335 = por %p333, %p334
      %p336 = scmp.ne.s32.totalorder %s328, %s331
      %p337 = scmp.eq.s32.totalorder %s20, 0
      %p338 = por %p336, %p337
      %p339 = scmp.ne.s32.totalorder %s328, %s331
      %p340 = scmp.eq.s32.totalorder %s25, 1
      %p341 = por %p339, %p340
      %p342 = scmp.ne.s32.totalorder %s331, %s332
      %p343 = scmp.eq.s32.totalorder %s25, 0
      %p344 = por %p342, %p343
      %p345 = scmp.ne.s32.totalorder %s331, %s332
      %p346 = scmp.eq.s32.totalorder %s26, 1
      %p347 = por %p345, %p346
      %p349 = scmp.ne.s32.totalorder %s332, %s348
      %p350 = scmp.eq.s32.totalorder %s26, 0
      %p351 = por %p349, %p350
      %s352 = ssub.s32 %s28, %s35
      %p353 = scmp.eq.s32.totalorder %s352, 0
      %s355 = sadd.s32 %s354, 1
      %s356 = scalar_select %p353, %s354, %s355
      %p359 = pneg %p353
      %p360 = scmp.eq.s32.totalorder %s20, 1
      %p361 = por %p359, %p360
      %p362 = scmp.ne.s32.totalorder %s354, %s357
      %p363 = scmp.eq.s32.totalorder %s20, 0
      %p364 = por %p362, %p363
      %p365 = scmp.ne.s32.totalorder %s354, %s357
      %p366 = scmp.eq.s32.totalorder %s25, 1
      %p367 = por %p365, %p366
      %p368 = scmp.ne.s32.totalorder %s357, %s358
      %p369 = scmp.eq.s32.totalorder %s25, 0
      %p370 = por %p368, %p369
      %p371 = scmp.ne.s32.totalorder %s357, %s358
      %p372 = scmp.eq.s32.totalorder %s26, 1
      %p373 = por %p371, %p372
      %p375 = scmp.ne.s32.totalorder %s358, %s374
      %p376 = scmp.eq.s32.totalorder %s26, 0
      %p377 = por %p375, %p376
      %s378 = ssub.s32 %s27, %s39
      %p379 = scmp.eq.s32.totalorder %s378, 0
      %s381 = sadd.s32 %s380, 1
      %s382 = scalar_select %p379, %s380, %s381
      %p385 = pneg %p379
      %p386 = scmp.eq.s32.totalorder %s20, 1
      %p387 = por %p385, %p386
      %p388 = scmp.ne.s32.totalorder %s380, %s383
      %p389 = scmp.eq.s32.totalorder %s20, 0
      %p390 = por %p388, %p389
      %p391 = scmp.ne.s32.totalorder %s380, %s383
      %p392 = scmp.eq.s32.totalorder %s25, 1
      %p393 = por %p391, %p392
      %p394 = scmp.ne.s32.totalorder %s383, %s384
      %p395 = scmp.eq.s32.totalorder %s25, 0
      %p396 = por %p394, %p395
      %p397 = scmp.ne.s32.totalorder %s383, %s384
      %p398 = scmp.eq.s32.totalorder %s26, 1
      %p399 = por %p397, %p398
      %p401 = scmp.ne.s32.totalorder %s384, %s400
      %p402 = scmp.eq.s32.totalorder %s26, 0
      %p403 = por %p401, %p402
      %p404 = scmp.le.s32.totalorder 1, %s20
      %p405 = scmp.lt.s32.totalorder %s20, 3
      %p406 = pnand %p404, %p405
      %p407 = pneg %p406
      // Predicated region
      $region9: #{encoder_forward.1} parent=5 // pred_check
        _
      $region10: #{encoder_forward.1} parent=5 // pred_check_branch
        %409 = sbr.rel (%p406) target = $region12
      $region11: #{encoder_forward.1} parent=5 // pred_region
        %s410 = ssub.s32 %s20, 1
        // Predicated region
        $region13: #{encoder_forward.1} parent=11 // pred_check
          %p411 = pneg %p58
        $region14: #{encoder_forward.1} parent=11 // pred_check_branch
          %413 = sbr.rel (%p411) target = $region16
        $region15: #{encoder_forward.1} parent=11 // pred_region
          %s414 = smul.u32 2, %s29
          %p415 = scmp.lt.s32.totalorder %s414, 1
          %s416 = scalar_select %p415, %s414, 1
          %s417 = smul.addr %s416, 4
          %s418 = smul.addr %s417, 8
          %s419 = scalar_lea.vmem %s0, %s418
          %s420 = smul.u32 2, %s29
        $region16: #{encoder_forward.1} parent=11 // pred_fallthru
          _
      $region12: #{encoder_forward.1} parent=5 // pred_fallthru
        _
      %p421 = scmp.lt.s32.totalorder %s20, 2
      // Predicated region
      $region17: #{encoder_forward.1} parent=5 // pred_check
        %p422 = pneg %p421
      $region18: #{encoder_forward.1} parent=5 // pred_check_branch
        %424 = sbr.rel (%p422) target = $region20
      $region19: #{encoder_forward.1} parent=5 // pred_region
        // Predicated region
        $region21: #{encoder_forward.1} parent=19 // pred_check
          %p425 = pneg %p78
        $region22: #{encoder_forward.1} parent=19 // pred_check_branch
          %427 = sbr.rel (%p425) target = $region24
        $region23: #{encoder_forward.1} parent=19 // pred_region
          %p428 = scmp.lt.s32.totalorder %s28, 1
          %s429 = scalar_select %p428, %s28, 1
          %s430 = smul.addr %s429, 192
          %s431 = smul.addr %s430, 4
          %s432 = scalar_lea.vmem %s1, %s431
        $region24: #{encoder_forward.1} parent=19 // pred_fallthru
          _
        // Predicated region
        $region25: #{encoder_forward.1} parent=19 // pred_check
          %p433 = pneg %p104
        $region26: #{encoder_forward.1} parent=19 // pred_check_branch
          %435 = sbr.rel (%p433) target = $region28
        $region27: #{encoder_forward.1} parent=19 // pred_region
          %p436 = scmp.lt.s32.totalorder %s28, 1
          %s437 = scalar_select %p436, %s28, 1
          %s438 = smul.addr %s437, 6
          %s439 = scalar_lea.vmem %s2, %s438
        $region28: #{encoder_forward.1} parent=19 // pred_fallthru
          _
        // Predicated region
        $region29: #{encoder_forward.1} parent=19 // pred_check
          %p440 = pneg %p130
        $region30: #{encoder_forward.1} parent=19 // pred_check_branch
          %442 = sbr.rel (%p440) target = $region32
        $region31: #{encoder_forward.1} parent=19 // pred_region
          %p443 = scmp.lt.s32.totalorder %s28, 1
          %s444 = scalar_select %p443, %s28, 1
          %s445 = smul.addr %s444, 64
          %s446 = smul.addr %s445, 4
          %s447 = scalar_lea.vmem %s3, %s446
        $region32: #{encoder_forward.1} parent=19 // pred_fallthru
          _
        // Predicated region
        $region33: #{encoder_forward.1} parent=19 // pred_check
          %p448 = pneg %p156
        $region34: #{encoder_forward.1} parent=19 // pred_check_branch
          %450 = sbr.rel (%p448) target = $region36
        $region35: #{encoder_forward.1} parent=19 // pred_region
          %p451 = scmp.lt.s32.totalorder %s28, 1
          %s452 = scalar_select %p451, %s28, 1
          %s453 = smul.addr %s452, 2
          %s454 = scalar_lea.vmem %s4, %s453
        $region36: #{encoder_forward.1} parent=19 // pred_fallthru
          _
        // Predicated region
        $region37: #{encoder_forward.1} parent=19 // pred_check
          %p455 = pneg %p182
        $region38: #{encoder_forward.1} parent=19 // pred_check_branch
          %457 = sbr.rel (%p455) target = $region40
        $region39: #{encoder_forward.1} parent=19 // pred_region
          %p458 = scmp.lt.s32.totalorder %s28, 1
          %s459 = scalar_select %p458, %s28, 1
          %s460 = smul.addr %s459, 2
          %s461 = scalar_lea.vmem %s5, %s460
        $region40: #{encoder_forward.1} parent=19 // pred_fallthru
          _
        // Predicated region
        $region41: #{encoder_forward.1} parent=19 // pred_check
          %p462 = pneg %p208
        $region42: #{encoder_forward.1} parent=19 // pred_check_branch
          %464 = sbr.rel (%p462) target = $region44
        $region43: #{encoder_forward.1} parent=19 // pred_region
          %p465 = scmp.lt.s32.totalorder %s28, 1
          %s466 = scalar_select %p465, %s28, 1
          %s467 = smul.addr %s466, 2
          %s468 = scalar_lea.vmem %s6, %s467
        $region44: #{encoder_forward.1} parent=19 // pred_fallthru
          _
        // Predicated region
        $region45: #{encoder_forward.1} parent=19 // pred_check
          %p469 = pneg %p234
        $region46: #{encoder_forward.1} parent=19 // pred_check_branch
          %471 = sbr.rel (%p469) target = $region48
        $region47: #{encoder_forward.1} parent=19 // pred_region
          %p472 = scmp.lt.s32.totalorder %s28, 1
          %s473 = scalar_select %p472, %s28, 1
          %s474 = smul.addr %s473, 128
          %s475 = smul.addr %s474, 4
          %s476 = scalar_lea.vmem %s7, %s475
        $region48: #{encoder_forward.1} parent=19 // pred_fallthru
          _
        // Predicated region
        $region49: #{encoder_forward.1} parent=19 // pred_check
          %p477 = pneg %p260
        $region50: #{encoder_forward.1} parent=19 // pred_check_branch
          %479 = sbr.rel (%p477) target = $region52
        $region51: #{encoder_forward.1} parent=19 // pred_region
          %p480 = scmp.lt.s32.totalorder %s28, 1
          %s481 = scalar_select %p480, %s28, 1
          %s482 = smul.addr %s481, 4
          %s483 = scalar_lea.vmem %s8, %s482
        $region52: #{encoder_forward.1} parent=19 // pred_fallthru
          _
        // Predicated region
        $region53: #{encoder_forward.1} parent=19 // pred_check
          %p484 = pneg %p286
        $region54: #{encoder_forward.1} parent=19 // pred_check_branch
          %486 = sbr.rel (%p484) target = $region56
        $region55: #{encoder_forward.1} parent=19 // pred_region
          %p487 = scmp.lt.s32.totalorder %s28, 1
          %s488 = scalar_select %p487, %s28, 1
          %s489 = smul.addr %s488, 128
          %s490 = smul.addr %s489, 4
          %s491 = scalar_lea.vmem %s9, %s490
        $region56: #{encoder_forward.1} parent=19 // pred_fallthru
          _
        // Predicated region
        $region57: #{encoder_forward.1} parent=19 // pred_check
          %p492 = pneg %p312
        $region58: #{encoder_forward.1} parent=19 // pred_check_branch
          %494 = sbr.rel (%p492) target = $region60
        $region59: #{encoder_forward.1} parent=19 // pred_region
          %p495 = scmp.lt.s32.totalorder %s28, 1
          %s496 = scalar_select %p495, %s28, 1
          %s497 = smul.addr %s496, 2
          %s498 = scalar_lea.vmem %s10, %s497
        $region60: #{encoder_forward.1} parent=19 // pred_fallthru
          _
        // Predicated region
        $region61: #{encoder_forward.1} parent=19 // pred_check
          %p499 = pneg %p338
        $region62: #{encoder_forward.1} parent=19 // pred_check_branch
          %501 = sbr.rel (%p499) target = $region64
        $region63: #{encoder_forward.1} parent=19 // pred_region
          %p502 = scmp.lt.s32.totalorder %s28, 1
          %s503 = scalar_select %p502, %s28, 1
          %s504 = smul.addr %s503, 2
          %s505 = scalar_lea.vmem %s11, %s504
        $region64: #{encoder_forward.1} parent=19 // pred_fallthru
          _
        // Predicated region
        $region65: #{encoder_forward.1} parent=19 // pred_check
          %p506 = pneg %p364
        $region66: #{encoder_forward.1} parent=19 // pred_check_branch
          %508 = sbr.rel (%p506) target = $region68
        $region67: #{encoder_forward.1} parent=19 // pred_region
          %p509 = scmp.lt.s32.totalorder %s28, 1
          %s510 = scalar_select %p509, %s28, 1
          %s511 = smul.addr %s510, 2
          %s512 = scalar_lea.vmem %s12, %s511
        $region68: #{encoder_forward.1} parent=19 // pred_fallthru
          _
      $region20: #{encoder_forward.1} parent=5 // pred_fallthru
        _
      %p513 = scmp.le.s32.totalorder 1, %s20
      %p514 = scmp.lt.s32.totalorder %s20, 3
      %p515 = pnand %p513, %p514
      %p516 = pneg %p515
      // Predicated region
      $region69: #{encoder_forward.1} parent=5 // pred_check
        _
      $region70: #{encoder_forward.1} parent=5 // pred_check_branch
        %518 = sbr.rel (%p515) target = $region72
      $region71: #{encoder_forward.1} parent=5 // pred_region
        %s519 = ssub.s32 %s20, 1
        %s520 = smul.u32 2, %s29
        %p521 = scmp.lt.s32.totalorder %s520, 1
        %s522 = scalar_select %p521, %s520, 1
        %s523 = smul.addr %s522, 4
        %s524 = smul.addr %s523, 8
        %s525 = scalar_lea.vmem %s0, %s524
        %p526 = pneg %p58
        %p527 = pneg %p55
        %p528 = scmp.lt.s32.totalorder %s30, 1
        %s529 = scalar_select %p528, %s30, 1
        %s530 = smul.addr %s529, 192
        %s531 = smul.addr %s530, 4
        %s532 = scalar_lea.vmem %s1, %s531
        %p533 = pneg %p84
        %p534 = pneg %p81
        %p535 = scmp.lt.s32.totalorder %s30, 1
        %s536 = scalar_select %p535, %s30, 1
        %s537 = smul.addr %s536, 6
        %s538 = scalar_lea.vmem %s2, %s537
        %p539 = pneg %p110
        %p540 = pneg %p107
        %p541 = scmp.lt.s32.totalorder %s30, 1
        %s542 = scalar_select %p541, %s30, 1
        %s543 = smul.addr %s542, 64
        %s544 = smul.addr %s543, 4
        %s545 = scalar_lea.vmem %s3, %s544
        %p546 = pneg %p136
        %p547 = pneg %p133
        %p548 = scmp.lt.s32.totalorder %s30, 1
        %s549 = scalar_select %p548, %s30, 1
        %s550 = smul.addr %s549, 2
        %s551 = scalar_lea.vmem %s4, %s550
        %p552 = pneg %p162
        %p553 = pneg %p159
        %p554 = scmp.lt.s32.totalorder %s30, 1
        %s555 = scalar_select %p554, %s30, 1
        %s556 = smul.addr %s555, 2
        %s557 = scalar_lea.vmem %s5, %s556
        %p558 = pneg %p188
        %p559 = pneg %p185
        %p560 = scmp.lt.s32.totalorder %s30, 1
        %s561 = scalar_select %p560, %s30, 1
        %s562 = smul.addr %s561, 2
        %s563 = scalar_lea.vmem %s6, %s562
        %p564 = pneg %p214
        %p565 = pneg %p211
        %p566 = scmp.lt.s32.totalorder %s30, 1
        %s567 = scalar_select %p566, %s30, 1
        %s568 = smul.addr %s567, 128
        %s569 = smul.addr %s568, 4
        %s570 = scalar_lea.vmem %s7, %s569
        %p571 = pneg %p240
        %p572 = pneg %p237
        %p573 = scmp.lt.s32.totalorder %s30, 1
        %s574 = scalar_select %p573, %s30, 1
        %s575 = smul.addr %s574, 4
        %s576 = scalar_lea.vmem %s8, %s575
        %p577 = pneg %p266
        %p578 = pneg %p263
        %p579 = scmp.lt.s32.totalorder %s30, 1
        %s580 = scalar_select %p579, %s30, 1
        %s581 = smul.addr %s580, 128
        %s582 = smul.addr %s581, 4
        %s583 = scalar_lea.vmem %s9, %s582
        %p584 = pneg %p292
        %p585 = pneg %p289
        %p586 = scmp.lt.s32.totalorder %s30, 1
        %s587 = scalar_select %p586, %s30, 1
        %s588 = smul.addr %s587, 2
        %s589 = scalar_lea.vmem %s10, %s588
        %p590 = pneg %p318
        %p591 = pneg %p315
        %p592 = scmp.lt.s32.totalorder %s30, 1
        %s593 = scalar_select %p592, %s30, 1
        %s594 = smul.addr %s593, 2
        %s595 = scalar_lea.vmem %s11, %s594
        %p596 = pneg %p344
        %p597 = pneg %p341
        %p598 = scmp.lt.s32.totalorder %s30, 1
        %s599 = scalar_select %p598, %s30, 1
        %s600 = smul.addr %s599, 2
        %s601 = scalar_lea.vmem %s12, %s600
        %p602 = pneg %p370
        %p603 = pneg %p367
        %p604 = pneg %p396
        %p605 = pneg %p393
        %s606 = smul.u32 2, %s29
        %p607 = scmp.lt.s32.totalorder %s606, 1
        %s608 = scalar_select %p607, %s606, 1
        %s609 = smul.addr %s608, 4
        %s610 = smul.addr %s609, 8
        %s611 = scalar_lea.vmem %s0, %s610
        %s612 = smul.u32 2, %s29
        %p613 = scmp.lt.s32.totalorder %s30, 1
        %s614 = scalar_select %p613, %s30, 1
        %s615 = smul.addr %s614, 192
        %s616 = smul.addr %s615, 4
        %s617 = scalar_lea.vmem %s1, %s616
        %p618 = scmp.lt.s32.totalorder %s30, 1
        %s619 = scalar_select %p618, %s30, 1
        %s620 = smul.addr %s619, 6
        %s621 = scalar_lea.vmem %s2, %s620
        %p622 = scmp.lt.s32.totalorder %s30, 1
        %s623 = scalar_select %p622, %s30, 1
        %s624 = smul.addr %s623, 64
        %s625 = smul.addr %s624, 4
        %s626 = scalar_lea.vmem %s3, %s625
        %p627 = scmp.lt.s32.totalorder %s30, 1
        %s628 = scalar_select %p627, %s30, 1
        %s629 = smul.addr %s628, 2
        %s630 = scalar_lea.vmem %s4, %s629
        %p631 = scmp.lt.s32.totalorder %s30, 1
        %s632 = scalar_select %p631, %s30, 1
        %s633 = smul.addr %s632, 2
        %s634 = scalar_lea.vmem %s5, %s633
        %p635 = scmp.lt.s32.totalorder %s30, 1
        %s636 = scalar_select %p635, %s30, 1
        %s637 = smul.addr %s636, 2
        %s638 = scalar_lea.vmem %s6, %s637
        %p639 = scmp.lt.s32.totalorder %s30, 1
        %s640 = scalar_select %p639, %s30, 1
        %s641 = smul.addr %s640, 128
        %s642 = smul.addr %s641, 4
        %s643 = scalar_lea.vmem %s7, %s642
        %p644 = scmp.lt.s32.totalorder %s30, 1
        %s645 = scalar_select %p644, %s30, 1
        %s646 = smul.addr %s645, 4
        %s647 = scalar_lea.vmem %s8, %s646
        %p648 = scmp.lt.s32.totalorder %s30, 1
        %s649 = scalar_select %p648, %s30, 1
        %s650 = smul.addr %s649, 128
        %s651 = smul.addr %s650, 4
        %s652 = scalar_lea.vmem %s9, %s651
        %p653 = scmp.lt.s32.totalorder %s30, 1
        %s654 = scalar_select %p653, %s30, 1
        %s655 = smul.addr %s654, 2
        %s656 = scalar_lea.vmem %s10, %s655
        %p657 = scmp.lt.s32.totalorder %s30, 1
        %s658 = scalar_select %p657, %s30, 1
        %s659 = smul.addr %s658, 2
        %s660 = scalar_lea.vmem %s11, %s659
        %p661 = scmp.lt.s32.totalorder %s30, 1
        %s662 = scalar_select %p661, %s30, 1
        %s663 = smul.addr %s662, 2
        %s664 = scalar_lea.vmem %s12, %s663
        %s665 = smul.u32 2, %s29
        %p667 = scmp.eq.s32.totalorder %s30, 0
        // Predicated region
        $region73: #{encoder_forward.1} parent=71 // pred_check
          %p668 = pneg %p667
        $region74: #{encoder_forward.1} parent=71 // pred_check_branch
          %670 = sbr.rel (%p668) target = $region76
        $region75: #{encoder_forward.1} parent=71 // pred_region
          %v671 = vld [vmem:[%s611] sm:$0xff]
          %v672 = vld [vmem:[%s611 + $0x8] sm:$0xff]
          %v673 = vld [vmem:[%s611 + $0x10] sm:$0xff]
          %v674 = vld [vmem:[%s611 + $0x18] sm:$0xff]
          %v675 = vld [vmem:[%s611 + $0x20] sm:$0xff]
          %v676 = vld [vmem:[%s611 + $0x28] sm:$0xff]
          %v677 = vld [vmem:[%s611 + $0x30] sm:$0xff]
          %v678 = vld [vmem:[%s611 + $0x38] sm:$0xff]
          %679 = vst [vmem:[#allocation2] sm:$0xff] %v671
          %680 = vst [vmem:[#allocation2 + $0x8] sm:$0xff] %v672
          %681 = vst [vmem:[#allocation2 + $0x10] sm:$0xff] %v673
          %682 = vst [vmem:[#allocation2 + $0x18] sm:$0xff] %v674
          %683 = vst [vmem:[#allocation2 + $0x20] sm:$0xff] %v675
          %684 = vst [vmem:[#allocation2 + $0x28] sm:$0xff] %v676
          %685 = vst [vmem:[#allocation2 + $0x30] sm:$0xff] %v677
          %686 = vst [vmem:[#allocation2 + $0x38] sm:$0xff] %v678
        $region76: #{encoder_forward.1} parent=71 // pred_fallthru
          _
        %v687 = vld [vmem:[#allocation2] sm:$0xff]
        %v688 = vld [vmem:[#allocation2 + $0x8] sm:$0xff]
        %v689 = vld [vmem:[#allocation2 + $0x10] sm:$0xff]
        %v690 = vld [vmem:[#allocation2 + $0x18] sm:$0xff]
        %v691 = vld [vmem:[#allocation2 + $0x20] sm:$0xff]
        %v692 = vld [vmem:[#allocation2 + $0x28] sm:$0xff]
        %v693 = vld [vmem:[#allocation2 + $0x30] sm:$0xff]
        %v694 = vld [vmem:[#allocation2 + $0x38] sm:$0xff]
        %v695 = vpack.c.bf16 %v689, %v687
        %v696 = vpack.c.bf16 %v690, %v688
        %v697 = vpack.c.bf16 %v693, %v691
        %v698 = vpack.c.bf16 %v694, %v692
        %v699 = vld [vmem:[%s617] sm:$0xff]
        %v700 = vld [vmem:[%s617 + $0x8] sm:$0xff]
        %v701 = vld [vmem:[%s617 + $0x10] sm:$0xff]
        %v702 = vld [vmem:[%s617 + $0x18] sm:$0xff]
        %v703 = vld [vmem:[%s617 + $0x20] sm:$0xff]
        %v704 = vld [vmem:[%s617 + $0x28] sm:$0xff]
        %v705 = vld [vmem:[%s617 + $0x30] sm:$0xff]
        %v706 = vld [vmem:[%s617 + $0x38] sm:$0xff]
        %v707 = vld [vmem:[%s617 + $0x40] sm:$0xff]
        %v708 = vld [vmem:[%s617 + $0x48] sm:$0xff]
        %v709 = vld [vmem:[%s617 + $0x50] sm:$0xff]
        %v710 = vld [vmem:[%s617 + $0x58] sm:$0xff]
        %v711 = vld [vmem:[%s617 + $0x60] sm:$0xff]
        %v712 = vld [vmem:[%s617 + $0x68] sm:$0xff]
        %v713 = vld [vmem:[%s617 + $0x70] sm:$0xff]
        %v714 = vld [vmem:[%s617 + $0x78] sm:$0xff]
        %v715 = vld [vmem:[%s617 + $0x80] sm:$0xff]
        %v716 = vld [vmem:[%s617 + $0x88] sm:$0xff]
        %v717 = vld [vmem:[%s617 + $0x90] sm:$0xff]
        %v718 = vld [vmem:[%s617 + $0x98] sm:$0xff]
        %v719 = vld [vmem:[%s617 + $0xa0] sm:$0xff]
        %v720 = vld [vmem:[%s617 + $0xa8] sm:$0xff]
        %v721 = vld [vmem:[%s617 + $0xb0] sm:$0xff]
        %v722 = vld [vmem:[%s617 + $0xb8] sm:$0xff]
        %v723 = vld [vmem:[%s617 + $0xc0] sm:$0xff]
        %v724 = vld [vmem:[%s617 + $0xc8] sm:$0xff]
        %v725 = vld [vmem:[%s617 + $0xd0] sm:$0xff]
        %v726 = vld [vmem:[%s617 + $0xd8] sm:$0xff]
        %v727 = vld [vmem:[%s617 + $0xe0] sm:$0xff]
        %v728 = vld [vmem:[%s617 + $0xe8] sm:$0xff]
        %v729 = vld [vmem:[%s617 + $0xf0] sm:$0xff]
        %v730 = vld [vmem:[%s617 + $0xf8] sm:$0xff]
        %v731 = vld [vmem:[%s617 + $0x100] sm:$0xff]
        %v732 = vld [vmem:[%s617 + $0x108] sm:$0xff]
        %v733 = vld [vmem:[%s617 + $0x110] sm:$0xff]
        %v734 = vld [vmem:[%s617 + $0x118] sm:$0xff]
        %v735 = vld [vmem:[%s617 + $0x120] sm:$0xff]
        %v736 = vld [vmem:[%s617 + $0x128] sm:$0xff]
        %v737 = vld [vmem:[%s617 + $0x130] sm:$0xff]
        %v738 = vld [vmem:[%s617 + $0x138] sm:$0xff]
        %v739 = vld [vmem:[%s617 + $0x140] sm:$0xff]
        %v740 = vld [vmem:[%s617 + $0x148] sm:$0xff]
        %v741 = vld [vmem:[%s617 + $0x150] sm:$0xff]
        %v742 = vld [vmem:[%s617 + $0x158] sm:$0xff]
        %v743 = vld [vmem:[%s617 + $0x160] sm:$0xff]
        %v744 = vld [vmem:[%s617 + $0x168] sm:$0xff]
        %v745 = vld [vmem:[%s617 + $0x170] sm:$0xff]
        %v746 = vld [vmem:[%s617 + $0x178] sm:$0xff]
        %v747 = vld [vmem:[%s617 + $0x180] sm:$0xff]
        %v748 = vld [vmem:[%s617 + $0x188] sm:$0xff]
        %v749 = vld [vmem:[%s617 + $0x190] sm:$0xff]
        %v750 = vld [vmem:[%s617 + $0x198] sm:$0xff]
        %v751 = vld [vmem:[%s617 + $0x1a0] sm:$0xff]
        %v752 = vld [vmem:[%s617 + $0x1a8] sm:$0xff]
        %v753 = vld [vmem:[%s617 + $0x1b0] sm:$0xff]
        %v754 = vld [vmem:[%s617 + $0x1b8] sm:$0xff]
        %v755 = vld [vmem:[%s617 + $0x1c0] sm:$0xff]
        %v756 = vld [vmem:[%s617 + $0x1c8] sm:$0xff]
        %v757 = vld [vmem:[%s617 + $0x1d0] sm:$0xff]
        %v758 = vld [vmem:[%s617 + $0x1d8] sm:$0xff]
        %v759 = vld [vmem:[%s617 + $0x1e0] sm:$0xff]
        %v760 = vld [vmem:[%s617 + $0x1e8] sm:$0xff]
        %v761 = vld [vmem:[%s617 + $0x1f0] sm:$0xff]
        %v762 = vld [vmem:[%s617 + $0x1f8] sm:$0xff]
        %v763 = vld [vmem:[%s617 + $0x200] sm:$0xff]
        %v764 = vld [vmem:[%s617 + $0x208] sm:$0xff]
        %v765 = vld [vmem:[%s617 + $0x210] sm:$0xff]
        %v766 = vld [vmem:[%s617 + $0x218] sm:$0xff]
        %v767 = vld [vmem:[%s617 + $0x220] sm:$0xff]
        %v768 = vld [vmem:[%s617 + $0x228] sm:$0xff]
        %v769 = vld [vmem:[%s617 + $0x230] sm:$0xff]
        %v770 = vld [vmem:[%s617 + $0x238] sm:$0xff]
        %v771 = vld [vmem:[%s617 + $0x240] sm:$0xff]
        %v772 = vld [vmem:[%s617 + $0x248] sm:$0xff]
        %v773 = vld [vmem:[%s617 + $0x250] sm:$0xff]
        %v774 = vld [vmem:[%s617 + $0x258] sm:$0xff]
        %v775 = vld [vmem:[%s617 + $0x260] sm:$0xff]
        %v776 = vld [vmem:[%s617 + $0x268] sm:$0xff]
        %v777 = vld [vmem:[%s617 + $0x270] sm:$0xff]
        %v778 = vld [vmem:[%s617 + $0x278] sm:$0xff]
        %v779 = vld [vmem:[%s617 + $0x280] sm:$0xff]
        %v780 = vld [vmem:[%s617 + $0x288] sm:$0xff]
        %v781 = vld [vmem:[%s617 + $0x290] sm:$0xff]
        %v782 = vld [vmem:[%s617 + $0x298] sm:$0xff]
        %v783 = vld [vmem:[%s617 + $0x2a0] sm:$0xff]
        %v784 = vld [vmem:[%s617 + $0x2a8] sm:$0xff]
        %v785 = vld [vmem:[%s617 + $0x2b0] sm:$0xff]
        %v786 = vld [vmem:[%s617 + $0x2b8] sm:$0xff]
        %v787 = vld [vmem:[%s617 + $0x2c0] sm:$0xff]
        %v788 = vld [vmem:[%s617 + $0x2c8] sm:$0xff]
        %v789 = vld [vmem:[%s617 + $0x2d0] sm:$0xff]
        %v790 = vld [vmem:[%s617 + $0x2d8] sm:$0xff]
        %v791 = vld [vmem:[%s617 + $0x2e0] sm:$0xff]
        %v792 = vld [vmem:[%s617 + $0x2e8] sm:$0xff]
        %v793 = vld [vmem:[%s617 + $0x2f0] sm:$0xff]
        %v794 = vld [vmem:[%s617 + $0x2f8] sm:$0xff]
        %v795 = vld [vmem:[%s621] sm:$0x3f]
        %v797 = vlaneseq
        %v798 = vshrl.u32 %v797, 7
        %v799 = vsub.s32 0, %v798
        %v800 = vrot.slane %v795, %v799
        %v801 = vlaneseq
        %v802 = vshrl.u32 %v801, 7
        %v803 = vsub.s32 1, %v802
        %v804 = vrot.slane %v795, %v803
        %v805 = vlaneseq
        %v806 = vshrl.u32 %v805, 7
        %v807 = vsub.s32 2, %v806
        %v808 = vrot.slane %v795, %v807
        %v809 = vlaneseq
        %v810 = vshrl.u32 %v809, 7
        %v811 = vsub.s32 3, %v810
        %v812 = vrot.slane %v795, %v811
        %v813 = vlaneseq
        %v814 = vshrl.u32 %v813, 7
        %v815 = vsub.s32 4, %v814
        %v816 = vrot.slane %v795, %v815
        %v817 = vlaneseq
        %v818 = vshrl.u32 %v817, 7
        %v819 = vsub.s32 5, %v818
        %v820 = vrot.slane %v795, %v819
        %v923 = vunpack.c.l.b16 %v699
        %v924 = vunpack.c.h.b16 %v699
        %v925 = vunpack.c.l.b16 %v700
        %v926 = vunpack.c.h.b16 %v700
        %v927 = vunpack.c.l.b16 %v701
        %v928 = vunpack.c.h.b16 %v701
        %v929 = vunpack.c.l.b16 %v702
        %v930 = vunpack.c.h.b16 %v702
        %v931 = vunpack.c.l.b16 %v703
        %v932 = vunpack.c.h.b16 %v703
        %v933 = vunpack.c.l.b16 %v704
        %v934 = vunpack.c.h.b16 %v704
        %v935 = vunpack.c.l.b16 %v705
        %v936 = vunpack.c.h.b16 %v705
        %v937 = vunpack.c.l.b16 %v706
        %v938 = vunpack.c.h.b16 %v706
        %v939 = vunpack.c.l.b16 %v707
        %v940 = vunpack.c.h.b16 %v707
        %v941 = vunpack.c.l.b16 %v708
        %v942 = vunpack.c.h.b16 %v708
        %v943 = vunpack.c.l.b16 %v709
        %v944 = vunpack.c.h.b16 %v709
        %v945 = vunpack.c.l.b16 %v710
        %v946 = vunpack.c.h.b16 %v710
        %v947 = vunpack.c.l.b16 %v711
        %v948 = vunpack.c.h.b16 %v711
        %v949 = vunpack.c.l.b16 %v712
        %v950 = vunpack.c.h.b16 %v712
        %v951 = vunpack.c.l.b16 %v713
        %v952 = vunpack.c.h.b16 %v713
        %v953 = vunpack.c.l.b16 %v714
        %v954 = vunpack.c.h.b16 %v714
        %v955 = vunpack.c.l.b16 %v715
        %v956 = vunpack.c.h.b16 %v715
        %v957 = vunpack.c.l.b16 %v716
        %v958 = vunpack.c.h.b16 %v716
        %v959 = vunpack.c.l.b16 %v717
        %v960 = vunpack.c.h.b16 %v717
        %v961 = vunpack.c.l.b16 %v718
        %v962 = vunpack.c.h.b16 %v718
        %v963 = vunpack.c.l.b16 %v719
        %v964 = vunpack.c.h.b16 %v719
        %v965 = vunpack.c.l.b16 %v720
        %v966 = vunpack.c.h.b16 %v720
        %v967 = vunpack.c.l.b16 %v721
        %v968 = vunpack.c.h.b16 %v721
        %v969 = vunpack.c.l.b16 %v722
        %v970 = vunpack.c.h.b16 %v722
        %v971 = vunpack.c.l.b16 %v723
        %v972 = vunpack.c.h.b16 %v723
        %v973 = vunpack.c.l.b16 %v724
        %v974 = vunpack.c.h.b16 %v724
        %v975 = vunpack.c.l.b16 %v725
        %v976 = vunpack.c.h.b16 %v725
        %v977 = vunpack.c.l.b16 %v726
        %v978 = vunpack.c.h.b16 %v726
        %v979 = vunpack.c.l.b16 %v727
        %v980 = vunpack.c.h.b16 %v727
        %v981 = vunpack.c.l.b16 %v728
        %v982 = vunpack.c.h.b16 %v728
        %v983 = vunpack.c.l.b16 %v729
        %v984 = vunpack.c.h.b16 %v729
        %v985 = vunpack.c.l.b16 %v730
        %v986 = vunpack.c.h.b16 %v730
        %v987 = vunpack.c.l.b16 %v731
        %v988 = vunpack.c.h.b16 %v731
        %v989 = vunpack.c.l.b16 %v732
        %v990 = vunpack.c.h.b16 %v732
        %v991 = vunpack.c.l.b16 %v733
        %v992 = vunpack.c.h.b16 %v733
        %v993 = vunpack.c.l.b16 %v734
        %v994 = vunpack.c.h.b16 %v734
        %v995 = vunpack.c.l.b16 %v735
        %v996 = vunpack.c.h.b16 %v735
        %v997 = vunpack.c.l.b16 %v736
        %v998 = vunpack.c.h.b16 %v736
        %v999 = vunpack.c.l.b16 %v737
        %v1000 = vunpack.c.h.b16 %v737
        %v1001 = vunpack.c.l.b16 %v738
        %v1002 = vunpack.c.h.b16 %v738
        %v1003 = vunpack.c.l.b16 %v739
        %v1004 = vunpack.c.h.b16 %v739
        %v1005 = vunpack.c.l.b16 %v740
        %v1006 = vunpack.c.h.b16 %v740
        %v1007 = vunpack.c.l.b16 %v741
        %v1008 = vunpack.c.h.b16 %v741
        %v1009 = vunpack.c.l.b16 %v742
        %v1010 = vunpack.c.h.b16 %v742
        %v1011 = vunpack.c.l.b16 %v743
        %v1012 = vunpack.c.h.b16 %v743
        %v1013 = vunpack.c.l.b16 %v744
        %v1014 = vunpack.c.h.b16 %v744
        %v1015 = vunpack.c.l.b16 %v745
        %v1016 = vunpack.c.h.b16 %v745
        %v1017 = vunpack.c.l.b16 %v746
        %v1018 = vunpack.c.h.b16 %v746
        %v1019 = vunpack.c.l.b16 %v747
        %v1020 = vunpack.c.h.b16 %v747
        %v1021 = vunpack.c.l.b16 %v748
        %v1022 = vunpack.c.h.b16 %v748
        %v1023 = vunpack.c.l.b16 %v749
        %v1024 = vunpack.c.h.b16 %v749
        %v1025 = vunpack.c.l.b16 %v750
        %v1026 = vunpack.c.h.b16 %v750
        %v1027 = vunpack.c.l.b16 %v751
        %v1028 = vunpack.c.h.b16 %v751
        %v1029 = vunpack.c.l.b16 %v752
        %v1030 = vunpack.c.h.b16 %v752
        %v1031 = vunpack.c.l.b16 %v753
        %v1032 = vunpack.c.h.b16 %v753
        %v1033 = vunpack.c.l.b16 %v754
        %v1034 = vunpack.c.h.b16 %v754
        %v1035 = vunpack.c.l.b16 %v755
        %v1036 = vunpack.c.h.b16 %v755
        %v1037 = vunpack.c.l.b16 %v756
        %v1038 = vunpack.c.h.b16 %v756
        %v1039 = vunpack.c.l.b16 %v757
        %v1040 = vunpack.c.h.b16 %v757
        %v1041 = vunpack.c.l.b16 %v758
        %v1042 = vunpack.c.h.b16 %v758
        %v1043 = vunpack.c.l.b16 %v759
        %v1044 = vunpack.c.h.b16 %v759
        %v1045 = vunpack.c.l.b16 %v760
        %v1046 = vunpack.c.h.b16 %v760
        %v1047 = vunpack.c.l.b16 %v761
        %v1048 = vunpack.c.h.b16 %v761
        %v1049 = vunpack.c.l.b16 %v762
        %v1050 = vunpack.c.h.b16 %v762
        %v1051 = vunpack.c.l.b16 %v763
        %v1052 = vunpack.c.h.b16 %v763
        %v1053 = vunpack.c.l.b16 %v764
        %v1054 = vunpack.c.h.b16 %v764
        %v1055 = vunpack.c.l.b16 %v765
        %v1056 = vunpack.c.h.b16 %v765
        %v1057 = vunpack.c.l.b16 %v766
        %v1058 = vunpack.c.h.b16 %v766
        %v1059 = vunpack.c.l.b16 %v767
        %v1060 = vunpack.c.h.b16 %v767
        %v1061 = vunpack.c.l.b16 %v768
        %v1062 = vunpack.c.h.b16 %v768
        %v1063 = vunpack.c.l.b16 %v769
        %v1064 = vunpack.c.h.b16 %v769
        %v1065 = vunpack.c.l.b16 %v770
        %v1066 = vunpack.c.h.b16 %v770
        %v1067 = vunpack.c.l.b16 %v771
        %v1068 = vunpack.c.h.b16 %v771
        %v1069 = vunpack.c.l.b16 %v772
        %v1070 = vunpack.c.h.b16 %v772
        %v1071 = vunpack.c.l.b16 %v773
        %v1072 = vunpack.c.h.b16 %v773
        %v1073 = vunpack.c.l.b16 %v774
        %v1074 = vunpack.c.h.b16 %v774
        %v1075 = vunpack.c.l.b16 %v775
        %v1076 = vunpack.c.h.b16 %v775
        %v1077 = vunpack.c.l.b16 %v776
        %v1078 = vunpack.c.h.b16 %v776
        %v1079 = vunpack.c.l.b16 %v777
        %v1080 = vunpack.c.h.b16 %v777
        %v1081 = vunpack.c.l.b16 %v778
        %v1082 = vunpack.c.h.b16 %v778
        %v1083 = vunpack.c.l.b16 %v779
        %v1084 = vunpack.c.h.b16 %v779
        %v1085 = vunpack.c.l.b16 %v780
        %v1086 = vunpack.c.h.b16 %v780
        %v1087 = vunpack.c.l.b16 %v781
        %v1088 = vunpack.c.h.b16 %v781
        %v1089 = vunpack.c.l.b16 %v782
        %v1090 = vunpack.c.h.b16 %v782
        %v1091 = vunpack.c.l.b16 %v783
        %v1092 = vunpack.c.h.b16 %v783
        %v1093 = vunpack.c.l.b16 %v784
        %v1094 = vunpack.c.h.b16 %v784
        %v1095 = vunpack.c.l.b16 %v785
        %v1096 = vunpack.c.h.b16 %v785
        %v1097 = vunpack.c.l.b16 %v786
        %v1098 = vunpack.c.h.b16 %v786
        %v1099 = vunpack.c.l.b16 %v787
        %v1100 = vunpack.c.h.b16 %v787
        %v1101 = vunpack.c.l.b16 %v788
        %v1102 = vunpack.c.h.b16 %v788
        %v1103 = vunpack.c.l.b16 %v789
        %v1104 = vunpack.c.h.b16 %v789
        %v1105 = vunpack.c.l.b16 %v790
        %v1106 = vunpack.c.h.b16 %v790
        %v1107 = vunpack.c.l.b16 %v791
        %v1108 = vunpack.c.h.b16 %v791
        %v1109 = vunpack.c.l.b16 %v792
        %v1110 = vunpack.c.h.b16 %v792
        %v1111 = vunpack.c.l.b16 %v793
        %v1112 = vunpack.c.h.b16 %v793
        %v1113 = vunpack.c.l.b16 %v794
        %v1114 = vunpack.c.h.b16 %v794
        %v1115 = vpack.c.b16 %v929, %v923
        %v1116 = vpack.c.b16 %v930, %v924
        %v1117 = vpack.c.b16 %v931, %v925
        %v1118 = vpack.c.b16 %v932, %v926
        %v1119 = vpack.c.b16 %v933, %v927
        %v1120 = vpack.c.b16 %v934, %v928
        %v1121 = vpack.c.b16 %v941, %v935
        %v1122 = vpack.c.b16 %v942, %v936
        %v1123 = vpack.c.b16 %v943, %v937
        %v1124 = vpack.c.b16 %v944, %v938
        %v1125 = vpack.c.b16 %v945, %v939
        %v1126 = vpack.c.b16 %v946, %v940
        %v1127 = vpack.c.b16 %v953, %v947
        %v1128 = vpack.c.b16 %v954, %v948
        %v1129 = vpack.c.b16 %v955, %v949
        %v1130 = vpack.c.b16 %v956, %v950
        %v1131 = vpack.c.b16 %v957, %v951
        %v1132 = vpack.c.b16 %v958, %v952
        %v1133 = vpack.c.b16 %v965, %v959
        %v1134 = vpack.c.b16 %v966, %v960
        %v1135 = vpack.c.b16 %v967, %v961
        %v1136 = vpack.c.b16 %v968, %v962
        %v1137 = vpack.c.b16 %v969, %v963
        %v1138 = vpack.c.b16 %v970, %v964
        %v1139 = vpack.c.b16 %v977, %v971
        %v1140 = vpack.c.b16 %v978, %v972
        %v1141 = vpack.c.b16 %v979, %v973
        %v1142 = vpack.c.b16 %v980, %v974
        %v1143 = vpack.c.b16 %v981, %v975
        %v1144 = vpack.c.b16 %v982, %v976
        %v1145 = vpack.c.b16 %v989, %v983
        %v1146 = vpack.c.b16 %v990, %v984
        %v1147 = vpack.c.b16 %v991, %v985
        %v1148 = vpack.c.b16 %v992, %v986
        %v1149 = vpack.c.b16 %v993, %v987
        %v1150 = vpack.c.b16 %v994, %v988
        %v1151 = vpack.c.b16 %v1001, %v995
        %v1152 = vpack.c.b16 %v1002, %v996
        %v1153 = vpack.c.b16 %v1003, %v997
        %v1154 = vpack.c.b16 %v1004, %v998
        %v1155 = vpack.c.b16 %v1005, %v999
        %v1156 = vpack.c.b16 %v1006, %v1000
        %v1157 = vpack.c.b16 %v1013, %v1007
        %v1158 = vpack.c.b16 %v1014, %v1008
        %v1159 = vpack.c.b16 %v1015, %v1009
        %v1160 = vpack.c.b16 %v1016, %v1010
        %v1161 = vpack.c.b16 %v1017, %v1011
        %v1162 = vpack.c.b16 %v1018, %v1012
        %v1163 = vpack.c.b16 %v1025, %v1019
        %v1164 = vpack.c.b16 %v1026, %v1020
        %v1165 = vpack.c.b16 %v1027, %v1021
        %v1166 = vpack.c.b16 %v1028, %v1022
        %v1167 = vpack.c.b16 %v1029, %v1023
        %v1168 = vpack.c.b16 %v1030, %v1024
        %v1169 = vpack.c.b16 %v1037, %v1031
        %v1170 = vpack.c.b16 %v1038, %v1032
        %v1171 = vpack.c.b16 %v1039, %v1033
        %v1172 = vpack.c.b16 %v1040, %v1034
        %v1173 = vpack.c.b16 %v1041, %v1035
        %v1174 = vpack.c.b16 %v1042, %v1036
        %v1175 = vpack.c.b16 %v1049, %v1043
        %v1176 = vpack.c.b16 %v1050, %v1044
        %v1177 = vpack.c.b16 %v1051, %v1045
        %v1178 = vpack.c.b16 %v1052, %v1046
        %v1179 = vpack.c.b16 %v1053, %v1047
        %v1180 = vpack.c.b16 %v1054, %v1048
        %v1181 = vpack.c.b16 %v1061, %v1055
        %v1182 = vpack.c.b16 %v1062, %v1056
        %v1183 = vpack.c.b16 %v1063, %v1057
        %v1184 = vpack.c.b16 %v1064, %v1058
        %v1185 = vpack.c.b16 %v1065, %v1059
        %v1186 = vpack.c.b16 %v1066, %v1060
        %v1187 = vpack.c.b16 %v1073, %v1067
        %v1188 = vpack.c.b16 %v1074, %v1068
        %v1189 = vpack.c.b16 %v1075, %v1069
        %v1190 = vpack.c.b16 %v1076, %v1070
        %v1191 = vpack.c.b16 %v1077, %v1071
        %v1192 = vpack.c.b16 %v1078, %v1072
        %v1193 = vpack.c.b16 %v1085, %v1079
        %v1194 = vpack.c.b16 %v1086, %v1080
        %v1195 = vpack.c.b16 %v1087, %v1081
        %v1196 = vpack.c.b16 %v1088, %v1082
        %v1197 = vpack.c.b16 %v1089, %v1083
        %v1198 = vpack.c.b16 %v1090, %v1084
        %v1199 = vpack.c.b16 %v1097, %v1091
        %v1200 = vpack.c.b16 %v1098, %v1092
        %v1201 = vpack.c.b16 %v1099, %v1093
        %v1202 = vpack.c.b16 %v1100, %v1094
        %v1203 = vpack.c.b16 %v1101, %v1095
        %v1204 = vpack.c.b16 %v1102, %v1096
        %v1205 = vpack.c.b16 %v1109, %v1103
        %v1206 = vpack.c.b16 %v1110, %v1104
        %v1207 = vpack.c.b16 %v1111, %v1105
        %v1208 = vpack.c.b16 %v1112, %v1106
        %v1209 = vpack.c.b16 %v1113, %v1107
        %v1210 = vpack.c.b16 %v1114, %v1108
        %1307 = vmatprep.subr.bf16.mxu0 %v1116
        %1308 = vmatpush1.bf16.msra.mxu0 %v1115
        %1309 = vmatprep.subr.bf16.mxu0 %v1122
        %1310 = vmatpush1.bf16.msra.mxu0 %v1121
        %1311 = vmatprep.subr.bf16.mxu0 %v1128
        %1312 = vmatpush1.bf16.msra.mxu0 %v1127
        %1313 = vmatprep.subr.bf16.mxu0 %v1134
        %1314 = vmatpush1.bf16.msra.mxu0 %v1133
        %1315 = vmatprep.subr.bf16.mxu0 %v1140
        %1316 = vmatpush1.bf16.msra.mxu0 %v1139
        %1317 = vmatprep.subr.bf16.mxu0 %v1146
        %1318 = vmatpush1.bf16.msra.mxu0 %v1145
        %1319 = vmatprep.subr.bf16.mxu0 %v1152
        %1320 = vmatpush1.bf16.msra.mxu0 %v1151
        %1321 = vmatprep.subr.bf16.mxu0 %v1158
        %1322 = vmatpush1.bf16.msra.mxu0 %v1157
        %1323 = vmatprep.subr.bf16.mxu0 %v1164
        %1324 = vmatpush1.bf16.msra.mxu0 %v1163
        %1325 = vmatprep.subr.bf16.mxu0 %v1170
        %1326 = vmatpush1.bf16.msra.mxu0 %v1169
        %1327 = vmatprep.subr.bf16.mxu0 %v1176
        %1328 = vmatpush1.bf16.msra.mxu0 %v1175
        %1329 = vmatprep.subr.bf16.mxu0 %v1182
        %1330 = vmatpush1.bf16.msra.mxu0 %v1181
        %1331 = vmatprep.subr.bf16.mxu0 %v1188
        %1332 = vmatpush1.bf16.msra.mxu0 %v1187
        %1333 = vmatprep.subr.bf16.mxu0 %v1194
        %1334 = vmatpush1.bf16.msra.mxu0 %v1193
        %1335 = vmatprep.subr.bf16.mxu0 %v1200
        %1336 = vmatpush1.bf16.msra.mxu0 %v1199
        %1337 = vmatprep.subr.bf16.mxu0 %v1206
        %1338 = vmatpush1.bf16.msra.mxu0 %v1205
        %1339 = vmatprep.mubr.bf16.mxu0 %v696
        %1340 = vmatmul.mubr.bf16.gmra.mrb[0].mxu0 %v695
        %v1341 = vpop.f32.mrb[0].mxu0
        %v1342 = vadd.f32 %v800, %v1341
        %v1343 = vpop.f32.mrb[0].mxu0
        %v1344 = vadd.f32 %v804, %v1343
        %v1345 = vpop.f32.mrb[0].mxu0
        %v1346 = vadd.f32 %v800, %v1345
        %v1347 = vpop.f32.mrb[0].mxu0
        %v1348 = vadd.f32 %v804, %v1347
        %1349 = vmatprep.mubr.bf16.mxu0 %v698
        %1350 = vmatmul.mubr.bf16.gmra.mrb[0].mxu0 %v697
        %v1351 = vpop.f32.mrb[0].mxu0
        %v1352 = vadd.f32 %v800, %v1351
        %v1353 = vpop.f32.mrb[0].mxu0
        %v1354 = vadd.f32 %v804, %v1353
        %v1355 = vpop.f32.mrb[0].mxu0
        %v1356 = vadd.f32 %v800, %v1355
        %v1357 = vpop.f32.mrb[0].mxu0
        %v1358 = vadd.f32 %v804, %v1357
        %1359 = vdwg.mxu0
        %1360 = vmatprep.subr.bf16.mxu0 %v1118
        %1361 = vmatpush1.bf16.msra.mxu0 %v1117
        %1362 = vmatprep.subr.bf16.mxu0 %v1124
        %1363 = vmatpush1.bf16.msra.mxu0 %v1123
        %1364 = vmatprep.subr.bf16.mxu0 %v1130
        %1365 = vmatpush1.bf16.msra.mxu0 %v1129
        %1366 = vmatprep.subr.bf16.mxu0 %v1136
        %1367 = vmatpush1.bf16.msra.mxu0 %v1135
        %1368 = vmatprep.subr.bf16.mxu0 %v1142
        %1369 = vmatpush1.bf16.msra.mxu0 %v1141
        %1370 = vmatprep.subr.bf16.mxu0 %v1148
        %1371 = vmatpush1.bf16.msra.mxu0 %v1147
        %1372 = vmatprep.subr.bf16.mxu0 %v1154
        %1373 = vmatpush1.bf16.msra.mxu0 %v1153
        %1374 = vmatprep.subr.bf16.mxu0 %v1160
        %1375 = vmatpush1.bf16.msra.mxu0 %v1159
        %1376 = vmatprep.subr.bf16.mxu0 %v1166
        %1377 = vmatpush1.bf16.msra.mxu0 %v1165
        %1378 = vmatprep.subr.bf16.mxu0 %v1172
        %1379 = vmatpush1.bf16.msra.mxu0 %v1171
        %1380 = vmatprep.subr.bf16.mxu0 %v1178
        %1381 = vmatpush1.bf16.msra.mxu0 %v1177
        %1382 = vmatprep.subr.bf16.mxu0 %v1184
        %1383 = vmatpush1.bf16.msra.mxu0 %v1183
        %1384 = vmatprep.subr.bf16.mxu0 %v1190
        %1385 = vmatpush1.bf16.msra.mxu0 %v1189
        %1386 = vmatprep.subr.bf16.mxu0 %v1196
        %1387 = vmatpush1.bf16.msra.mxu0 %v1195
        %1388 = vmatprep.subr.bf16.mxu0 %v1202
        %1389 = vmatpush1.bf16.msra.mxu0 %v1201
        %1390 = vmatprep.subr.bf16.mxu0 %v1208
        %1391 = vmatpush1.bf16.msra.mxu0 %v1207
        %1392 = vmatprep.mubr.bf16.mxu0 %v696
        %1393 = vmatmul.mubr.bf16.gmra.mrb[0].mxu0 %v695
        %v1394 = vpop.f32.mrb[0].mxu0
        %v1395 = vadd.f32 %v808, %v1394
        %v1396 = vpop.f32.mrb[0].mxu0
        %v1397 = vadd.f32 %v812, %v1396
        %v1398 = vpop.f32.mrb[0].mxu0
        %v1399 = vadd.f32 %v808, %v1398
        %v1400 = vpop.f32.mrb[0].mxu0
        %v1401 = vadd.f32 %v812, %v1400
        %1402 = vmatprep.mubr.bf16.mxu0 %v698
        %1403 = vmatmul.mubr.bf16.gmra.mrb[0].mxu0 %v697
        %v1404 = vpop.f32.mrb[0].mxu0
        %v1405 = vadd.f32 %v808, %v1404
        %v1406 = vpop.f32.mrb[0].mxu0
        %v1407 = vadd.f32 %v812, %v1406
        %v1408 = vpop.f32.mrb[0].mxu0
        %v1409 = vadd.f32 %v808, %v1408
        %v1410 = vpop.f32.mrb[0].mxu0
        %v1411 = vadd.f32 %v812, %v1410
        %1412 = vdwg.mxu0
        %1413 = vmatprep.subr.bf16.mxu0 %v1120
        %1414 = vmatpush1.bf16.msra.mxu0 %v1119
        %1415 = vmatprep.subr.bf16.mxu0 %v1126
        %1416 = vmatpush1.bf16.msra.mxu0 %v1125
        %1417 = vmatprep.subr.bf16.mxu0 %v1132
        %1418 = vmatpush1.bf16.msra.mxu0 %v1131
        %1419 = vmatprep.subr.bf16.mxu0 %v1138
        %1420 = vmatpush1.bf16.msra.mxu0 %v1137
        %1421 = vmatprep.subr.bf16.mxu0 %v1144
        %1422 = vmatpush1.bf16.msra.mxu0 %v1143
        %1423 = vmatprep.subr.bf16.mxu0 %v1150
        %1424 = vmatpush1.bf16.msra.mxu0 %v1149
        %1425 = vmatprep.subr.bf16.mxu0 %v1156
        %1426 = vmatpush1.bf16.msra.mxu0 %v1155
        %1427 = vmatprep.subr.bf16.mxu0 %v1162
        %1428 = vmatpush1.bf16.msra.mxu0 %v1161
        %1429 = vmatprep.subr.bf16.mxu0 %v1168
        %1430 = vmatpush1.bf16.msra.mxu0 %v1167
        %1431 = vmatprep.subr.bf16.mxu0 %v1174
        %1432 = vmatpush1.bf16.msra.mxu0 %v1173
        %1433 = vmatprep.subr.bf16.mxu0 %v1180
        %1434 = vmatpush1.bf16.msra.mxu0 %v1179
        %1435 = vmatprep.subr.bf16.mxu0 %v1186
        %1436 = vmatpush1.bf16.msra.mxu0 %v1185
        %1437 = vmatprep.subr.bf16.mxu0 %v1192
        %1438 = vmatpush1.bf16.msra.mxu0 %v1191
        %1439 = vmatprep.subr.bf16.mxu0 %v1198
        %1440 = vmatpush1.bf16.msra.mxu0 %v1197
        %1441 = vmatprep.subr.bf16.mxu0 %v1204
        %1442 = vmatpush1.bf16.msra.mxu0 %v1203
        %1443 = vmatprep.subr.bf16.mxu0 %v1210
        %1444 = vmatpush1.bf16.msra.mxu0 %v1209
        %1445 = vmatprep.mubr.bf16.mxu0 %v696
        %1446 = vmatmul.mubr.bf16.gmra.mrb[0].mxu0 %v695
        %v1447 = vpop.f32.mrb[0].mxu0
        %v1448 = vadd.f32 %v816, %v1447
        %v1449 = vpop.f32.mrb[0].mxu0
        %v1450 = vadd.f32 %v820, %v1449
        %v1451 = vpop.f32.mrb[0].mxu0
        %v1452 = vadd.f32 %v816, %v1451
        %v1453 = vpop.f32.mrb[0].mxu0
        %v1454 = vadd.f32 %v820, %v1453
        %1455 = vmatprep.mubr.bf16.mxu0 %v698
        %1456 = vmatmul.mubr.bf16.gmra.mrb[0].mxu0 %v697
        %v1457 = vpop.f32.mrb[0].mxu0
        %v1458 = vadd.f32 %v816, %v1457
        %v1459 = vpop.f32.mrb[0].mxu0
        %v1460 = vadd.f32 %v820, %v1459
        %v1461 = vpop.f32.mrb[0].mxu0
        %v1462 = vadd.f32 %v816, %v1461
        %v1463 = vpop.f32.mrb[0].mxu0
        %v1464 = vadd.f32 %v820, %v1463
        %1465 = vdwg.mxu0
        %v1466 = vpack.c.bf16 %v1346, %v1342
        %v1467 = vpack.c.bf16 %v1348, %v1344
        %v1468 = vpack.c.bf16 %v1399, %v1395
        %v1469 = vpack.c.bf16 %v1401, %v1397
        %v1470 = vpack.c.bf16 %v1452, %v1448
        %v1471 = vpack.c.bf16 %v1454, %v1450
        %v1472 = vpack.c.bf16 %v1356, %v1352
        %v1473 = vpack.c.bf16 %v1358, %v1354
        %v1474 = vpack.c.bf16 %v1409, %v1405
        %v1475 = vpack.c.bf16 %v1411, %v1407
        %v1476 = vpack.c.bf16 %v1462, %v1458
        %v1477 = vpack.c.bf16 %v1464, %v1460
        %1478 = vmatprep.subr.bf16.mxu0 0
        %1479 = vmatpush1.bf16.xpose.msra.mxu0 %v1468
        %1480 = vmatprep.subr.bf16.mxu0 0
        %1481 = vmatpush1.bf16.xpose.msra.mxu0 0
        %1482 = vmatprep.subr.bf16.mxu0 0
        %1483 = vmatpush1.bf16.xpose.msra.mxu0 0
        %1484 = vmatprep.subr.bf16.mxu0 0
        %1485 = vmatpush1.bf16.xpose.msra.mxu0 0
        %1486 = vmatprep.subr.bf16.mxu0 0
        %1487 = vmatpush1.bf16.xpose.msra.mxu0 0
        %1488 = vmatprep.subr.bf16.mxu0 0
        %1489 = vmatpush1.bf16.xpose.msra.mxu0 0
        %1490 = vmatprep.subr.bf16.mxu0 0
        %1491 = vmatpush1.bf16.xpose.msra.mxu0 0
        %1492 = vmatprep.subr.bf16.mxu0 0
        %1493 = vmatpush1.bf16.xpose.msra.mxu0 0
        %1494 = vmatprep.subr.bf16.mxu0 0
        %1495 = vmatpush1.bf16.xpose.msra.mxu0 0
        %1496 = vmatprep.subr.bf16.mxu0 0
        %1497 = vmatpush1.bf16.xpose.msra.mxu0 0
        %1498 = vmatprep.subr.bf16.mxu0 0
        %1499 = vmatpush1.bf16.xpose.msra.mxu0 0
        %1500 = vmatprep.subr.bf16.mxu0 0
        %1501 = vmatpush1.bf16.xpose.msra.mxu0 0
        %1502 = vmatprep.subr.bf16.mxu0 0
        %1503 = vmatpush1.bf16.xpose.msra.mxu0 0
        %1504 = vmatprep.subr.bf16.mxu0 0
        %1505 = vmatpush1.bf16.xpose.msra.mxu0 0
        %1506 = vmatprep.subr.bf16.mxu0 0
        %1507 = vmatpush1.bf16.xpose.msra.mxu0 0
        %1508 = vmatprep.subr.bf16.mxu0 0
        %1509 = vmatpush1.bf16.xpose.msra.mxu0 0
        %1510 = vmatprep.mubr.bf16.mxu0 0
        %1511 = vmatmul.mubr.bf16.gmra.mrb[0].mxu0 %v1466
        %v1512 = vpop.f32.mrb[0].mxu0
        %v1513 = vadd.f32 0.0, %v1512
        %v1514 = vpop.f32.mrb[0].mxu0
        %v1515 = vpop.f32.mrb[0].mxu0
        %v1516 = vadd.f32 0.0, %v1515
        %v1517 = vpop.f32.mrb[0].mxu0
        %1518 = vdwg.mxu0
        %1519 = vmatprep.subr.bf16.mxu0 0
        %1520 = vmatpush1.bf16.xpose.msra.mxu0 %v1474
        %1521 = vmatprep.subr.bf16.mxu0 0
        %1522 = vmatpush1.bf16.xpose.msra.mxu0 0
        %1523 = vmatprep.subr.bf16.mxu0 0
        %1524 = vmatpush1.bf16.xpose.msra.mxu0 0
        %1525 = vmatprep.subr.bf16.mxu0 0
        %1526 = vmatpush1.bf16.xpose.msra.mxu0 0
        %1527 = vmatprep.subr.bf16.mxu0 0
        %1528 = vmatpush1.bf16.xpose.msra.mxu0 0
        %1529 = vmatprep.subr.bf16.mxu0 0
        %1530 = vmatpush1.bf16.xpose.msra.mxu0 0
        %1531 = vmatprep.subr.bf16.mxu0 0
        %1532 = vmatpush1.bf16.xpose.msra.mxu0 0
        %1533 = vmatprep.subr.bf16.mxu0 0
        %1534 = vmatpush1.bf16.xpose.msra.mxu0 0
        %1535 = vmatprep.subr.bf16.mxu0 0
        %1536 = vmatpush1.bf16.xpose.msra.mxu0 0
        %1537 = vmatprep.subr.bf16.mxu0 0
        %1538 = vmatpush1.bf16.xpose.msra.mxu0 0
        %1539 = vmatprep.subr.bf16.mxu0 0
        %1540 = vmatpush1.bf16.xpose.msra.mxu0 0
        %1541 = vmatprep.subr.bf16.mxu0 0
        %1542 = vmatpush1.bf16.xpose.msra.mxu0 0
        %1543 = vmatprep.subr.bf16.mxu0 0
        %1544 = vmatpush1.bf16.xpose.msra.mxu0 0
        %1545 = vmatprep.subr.bf16.mxu0 0
        %1546 = vmatpush1.bf16.xpose.msra.mxu0 0
        %1547 = vmatprep.subr.bf16.mxu0 0
        %1548 = vmatpush1.bf16.xpose.msra.mxu0 0
        %1549 = vmatprep.subr.bf16.mxu0 0
        %1550 = vmatpush1.bf16.xpose.msra.mxu0 0
        %1551 = vmatprep.mubr.bf16.mxu0 0
        %1552 = vmatmul.mubr.bf16.gmra.mrb[0].mxu0 %v1472
        %v1553 = vpop.f32.mrb[0].mxu0
        %v1554 = vadd.f32 0.0, %v1553
        %v1555 = vpop.f32.mrb[0].mxu0
        %v1556 = vpop.f32.mrb[0].mxu0
        %v1557 = vadd.f32 0.0, %v1556
        %v1558 = vpop.f32.mrb[0].mxu0
        %1559 = vdwg.mxu0
        %vm1560 = vcmask 130048
        %v1561 = vsel %vm1560, %v1513, -inf
        %1562 = vmax.xlane.f32.xlu0 %v1561
        %v1563 = vpop.xlane.xlu0 %1562
        %v1564 = vsel %vm1560, %v1516, -inf
        %1565 = vmax.xlane.f32.xlu0 %v1564
        %v1566 = vpop.xlane.xlu0 %1565
        %v1567 = vsel %vm1560, %v1554, -inf
        %1568 = vmax.xlane.f32.xlu0 %v1567
        %v1569 = vpop.xlane.xlu0 %1568
        %v1570 = vsel %vm1560, %v1557, -inf
        %1571 = vmax.xlane.f32.xlu0 %v1570
        %v1572 = vpop.xlane.xlu0 %1571
        %v1573 = vsub.f32 %v1513, %v1563
        %v1574 = vsub.f32 %v1516, %v1566
        %v1575 = vsub.f32 %v1554, %v1569
        %v1576 = vsub.f32 %v1557, %v1572
        %v1577 = vmul.f32 %v1573, 1.442695
        %v1578 = vpow.pop %v1577
        %v1579 = vmul.f32 %v1574, 1.442695
        %v1580 = vpow.pop %v1579
        %v1581 = vmul.f32 %v1575, 1.442695
        %v1582 = vpow.pop %v1581
        %v1583 = vmul.f32 %v1576, 1.442695
        %v1584 = vpow.pop %v1583
        %v1585 = vsel %vm1560, %v1578, 0.0
        %1586 = vadd.xlane.f32.xlu0 %v1585
        %v1587 = vpop.xlane.xlu0 %1586
        %v1588 = vsel %vm1560, %v1580, 0.0
        %1589 = vadd.xlane.f32.xlu0 %v1588
        %v1590 = vpop.xlane.xlu0 %1589
        %v1591 = vsel %vm1560, %v1582, 0.0
        %1592 = vadd.xlane.f32.xlu0 %v1591
        %v1593 = vpop.xlane.xlu0 %1592
        %v1594 = vsel %vm1560, %v1584, 0.0
        %1595 = vadd.xlane.f32.xlu0 %v1594
        %v1596 = vpop.xlane.xlu0 %1595
        %v1597 = vrcp.pop %v1587
        %v1598 = vrcp.pop %v1590
        %v1599 = vrcp.pop %v1593
        %v1600 = vrcp.pop %v1596
        %v1601 = vmul.f32 %v1578, %v1597
        %v1602 = vmul.f32 %v1580, %v1598
        %v1603 = vmul.f32 %v1582, %v1599
        %v1604 = vmul.f32 %v1584, %v1600
        %v1605 = vpack.c.bf16 %v1602, %v1601
        %v1606 = vpack.c.bf16 %v1604, %v1603
        %v1608 = vsel %vm1560, %v1605, 0
        %1610 = vmatprep.subr.bf16.mxu0 0
        %1611 = vmatpush1.bf16.msra.mxu0 %v1470
        %1612 = vmatprep.subr.bf16.mxu0 0
        %1613 = vmatpush1.bf16.msra.mxu0 0
        %1614 = vmatprep.subr.bf16.mxu0 0
        %1615 = vmatpush1.bf16.msra.mxu0 0
        %1616 = vmatprep.subr.bf16.mxu0 0
        %1617 = vmatpush1.bf16.msra.mxu0 0
        %1618 = vmatprep.subr.bf16.mxu0 0
        %1619 = vmatpush1.bf16.msra.mxu0 0
        %1620 = vmatprep.subr.bf16.mxu0 0
        %1621 = vmatpush1.bf16.msra.mxu0 0
        %1622 = vmatprep.subr.bf16.mxu0 0
        %1623 = vmatpush1.bf16.msra.mxu0 0
        %1624 = vmatprep.subr.bf16.mxu0 0
        %1625 = vmatpush1.bf16.msra.mxu0 0
        %1626 = vmatprep.subr.bf16.mxu0 0
        %1627 = vmatpush1.bf16.msra.mxu0 0
        %1628 = vmatprep.subr.bf16.mxu0 0
        %1629 = vmatpush1.bf16.msra.mxu0 0
        %1630 = vmatprep.subr.bf16.mxu0 0
        %1631 = vmatpush1.bf16.msra.mxu0 0
        %1632 = vmatprep.subr.bf16.mxu0 0
        %1633 = vmatpush1.bf16.msra.mxu0 0
        %1634 = vmatprep.subr.bf16.mxu0 0
        %1635 = vmatpush1.bf16.msra.mxu0 0
        %1636 = vmatprep.subr.bf16.mxu0 0
        %1637 = vmatpush1.bf16.msra.mxu0 0
        %1638 = vmatprep.subr.bf16.mxu0 0
        %1639 = vmatpush1.bf16.msra.mxu0 0
        %1640 = vmatprep.subr.bf16.mxu0 0
        %1641 = vmatpush1.bf16.msra.mxu0 0
        %1642 = vmatprep.mubr.bf16.mxu0 0
        %1643 = vmatmul.mubr.bf16.gmra.mrb[0].mxu0 %v1608
        %v1644 = vpop.f32.mrb[0].mxu0
        %v1645 = vadd.f32 0.0, %v1644
        %v1646 = vpop.f32.mrb[0].mxu0
        %v1647 = vpop.f32.mrb[0].mxu0
        %v1648 = vadd.f32 0.0, %v1647
        %v1649 = vpop.f32.mrb[0].mxu0
        %1650 = vdwg.mxu0
        %v1652 = vsel %vm1560, %v1606, 0
        %1654 = vmatprep.subr.bf16.mxu0 0
        %1655 = vmatpush1.bf16.msra.mxu0 %v1476
        %1656 = vmatprep.subr.bf16.mxu0 0
        %1657 = vmatpush1.bf16.msra.mxu0 0
        %1658 = vmatprep.subr.bf16.mxu0 0
        %1659 = vmatpush1.bf16.msra.mxu0 0
        %1660 = vmatprep.subr.bf16.mxu0 0
        %1661 = vmatpush1.bf16.msra.mxu0 0
        %1662 = vmatprep.subr.bf16.mxu0 0
        %1663 = vmatpush1.bf16.msra.mxu0 0
        %1664 = vmatprep.subr.bf16.mxu0 0
        %1665 = vmatpush1.bf16.msra.mxu0 0
        %1666 = vmatprep.subr.bf16.mxu0 0
        %1667 = vmatpush1.bf16.msra.mxu0 0
        %1668 = vmatprep.subr.bf16.mxu0 0
        %1669 = vmatpush1.bf16.msra.mxu0 0
        %1670 = vmatprep.subr.bf16.mxu0 0
        %1671 = vmatpush1.bf16.msra.mxu0 0
        %1672 = vmatprep.subr.bf16.mxu0 0
        %1673 = vmatpush1.bf16.msra.mxu0 0
        %1674 = vmatprep.subr.bf16.mxu0 0
        %1675 = vmatpush1.bf16.msra.mxu0 0
        %1676 = vmatprep.subr.bf16.mxu0 0
        %1677 = vmatpush1.bf16.msra.mxu0 0
        %1678 = vmatprep.subr.bf16.mxu0 0
        %1679 = vmatpush1.bf16.msra.mxu0 0
        %1680 = vmatprep.subr.bf16.mxu0 0
        %1681 = vmatpush1.bf16.msra.mxu0 0
        %1682 = vmatprep.subr.bf16.mxu0 0
        %1683 = vmatpush1.bf16.msra.mxu0 0
        %1684 = vmatprep.subr.bf16.mxu0 0
        %1685 = vmatpush1.bf16.msra.mxu0 0
        %1686 = vmatprep.mubr.bf16.mxu0 0
        %1687 = vmatmul.mubr.bf16.gmra.mrb[0].mxu0 %v1652
        %v1688 = vpop.f32.mrb[0].mxu0
        %v1689 = vadd.f32 0.0, %v1688
        %v1690 = vpop.f32.mrb[0].mxu0
        %v1691 = vpop.f32.mrb[0].mxu0
        %v1692 = vadd.f32 0.0, %v1691
        %v1693 = vpop.f32.mrb[0].mxu0
        %1694 = vdwg.mxu0
        %v1695 = vpack.c.bf16 %v1648, %v1645
        %v1696 = vpack.c.bf16 %v1692, %v1689
        %1697 = vst [vmem:[#allocation3] sm:$0xff] %v1695
        %1698 = vst [vmem:[#allocation3 + $0x10] sm:$0xff] %v1696
        %1699 = vmatprep.subr.bf16.mxu0 0
        %1700 = vmatpush1.bf16.xpose.msra.mxu0 %v1469
        %1701 = vmatprep.subr.bf16.mxu0 0
        %1702 = vmatpush1.bf16.xpose.msra.mxu0 0
        %1703 = vmatprep.subr.bf16.mxu0 0
        %1704 = vmatpush1.bf16.xpose.msra.mxu0 0
        %1705 = vmatprep.subr.bf16.mxu0 0
        %1706 = vmatpush1.bf16.xpose.msra.mxu0 0
        %1707 = vmatprep.subr.bf16.mxu0 0
        %1708 = vmatpush1.bf16.xpose.msra.mxu0 0
        %1709 = vmatprep.subr.bf16.mxu0 0
        %1710 = vmatpush1.bf16.xpose.msra.mxu0 0
        %1711 = vmatprep.subr.bf16.mxu0 0
        %1712 = vmatpush1.bf16.xpose.msra.mxu0 0
        %1713 = vmatprep.subr.bf16.mxu0 0
        %1714 = vmatpush1.bf16.xpose.msra.mxu0 0
        %1715 = vmatprep.subr.bf16.mxu0 0
        %1716 = vmatpush1.bf16.xpose.msra.mxu0 0
        %1717 = vmatprep.subr.bf16.mxu0 0
        %1718 = vmatpush1.bf16.xpose.msra.mxu0 0
        %1719 = vmatprep.subr.bf16.mxu0 0
        %1720 = vmatpush1.bf16.xpose.msra.mxu0 0
        %1721 = vmatprep.subr.bf16.mxu0 0
        %1722 = vmatpush1.bf16.xpose.msra.mxu0 0
        %1723 = vmatprep.subr.bf16.mxu0 0
        %1724 = vmatpush1.bf16.xpose.msra.mxu0 0
        %1725 = vmatprep.subr.bf16.mxu0 0
        %1726 = vmatpush1.bf16.xpose.msra.mxu0 0
        %1727 = vmatprep.subr.bf16.mxu0 0
        %1728 = vmatpush1.bf16.xpose.msra.mxu0 0
        %1729 = vmatprep.subr.bf16.mxu0 0
        %1730 = vmatpush1.bf16.xpose.msra.mxu0 0
        %1731 = vmatprep.mubr.bf16.mxu0 0
        %1732 = vmatmul.mubr.bf16.gmra.mrb[0].mxu0 %v1467
        %v1733 = vpop.f32.mrb[0].mxu0
        %v1734 = vadd.f32 0.0, %v1733
        %v1735 = vpop.f32.mrb[0].mxu0
        %v1736 = vpop.f32.mrb[0].mxu0
        %v1737 = vadd.f32 0.0, %v1736
        %v1738 = vpop.f32.mrb[0].mxu0
        %1739 = vdwg.mxu0
        %1740 = vmatprep.subr.bf16.mxu0 0
        %1741 = vmatpush1.bf16.xpose.msra.mxu0 %v1475
        %1742 = vmatprep.subr.bf16.mxu0 0
        %1743 = vmatpush1.bf16.xpose.msra.mxu0 0
        %1744 = vmatprep.subr.bf16.mxu0 0
        %1745 = vmatpush1.bf16.xpose.msra.mxu0 0
        %1746 = vmatprep.subr.bf16.mxu0 0
        %1747 = vmatpush1.bf16.xpose.msra.mxu0 0
        %1748 = vmatprep.subr.bf16.mxu0 0
        %1749 = vmatpush1.bf16.xpose.msra.mxu0 0
        %1750 = vmatprep.subr.bf16.mxu0 0
        %1751 = vmatpush1.bf16.xpose.msra.mxu0 0
        %1752 = vmatprep.subr.bf16.mxu0 0
        %1753 = vmatpush1.bf16.xpose.msra.mxu0 0
        %1754 = vmatprep.subr.bf16.mxu0 0
        %1755 = vmatpush1.bf16.xpose.msra.mxu0 0
        %1756 = vmatprep.subr.bf16.mxu0 0
        %1757 = vmatpush1.bf16.xpose.msra.mxu0 0
        %1758 = vmatprep.subr.bf16.mxu0 0
        %1759 = vmatpush1.bf16.xpose.msra.mxu0 0
        %1760 = vmatprep.subr.bf16.mxu0 0
        %1761 = vmatpush1.bf16.xpose.msra.mxu0 0
        %1762 = vmatprep.subr.bf16.mxu0 0
        %1763 = vmatpush1.bf16.xpose.msra.mxu0 0
        %1764 = vmatprep.subr.bf16.mxu0 0
        %1765 = vmatpush1.bf16.xpose.msra.mxu0 0
        %1766 = vmatprep.subr.bf16.mxu0 0
        %1767 = vmatpush1.bf16.xpose.msra.mxu0 0
        %1768 = vmatprep.subr.bf16.mxu0 0
        %1769 = vmatpush1.bf16.xpose.msra.mxu0 0
        %1770 = vmatprep.subr.bf16.mxu0 0
        %1771 = vmatpush1.bf16.xpose.msra.mxu0 0
        %1772 = vmatprep.mubr.bf16.mxu0 0
        %1773 = vmatmul.mubr.bf16.gmra.mrb[0].mxu0 %v1473
        %v1774 = vpop.f32.mrb[0].mxu0
        %v1775 = vadd.f32 0.0, %v1774
        %v1776 = vpop.f32.mrb[0].mxu0
        %v1777 = vpop.f32.mrb[0].mxu0
        %v1778 = vadd.f32 0.0, %v1777
        %v1779 = vpop.f32.mrb[0].mxu0
        %1780 = vdwg.mxu0
        %v1781 = vsel %vm1560, %v1734, -inf
        %1782 = vmax.xlane.f32.xlu0 %v1781
        %v1783 = vpop.xlane.xlu0 %1782
        %v1784 = vsel %vm1560, %v1737, -inf
        %1785 = vmax.xlane.f32.xlu0 %v1784
        %v1786 = vpop.xlane.xlu0 %1785
        %v1787 = vsel %vm1560, %v1775, -inf
        %1788 = vmax.xlane.f32.xlu0 %v1787
        %v1789 = vpop.xlane.xlu0 %1788
        %v1790 = vsel %vm1560, %v1778, -inf
        %1791 = vmax.xlane.f32.xlu0 %v1790
        %v1792 = vpop.xlane.xlu0 %1791
        %v1793 = vsub.f32 %v1734, %v1783
        %v1794 = vsub.f32 %v1737, %v1786
        %v1795 = vsub.f32 %v1775, %v1789
        %v1796 = vsub.f32 %v1778, %v1792
        %v1797 = vmul.f32 %v1793, 1.442695
        %v1798 = vpow.pop %v1797
        %v1799 = vmul.f32 %v1794, 1.442695
        %v1800 = vpow.pop %v1799
        %v1801 = vmul.f32 %v1795, 1.442695
        %v1802 = vpow.pop %v1801
        %v1803 = vmul.f32 %v1796, 1.442695
        %v1804 = vpow.pop %v1803
        %v1805 = vsel %vm1560, %v1798, 0.0
        %1806 = vadd.xlane.f32.xlu0 %v1805
        %v1807 = vpop.xlane.xlu0 %1806
        %v1808 = vsel %vm1560, %v1800, 0.0
        %1809 = vadd.xlane.f32.xlu0 %v1808
        %v1810 = vpop.xlane.xlu0 %1809
        %v1811 = vsel %vm1560, %v1802, 0.0
        %1812 = vadd.xlane.f32.xlu0 %v1811
        %v1813 = vpop.xlane.xlu0 %1812
        %v1814 = vsel %vm1560, %v1804, 0.0
        %1815 = vadd.xlane.f32.xlu0 %v1814
        %v1816 = vpop.xlane.xlu0 %1815
        %v1817 = vrcp.pop %v1807
        %v1818 = vrcp.pop %v1810
        %v1819 = vrcp.pop %v1813
        %v1820 = vrcp.pop %v1816
        %v1821 = vmul.f32 %v1798, %v1817
        %v1822 = vmul.f32 %v1800, %v1818
        %v1823 = vmul.f32 %v1802, %v1819
        %v1824 = vmul.f32 %v1804, %v1820
        %v1825 = vpack.c.bf16 %v1822, %v1821
        %v1826 = vpack.c.bf16 %v1824, %v1823
        %v1828 = vsel %vm1560, %v1825, 0
        %1830 = vmatprep.subr.bf16.mxu0 0
        %1831 = vmatpush1.bf16.msra.mxu0 %v1471
        %1832 = vmatprep.subr.bf16.mxu0 0
        %1833 = vmatpush1.bf16.msra.mxu0 0
        %1834 = vmatprep.subr.bf16.mxu0 0
        %1835 = vmatpush1.bf16.msra.mxu0 0
        %1836 = vmatprep.subr.bf16.mxu0 0
        %1837 = vmatpush1.bf16.msra.mxu0 0
        %1838 = vmatprep.subr.bf16.mxu0 0
        %1839 = vmatpush1.bf16.msra.mxu0 0
        %1840 = vmatprep.subr.bf16.mxu0 0
        %1841 = vmatpush1.bf16.msra.mxu0 0
        %1842 = vmatprep.subr.bf16.mxu0 0
        %1843 = vmatpush1.bf16.msra.mxu0 0
        %1844 = vmatprep.subr.bf16.mxu0 0
        %1845 = vmatpush1.bf16.msra.mxu0 0
        %1846 = vmatprep.subr.bf16.mxu0 0
        %1847 = vmatpush1.bf16.msra.mxu0 0
        %1848 = vmatprep.subr.bf16.mxu0 0
        %1849 = vmatpush1.bf16.msra.mxu0 0
        %1850 = vmatprep.subr.bf16.mxu0 0
        %1851 = vmatpush1.bf16.msra.mxu0 0
        %1852 = vmatprep.subr.bf16.mxu0 0
        %1853 = vmatpush1.bf16.msra.mxu0 0
        %1854 = vmatprep.subr.bf16.mxu0 0
        %1855 = vmatpush1.bf16.msra.mxu0 0
        %1856 = vmatprep.subr.bf16.mxu0 0
        %1857 = vmatpush1.bf16.msra.mxu0 0
        %1858 = vmatprep.subr.bf16.mxu0 0
        %1859 = vmatpush1.bf16.msra.mxu0 0
        %1860 = vmatprep.subr.bf16.mxu0 0
        %1861 = vmatpush1.bf16.msra.mxu0 0
        %1862 = vmatprep.mubr.bf16.mxu0 0
        %1863 = vmatmul.mubr.bf16.gmra.mrb[0].mxu0 %v1828
        %v1864 = vpop.f32.mrb[0].mxu0
        %v1865 = vadd.f32 0.0, %v1864
        %v1866 = vpop.f32.mrb[0].mxu0
        %v1867 = vpop.f32.mrb[0].mxu0
        %v1868 = vadd.f32 0.0, %v1867
        %v1869 = vpop.f32.mrb[0].mxu0
        %1870 = vdwg.mxu0
        %v1872 = vsel %vm1560, %v1826, 0
        %1874 = vmatprep.subr.bf16.mxu0 0
        %1875 = vmatpush1.bf16.msra.mxu0 %v1477
        %1876 = vmatprep.subr.bf16.mxu0 0
        %1877 = vmatpush1.bf16.msra.mxu0 0
        %1878 = vmatprep.subr.bf16.mxu0 0
        %1879 = vmatpush1.bf16.msra.mxu0 0
        %1880 = vmatprep.subr.bf16.mxu0 0
        %1881 = vmatpush1.bf16.msra.mxu0 0
        %1882 = vmatprep.subr.bf16.mxu0 0
        %1883 = vmatpush1.bf16.msra.mxu0 0
        %1884 = vmatprep.subr.bf16.mxu0 0
        %1885 = vmatpush1.bf16.msra.mxu0 0
        %1886 = vmatprep.subr.bf16.mxu0 0
        %1887 = vmatpush1.bf16.msra.mxu0 0
        %1888 = vmatprep.subr.bf16.mxu0 0
        %1889 = vmatpush1.bf16.msra.mxu0 0
        %1890 = vmatprep.subr.bf16.mxu0 0
        %1891 = vmatpush1.bf16.msra.mxu0 0
        %1892 = vmatprep.subr.bf16.mxu0 0
        %1893 = vmatpush1.bf16.msra.mxu0 0
        %1894 = vmatprep.subr.bf16.mxu0 0
        %1895 = vmatpush1.bf16.msra.mxu0 0
        %1896 = vmatprep.subr.bf16.mxu0 0
        %1897 = vmatpush1.bf16.msra.mxu0 0
        %1898 = vmatprep.subr.bf16.mxu0 0
        %1899 = vmatpush1.bf16.msra.mxu0 0
        %1900 = vmatprep.subr.bf16.mxu0 0
        %1901 = vmatpush1.bf16.msra.mxu0 0
        %1902 = vmatprep.subr.bf16.mxu0 0
        %1903 = vmatpush1.bf16.msra.mxu0 0
        %1904 = vmatprep.subr.bf16.mxu0 0
        %1905 = vmatpush1.bf16.msra.mxu0 0
        %1906 = vmatprep.mubr.bf16.mxu0 0
        %1907 = vmatmul.mubr.bf16.gmra.mrb[0].mxu0 %v1872
        %v1908 = vpop.f32.mrb[0].mxu0
        %v1909 = vadd.f32 0.0, %v1908
        %v1910 = vpop.f32.mrb[0].mxu0
        %v1911 = vpop.f32.mrb[0].mxu0
        %v1912 = vadd.f32 0.0, %v1911
        %v1913 = vpop.f32.mrb[0].mxu0
        %1914 = vdwg.mxu0
        %v1915 = vpack.c.bf16 %v1868, %v1865
        %v1916 = vpack.c.bf16 %v1912, %v1909
        %1917 = vst [vmem:[#allocation3 + $0x8] sm:$0xff] %v1915
        %1918 = vst [vmem:[#allocation3 + $0x18] sm:$0xff] %v1916
        %v1919 = vld [vmem:[#allocation3] sm:$0xff]
        %v1920 = vld [vmem:[#allocation3 + $0x8] sm:$0xff]
        %v1921 = vld [vmem:[#allocation3 + $0x10] sm:$0xff]
        %v1922 = vld [vmem:[#allocation3 + $0x18] sm:$0xff]
        %v1923 = vld [vmem:[%s626] sm:$0xff]
        %v1924 = vld [vmem:[%s626 + $0x8] sm:$0xff]
        %v1925 = vld [vmem:[%s626 + $0x10] sm:$0xff]
        %v1926 = vld [vmem:[%s626 + $0x18] sm:$0xff]
        %v1927 = vld [vmem:[%s626 + $0x20] sm:$0xff]
        %v1928 = vld [vmem:[%s626 + $0x28] sm:$0xff]
        %v1929 = vld [vmem:[%s626 + $0x30] sm:$0xff]
        %v1930 = vld [vmem:[%s626 + $0x38] sm:$0xff]
        %v1931 = vld [vmem:[%s626 + $0x40] sm:$0xff]
        %v1932 = vld [vmem:[%s626 + $0x48] sm:$0xff]
        %v1933 = vld [vmem:[%s626 + $0x50] sm:$0xff]
        %v1934 = vld [vmem:[%s626 + $0x58] sm:$0xff]
        %v1935 = vld [vmem:[%s626 + $0x60] sm:$0xff]
        %v1936 = vld [vmem:[%s626 + $0x68] sm:$0xff]
        %v1937 = vld [vmem:[%s626 + $0x70] sm:$0xff]
        %v1938 = vld [vmem:[%s626 + $0x78] sm:$0xff]
        %v1939 = vld [vmem:[%s626 + $0x80] sm:$0xff]
        %v1940 = vld [vmem:[%s626 + $0x88] sm:$0xff]
        %v1941 = vld [vmem:[%s626 + $0x90] sm:$0xff]
        %v1942 = vld [vmem:[%s626 + $0x98] sm:$0xff]
        %v1943 = vld [vmem:[%s626 + $0xa0] sm:$0xff]
        %v1944 = vld [vmem:[%s626 + $0xa8] sm:$0xff]
        %v1945 = vld [vmem:[%s626 + $0xb0] sm:$0xff]
        %v1946 = vld [vmem:[%s626 + $0xb8] sm:$0xff]
        %v1947 = vld [vmem:[%s626 + $0xc0] sm:$0xff]
        %v1948 = vld [vmem:[%s626 + $0xc8] sm:$0xff]
        %v1949 = vld [vmem:[%s626 + $0xd0] sm:$0xff]
        %v1950 = vld [vmem:[%s626 + $0xd8] sm:$0xff]
        %v1951 = vld [vmem:[%s626 + $0xe0] sm:$0xff]
        %v1952 = vld [vmem:[%s626 + $0xe8] sm:$0xff]
        %v1953 = vld [vmem:[%s626 + $0xf0] sm:$0xff]
        %v1954 = vld [vmem:[%s626 + $0xf8] sm:$0xff]
        %v1955 = vld [vmem:[%s630] sm:$0x3]
        %v1957 = vlaneseq
        %v1958 = vshrl.u32 %v1957, 7
        %v1959 = vsub.s32 0, %v1958
        %v1960 = vrot.slane %v1955, %v1959
        %v1961 = vlaneseq
        %v1962 = vshrl.u32 %v1961, 7
        %v1963 = vsub.s32 1, %v1962
        %v1964 = vrot.slane %v1955, %v1963
        %v1999 = vunpack.c.l.b16 %v1923
        %v2000 = vunpack.c.h.b16 %v1923
        %v2001 = vunpack.c.l.b16 %v1924
        %v2002 = vunpack.c.h.b16 %v1924
        %v2003 = vunpack.c.l.b16 %v1925
        %v2004 = vunpack.c.h.b16 %v1925
        %v2005 = vunpack.c.l.b16 %v1926
        %v2006 = vunpack.c.h.b16 %v1926
        %v2007 = vunpack.c.l.b16 %v1927
        %v2008 = vunpack.c.h.b16 %v1927
        %v2009 = vunpack.c.l.b16 %v1928
        %v2010 = vunpack.c.h.b16 %v1928
        %v2011 = vunpack.c.l.b16 %v1929
        %v2012 = vunpack.c.h.b16 %v1929
        %v2013 = vunpack.c.l.b16 %v1930
        %v2014 = vunpack.c.h.b16 %v1930
        %v2015 = vunpack.c.l.b16 %v1931
        %v2016 = vunpack.c.h.b16 %v1931
        %v2017 = vunpack.c.l.b16 %v1932
        %v2018 = vunpack.c.h.b16 %v1932
        %v2019 = vunpack.c.l.b16 %v1933
        %v2020 = vunpack.c.h.b16 %v1933
        %v2021 = vunpack.c.l.b16 %v1934
        %v2022 = vunpack.c.h.b16 %v1934
        %v2023 = vunpack.c.l.b16 %v1935
        %v2024 = vunpack.c.h.b16 %v1935
        %v2025 = vunpack.c.l.b16 %v1936
        %v2026 = vunpack.c.h.b16 %v1936
        %v2027 = vunpack.c.l.b16 %v1937
        %v2028 = vunpack.c.h.b16 %v1937
        %v2029 = vunpack.c.l.b16 %v1938
        %v2030 = vunpack.c.h.b16 %v1938
        %v2031 = vunpack.c.l.b16 %v1939
        %v2032 = vunpack.c.h.b16 %v1939
        %v2033 = vunpack.c.l.b16 %v1940
        %v2034 = vunpack.c.h.b16 %v1940
        %v2035 = vunpack.c.l.b16 %v1941
        %v2036 = vunpack.c.h.b16 %v1941
        %v2037 = vunpack.c.l.b16 %v1942
        %v2038 = vunpack.c.h.b16 %v1942
        %v2039 = vunpack.c.l.b16 %v1943
        %v2040 = vunpack.c.h.b16 %v1943
        %v2041 = vunpack.c.l.b16 %v1944
        %v2042 = vunpack.c.h.b16 %v1944
        %v2043 = vunpack.c.l.b16 %v1945
        %v2044 = vunpack.c.h.b16 %v1945
        %v2045 = vunpack.c.l.b16 %v1946
        %v2046 = vunpack.c.h.b16 %v1946
        %v2047 = vunpack.c.l.b16 %v1947
        %v2048 = vunpack.c.h.b16 %v1947
        %v2049 = vunpack.c.l.b16 %v1948
        %v2050 = vunpack.c.h.b16 %v1948
        %v2051 = vunpack.c.l.b16 %v1949
        %v2052 = vunpack.c.h.b16 %v1949
        %v2053 = vunpack.c.l.b16 %v1950
        %v2054 = vunpack.c.h.b16 %v1950
        %v2055 = vunpack.c.l.b16 %v1951
        %v2056 = vunpack.c.h.b16 %v1951
        %v2057 = vunpack.c.l.b16 %v1952
        %v2058 = vunpack.c.h.b16 %v1952
        %v2059 = vunpack.c.l.b16 %v1953
        %v2060 = vunpack.c.h.b16 %v1953
        %v2061 = vunpack.c.l.b16 %v1954
        %v2062 = vunpack.c.h.b16 %v1954
        %v2063 = vpack.c.b16 %v2001, %v1999
        %v2064 = vpack.c.b16 %v2002, %v2000
        %v2065 = vpack.c.b16 %v2005, %v2003
        %v2066 = vpack.c.b16 %v2006, %v2004
        %v2067 = vpack.c.b16 %v2009, %v2007
        %v2068 = vpack.c.b16 %v2010, %v2008
        %v2069 = vpack.c.b16 %v2013, %v2011
        %v2070 = vpack.c.b16 %v2014, %v2012
        %v2071 = vpack.c.b16 %v2017, %v2015
        %v2072 = vpack.c.b16 %v2018, %v2016
        %v2073 = vpack.c.b16 %v2021, %v2019
        %v2074 = vpack.c.b16 %v2022, %v2020
        %v2075 = vpack.c.b16 %v2025, %v2023
        %v2076 = vpack.c.b16 %v2026, %v2024
        %v2077 = vpack.c.b16 %v2029, %v2027
        %v2078 = vpack.c.b16 %v2030, %v2028
        %v2079 = vpack.c.b16 %v2033, %v2031
        %v2080 = vpack.c.b16 %v2034, %v2032
        %v2081 = vpack.c.b16 %v2037, %v2035
        %v2082 = vpack.c.b16 %v2038, %v2036
        %v2083 = vpack.c.b16 %v2041, %v2039
        %v2084 = vpack.c.b16 %v2042, %v2040
        %v2085 = vpack.c.b16 %v2045, %v2043
        %v2086 = vpack.c.b16 %v2046, %v2044
        %v2087 = vpack.c.b16 %v2049, %v2047
        %v2088 = vpack.c.b16 %v2050, %v2048
        %v2089 = vpack.c.b16 %v2053, %v2051
        %v2090 = vpack.c.b16 %v2054, %v2052
        %v2091 = vpack.c.b16 %v2057, %v2055
        %v2092 = vpack.c.b16 %v2058, %v2056
        %v2093 = vpack.c.b16 %v2061, %v2059
        %v2094 = vpack.c.b16 %v2062, %v2060
        %2127 = vmatprep.subr.bf16.mxu0 %v2064
        %2128 = vmatpush1.bf16.msra.mxu0 %v2063
        %2129 = vmatprep.subr.bf16.mxu0 %v2066
        %2130 = vmatpush1.bf16.msra.mxu0 %v2065
        %2131 = vmatprep.subr.bf16.mxu0 %v2068
        %2132 = vmatpush1.bf16.msra.mxu0 %v2067
        %2133 = vmatprep.subr.bf16.mxu0 %v2070
        %2134 = vmatpush1.bf16.msra.mxu0 %v2069
        %2135 = vmatprep.subr.bf16.mxu0 %v2072
        %2136 = vmatpush1.bf16.msra.mxu0 %v2071
        %2137 = vmatprep.subr.bf16.mxu0 %v2074
        %2138 = vmatpush1.bf16.msra.mxu0 %v2073
        %2139 = vmatprep.subr.bf16.mxu0 %v2076
        %2140 = vmatpush1.bf16.msra.mxu0 %v2075
        %2141 = vmatprep.subr.bf16.mxu0 %v2078
        %2142 = vmatpush1.bf16.msra.mxu0 %v2077
        %2143 = vmatprep.subr.bf16.mxu0 %v2080
        %2144 = vmatpush1.bf16.msra.mxu0 %v2079
        %2145 = vmatprep.subr.bf16.mxu0 %v2082
        %2146 = vmatpush1.bf16.msra.mxu0 %v2081
        %2147 = vmatprep.subr.bf16.mxu0 %v2084
        %2148 = vmatpush1.bf16.msra.mxu0 %v2083
        %2149 = vmatprep.subr.bf16.mxu0 %v2086
        %2150 = vmatpush1.bf16.msra.mxu0 %v2085
        %2151 = vmatprep.subr.bf16.mxu0 %v2088
        %2152 = vmatpush1.bf16.msra.mxu0 %v2087
        %2153 = vmatprep.subr.bf16.mxu0 %v2090
        %2154 = vmatpush1.bf16.msra.mxu0 %v2089
        %2155 = vmatprep.subr.bf16.mxu0 %v2092
        %2156 = vmatpush1.bf16.msra.mxu0 %v2091
        %2157 = vmatprep.subr.bf16.mxu0 %v2094
        %2158 = vmatpush1.bf16.msra.mxu0 %v2093
        %2159 = vmatprep.mubr.bf16.mxu0 %v1920
        %2160 = vmatmul.mubr.bf16.gmra.mrb[0].mxu0 %v1919
        %v2161 = vpop.f32.mrb[0].mxu0
        %v2162 = vadd.f32 %v1960, %v2161
        %v2163 = vpop.f32.mrb[0].mxu0
        %v2164 = vadd.f32 %v1964, %v2163
        %v2165 = vpop.f32.mrb[0].mxu0
        %v2166 = vadd.f32 %v1960, %v2165
        %v2167 = vpop.f32.mrb[0].mxu0
        %v2168 = vadd.f32 %v1964, %v2167
        %2169 = vmatprep.mubr.bf16.mxu0 %v1922
        %2170 = vmatmul.mubr.bf16.gmra.mrb[0].mxu0 %v1921
        %v2171 = vpop.f32.mrb[0].mxu0
        %v2172 = vadd.f32 %v1960, %v2171
        %v2173 = vpop.f32.mrb[0].mxu0
        %v2174 = vadd.f32 %v1964, %v2173
        %v2175 = vpop.f32.mrb[0].mxu0
        %v2176 = vadd.f32 %v1960, %v2175
        %v2177 = vpop.f32.mrb[0].mxu0
        %v2178 = vadd.f32 %v1964, %v2177
        %2179 = vdwg.mxu0
        %v2180 = vadd.f32 %v687, %v2162
        %v2181 = vadd.f32 %v688, %v2164
        %v2182 = vadd.f32 %v689, %v2166
        %v2183 = vadd.f32 %v690, %v2168
        %v2184 = vadd.f32 %v691, %v2172
        %v2185 = vadd.f32 %v692, %v2174
        %v2186 = vadd.f32 %v693, %v2176
        %v2187 = vadd.f32 %v694, %v2178
        %v2188 = vld [vmem:[%s634] sm:$0x3]
        %v2189 = vld [vmem:[%s638] sm:$0x3]
        %v2190 = vadd.f32 %v2180, %v2181
        %2191 = vadd.xlane.f32.xlu0 %v2190
        %v2192 = vpop.xlane.xlu0 %2191
        %v2193 = vadd.f32 %v2182, %v2183
        %2194 = vadd.xlane.f32.xlu0 %v2193
        %v2195 = vpop.xlane.xlu0 %2194
        %v2196 = vadd.f32 %v2184, %v2185
        %2197 = vadd.xlane.f32.xlu0 %v2196
        %v2198 = vpop.xlane.xlu0 %2197
        %v2199 = vadd.f32 %v2186, %v2187
        %2200 = vadd.xlane.f32.xlu0 %v2199
        %v2201 = vpop.xlane.xlu0 %2200
        %v2202 = vrcp.pop 256.0
        %v2203 = vmul.f32 %v2192, %v2202
        %v2204 = vmul.f32 %v2195, %v2202
        %v2205 = vmul.f32 %v2198, %v2202
        %v2206 = vmul.f32 %v2201, %v2202
        %v2207 = vmul.f32 %v2180, %v2180
        %v2208 = vmul.f32 %v2181, %v2181
        %v2209 = vmul.f32 %v2182, %v2182
        %v2210 = vmul.f32 %v2183, %v2183
        %v2211 = vmul.f32 %v2184, %v2184
        %v2212 = vmul.f32 %v2185, %v2185
        %v2213 = vmul.f32 %v2186, %v2186
        %v2214 = vmul.f32 %v2187, %v2187
        %v2215 = vadd.f32 %v2207, %v2208
        %2216 = vadd.xlane.f32.xlu0 %v2215
        %v2217 = vpop.xlane.xlu0 %2216
        %v2218 = vadd.f32 %v2209, %v2210
        %2219 = vadd.xlane.f32.xlu0 %v2218
        %v2220 = vpop.xlane.xlu0 %2219
        %v2221 = vadd.f32 %v2211, %v2212
        %2222 = vadd.xlane.f32.xlu0 %v2221
        %v2223 = vpop.xlane.xlu0 %2222
        %v2224 = vadd.f32 %v2213, %v2214
        %2225 = vadd.xlane.f32.xlu0 %v2224
        %v2226 = vpop.xlane.xlu0 %2225
        %v2227 = vmul.f32 %v2217, %v2202
        %v2228 = vmul.f32 %v2220, %v2202
        %v2229 = vmul.f32 %v2223, %v2202
        %v2230 = vmul.f32 %v2226, %v2202
        %v2231 = vmul.f32 %v2203, %v2203
        %v2232 = vmul.f32 %v2204, %v2204
        %v2233 = vmul.f32 %v2205, %v2205
        %v2234 = vmul.f32 %v2206, %v2206
        %v2235 = vsub.f32 %v2227, %v2231
        %v2236 = vsub.f32 %v2228, %v2232
        %v2237 = vsub.f32 %v2229, %v2233
        %v2238 = vsub.f32 %v2230, %v2234
        %v2239 = vmax.f32 %v2235, 0.0
        %v2240 = vmax.f32 %v2236, 0.0
        %v2241 = vmax.f32 %v2237, 0.0
        %v2242 = vmax.f32 %v2238, 0.0
        %v2243 = vsub.f32 %v2180, %v2203
        %v2244 = vsub.f32 %v2181, %v2203
        %v2245 = vsub.f32 %v2182, %v2204
        %v2246 = vsub.f32 %v2183, %v2204
        %v2247 = vsub.f32 %v2184, %v2205
        %v2248 = vsub.f32 %v2185, %v2205
        %v2249 = vsub.f32 %v2186, %v2206
        %v2250 = vsub.f32 %v2187, %v2206
        %v2251 = vadd.f32 %v2239, 1e-05
        %v2252 = vadd.f32 %v2240, 1e-05
        %v2253 = vadd.f32 %v2241, 1e-05
        %v2254 = vadd.f32 %v2242, 1e-05
        %v2255 = vrsqrt.pop %v2251
        %v2256 = vrsqrt.pop %v2252
        %v2257 = vrsqrt.pop %v2253
        %v2258 = vrsqrt.pop %v2254
        %v2259 = vmul.f32 %v2243, %v2255
        %v2260 = vmul.f32 %v2244, %v2255
        %v2261 = vmul.f32 %v2245, %v2256
        %v2262 = vmul.f32 %v2246, %v2256
        %v2263 = vmul.f32 %v2247, %v2257
        %v2264 = vmul.f32 %v2248, %v2257
        %v2265 = vmul.f32 %v2249, %v2258
        %v2266 = vmul.f32 %v2250, %v2258
        %v2268 = vlaneseq
        %v2269 = vshrl.u32 %v2268, 7
        %v2270 = vsub.s32 0, %v2269
        %v2271 = vrot.slane %v2188, %v2270
        %v2272 = vlaneseq
        %v2273 = vshrl.u32 %v2272, 7
        %v2274 = vsub.s32 1, %v2273
        %v2275 = vrot.slane %v2188, %v2274
        %v2278 = vmul.f32 %v2259, %v2271
        %v2279 = vmul.f32 %v2260, %v2275
        %v2280 = vmul.f32 %v2261, %v2271
        %v2281 = vmul.f32 %v2262, %v2275
        %v2282 = vmul.f32 %v2263, %v2271
        %v2283 = vmul.f32 %v2264, %v2275
        %v2284 = vmul.f32 %v2265, %v2271
        %v2285 = vmul.f32 %v2266, %v2275
        %v2287 = vlaneseq
        %v2288 = vshrl.u32 %v2287, 7
        %v2289 = vsub.s32 0, %v2288
        %v2290 = vrot.slane %v2189, %v2289
        %v2291 = vlaneseq
        %v2292 = vshrl.u32 %v2291, 7
        %v2293 = vsub.s32 1, %v2292
        %v2294 = vrot.slane %v2189, %v2293
        %v2297 = vadd.f32 %v2278, %v2290
        %v2298 = vadd.f32 %v2279, %v2294
        %v2299 = vadd.f32 %v2280, %v2290
        %v2300 = vadd.f32 %v2281, %v2294
        %v2301 = vadd.f32 %v2282, %v2290
        %v2302 = vadd.f32 %v2283, %v2294
        %v2303 = vadd.f32 %v2284, %v2290
        %v2304 = vadd.f32 %v2285, %v2294
        %v2305 = vpack.c.bf16 %v2299, %v2297
        %v2306 = vpack.c.bf16 %v2300, %v2298
        %v2307 = vpack.c.bf16 %v2303, %v2301
        %v2308 = vpack.c.bf16 %v2304, %v2302
        %v2309 = vld [vmem:[%s643] sm:$0xff]
        %v2310 = vld [vmem:[%s643 + $0x8] sm:$0xff]
        %v2311 = vld [vmem:[%s643 + $0x10] sm:$0xff]
        %v2312 = vld [vmem:[%s643 + $0x18] sm:$0xff]
        %v2313 = vld [vmem:[%s643 + $0x20] sm:$0xff]
        %v2314 = vld [vmem:[%s643 + $0x28] sm:$0xff]
        %v2315 = vld [vmem:[%s643 + $0x30] sm:$0xff]
        %v2316 = vld [vmem:[%s643 + $0x38] sm:$0xff]
        %v2317 = vld [vmem:[%s643 + $0x40] sm:$0xff]
        %v2318 = vld [vmem:[%s643 + $0x48] sm:$0xff]
        %v2319 = vld [vmem:[%s643 + $0x50] sm:$0xff]
        %v2320 = vld [vmem:[%s643 + $0x58] sm:$0xff]
        %v2321 = vld [vmem:[%s643 + $0x60] sm:$0xff]
        %v2322 = vld [vmem:[%s643 + $0x68] sm:$0xff]
        %v2323 = vld [vmem:[%s643 + $0x70] sm:$0xff]
        %v2324 = vld [vmem:[%s643 + $0x78] sm:$0xff]
        %v2325 = vld [vmem:[%s643 + $0x80] sm:$0xff]
        %v2326 = vld [vmem:[%s643 + $0x88] sm:$0xff]
        %v2327 = vld [vmem:[%s643 + $0x90] sm:$0xff]
        %v2328 = vld [vmem:[%s643 + $0x98] sm:$0xff]
        %v2329 = vld [vmem:[%s643 + $0xa0] sm:$0xff]
        %v2330 = vld [vmem:[%s643 + $0xa8] sm:$0xff]
        %v2331 = vld [vmem:[%s643 + $0xb0] sm:$0xff]
        %v2332 = vld [vmem:[%s643 + $0xb8] sm:$0xff]
        %v2333 = vld [vmem:[%s643 + $0xc0] sm:$0xff]
        %v2334 = vld [vmem:[%s643 + $0xc8] sm:$0xff]
        %v2335 = vld [vmem:[%s643 + $0xd0] sm:$0xff]
        %v2336 = vld [vmem:[%s643 + $0xd8] sm:$0xff]
        %v2337 = vld [vmem:[%s643 + $0xe0] sm:$0xff]
        %v2338 = vld [vmem:[%s643 + $0xe8] sm:$0xff]
        %v2339 = vld [vmem:[%s643 + $0xf0] sm:$0xff]
        %v2340 = vld [vmem:[%s643 + $0xf8] sm:$0xff]
        %v2341 = vld [vmem:[%s643 + $0x100] sm:$0xff]
        %v2342 = vld [vmem:[%s643 + $0x108] sm:$0xff]
        %v2343 = vld [vmem:[%s643 + $0x110] sm:$0xff]
        %v2344 = vld [vmem:[%s643 + $0x118] sm:$0xff]
        %v2345 = vld [vmem:[%s643 + $0x120] sm:$0xff]
        %v2346 = vld [vmem:[%s643 + $0x128] sm:$0xff]
        %v2347 = vld [vmem:[%s643 + $0x130] sm:$0xff]
        %v2348 = vld [vmem:[%s643 + $0x138] sm:$0xff]
        %v2349 = vld [vmem:[%s643 + $0x140] sm:$0xff]
        %v2350 = vld [vmem:[%s643 + $0x148] sm:$0xff]
        %v2351 = vld [vmem:[%s643 + $0x150] sm:$0xff]
        %v2352 = vld [vmem:[%s643 + $0x158] sm:$0xff]
        %v2353 = vld [vmem:[%s643 + $0x160] sm:$0xff]
        %v2354 = vld [vmem:[%s643 + $0x168] sm:$0xff]
        %v2355 = vld [vmem:[%s643 + $0x170] sm:$0xff]
        %v2356 = vld [vmem:[%s643 + $0x178] sm:$0xff]
        %v2357 = vld [vmem:[%s643 + $0x180] sm:$0xff]
        %v2358 = vld [vmem:[%s643 + $0x188] sm:$0xff]
        %v2359 = vld [vmem:[%s643 + $0x190] sm:$0xff]
        %v2360 = vld [vmem:[%s643 + $0x198] sm:$0xff]
        %v2361 = vld [vmem:[%s643 + $0x1a0] sm:$0xff]
        %v2362 = vld [vmem:[%s643 + $0x1a8] sm:$0xff]
        %v2363 = vld [vmem:[%s643 + $0x1b0] sm:$0xff]
        %v2364 = vld [vmem:[%s643 + $0x1b8] sm:$0xff]
        %v2365 = vld [vmem:[%s643 + $0x1c0] sm:$0xff]
        %v2366 = vld [vmem:[%s643 + $0x1c8] sm:$0xff]
        %v2367 = vld [vmem:[%s643 + $0x1d0] sm:$0xff]
        %v2368 = vld [vmem:[%s643 + $0x1d8] sm:$0xff]
        %v2369 = vld [vmem:[%s643 + $0x1e0] sm:$0xff]
        %v2370 = vld [vmem:[%s643 + $0x1e8] sm:$0xff]
        %v2371 = vld [vmem:[%s643 + $0x1f0] sm:$0xff]
        %v2372 = vld [vmem:[%s643 + $0x1f8] sm:$0xff]
        %v2373 = vld [vmem:[%s647] sm:$0xf]
        %v2375 = vlaneseq
        %v2376 = vshrl.u32 %v2375, 7
        %v2377 = vsub.s32 0, %v2376
        %v2378 = vrot.slane %v2373, %v2377
        %v2379 = vlaneseq
        %v2380 = vshrl.u32 %v2379, 7
        %v2381 = vsub.s32 1, %v2380
        %v2382 = vrot.slane %v2373, %v2381
        %v2383 = vlaneseq
        %v2384 = vshrl.u32 %v2383, 7
        %v2385 = vsub.s32 2, %v2384
        %v2386 = vrot.slane %v2373, %v2385
        %v2387 = vlaneseq
        %v2388 = vshrl.u32 %v2387, 7
        %v2389 = vsub.s32 3, %v2388
        %v2390 = vrot.slane %v2373, %v2389
        %v2459 = vunpack.c.l.b16 %v2309
        %v2460 = vunpack.c.h.b16 %v2309
        %v2461 = vunpack.c.l.b16 %v2310
        %v2462 = vunpack.c.h.b16 %v2310
        %v2463 = vunpack.c.l.b16 %v2311
        %v2464 = vunpack.c.h.b16 %v2311
        %v2465 = vunpack.c.l.b16 %v2312
        %v2466 = vunpack.c.h.b16 %v2312
        %v2467 = vunpack.c.l.b16 %v2313
        %v2468 = vunpack.c.h.b16 %v2313
        %v2469 = vunpack.c.l.b16 %v2314
        %v2470 = vunpack.c.h.b16 %v2314
        %v2471 = vunpack.c.l.b16 %v2315
        %v2472 = vunpack.c.h.b16 %v2315
        %v2473 = vunpack.c.l.b16 %v2316
        %v2474 = vunpack.c.h.b16 %v2316
        %v2475 = vunpack.c.l.b16 %v2317
        %v2476 = vunpack.c.h.b16 %v2317
        %v2477 = vunpack.c.l.b16 %v2318
        %v2478 = vunpack.c.h.b16 %v2318
        %v2479 = vunpack.c.l.b16 %v2319
        %v2480 = vunpack.c.h.b16 %v2319
        %v2481 = vunpack.c.l.b16 %v2320
        %v2482 = vunpack.c.h.b16 %v2320
        %v2483 = vunpack.c.l.b16 %v2321
        %v2484 = vunpack.c.h.b16 %v2321
        %v2485 = vunpack.c.l.b16 %v2322
        %v2486 = vunpack.c.h.b16 %v2322
        %v2487 = vunpack.c.l.b16 %v2323
        %v2488 = vunpack.c.h.b16 %v2323
        %v2489 = vunpack.c.l.b16 %v2324
        %v2490 = vunpack.c.h.b16 %v2324
        %v2491 = vunpack.c.l.b16 %v2325
        %v2492 = vunpack.c.h.b16 %v2325
        %v2493 = vunpack.c.l.b16 %v2326
        %v2494 = vunpack.c.h.b16 %v2326
        %v2495 = vunpack.c.l.b16 %v2327
        %v2496 = vunpack.c.h.b16 %v2327
        %v2497 = vunpack.c.l.b16 %v2328
        %v2498 = vunpack.c.h.b16 %v2328
        %v2499 = vunpack.c.l.b16 %v2329
        %v2500 = vunpack.c.h.b16 %v2329
        %v2501 = vunpack.c.l.b16 %v2330
        %v2502 = vunpack.c.h.b16 %v2330
        %v2503 = vunpack.c.l.b16 %v2331
        %v2504 = vunpack.c.h.b16 %v2331
        %v2505 = vunpack.c.l.b16 %v2332
        %v2506 = vunpack.c.h.b16 %v2332
        %v2507 = vunpack.c.l.b16 %v2333
        %v2508 = vunpack.c.h.b16 %v2333
        %v2509 = vunpack.c.l.b16 %v2334
        %v2510 = vunpack.c.h.b16 %v2334
        %v2511 = vunpack.c.l.b16 %v2335
        %v2512 = vunpack.c.h.b16 %v2335
        %v2513 = vunpack.c.l.b16 %v2336
        %v2514 = vunpack.c.h.b16 %v2336
        %v2515 = vunpack.c.l.b16 %v2337
        %v2516 = vunpack.c.h.b16 %v2337
        %v2517 = vunpack.c.l.b16 %v2338
        %v2518 = vunpack.c.h.b16 %v2338
        %v2519 = vunpack.c.l.b16 %v2339
        %v2520 = vunpack.c.h.b16 %v2339
        %v2521 = vunpack.c.l.b16 %v2340
        %v2522 = vunpack.c.h.b16 %v2340
        %v2523 = vunpack.c.l.b16 %v2341
        %v2524 = vunpack.c.h.b16 %v2341
        %v2525 = vunpack.c.l.b16 %v2342
        %v2526 = vunpack.c.h.b16 %v2342
        %v2527 = vunpack.c.l.b16 %v2343
        %v2528 = vunpack.c.h.b16 %v2343
        %v2529 = vunpack.c.l.b16 %v2344
        %v2530 = vunpack.c.h.b16 %v2344
        %v2531 = vunpack.c.l.b16 %v2345
        %v2532 = vunpack.c.h.b16 %v2345
        %v2533 = vunpack.c.l.b16 %v2346
        %v2534 = vunpack.c.h.b16 %v2346
        %v2535 = vunpack.c.l.b16 %v2347
        %v2536 = vunpack.c.h.b16 %v2347
        %v2537 = vunpack.c.l.b16 %v2348
        %v2538 = vunpack.c.h.b16 %v2348
        %v2539 = vunpack.c.l.b16 %v2349
        %v2540 = vunpack.c.h.b16 %v2349
        %v2541 = vunpack.c.l.b16 %v2350
        %v2542 = vunpack.c.h.b16 %v2350
        %v2543 = vunpack.c.l.b16 %v2351
        %v2544 = vunpack.c.h.b16 %v2351
        %v2545 = vunpack.c.l.b16 %v2352
        %v2546 = vunpack.c.h.b16 %v2352
        %v2547 = vunpack.c.l.b16 %v2353
        %v2548 = vunpack.c.h.b16 %v2353
        %v2549 = vunpack.c.l.b16 %v2354
        %v2550 = vunpack.c.h.b16 %v2354
        %v2551 = vunpack.c.l.b16 %v2355
        %v2552 = vunpack.c.h.b16 %v2355
        %v2553 = vunpack.c.l.b16 %v2356
        %v2554 = vunpack.c.h.b16 %v2356
        %v2555 = vunpack.c.l.b16 %v2357
        %v2556 = vunpack.c.h.b16 %v2357
        %v2557 = vunpack.c.l.b16 %v2358
        %v2558 = vunpack.c.h.b16 %v2358
        %v2559 = vunpack.c.l.b16 %v2359
        %v2560 = vunpack.c.h.b16 %v2359
        %v2561 = vunpack.c.l.b16 %v2360
        %v2562 = vunpack.c.h.b16 %v2360
        %v2563 = vunpack.c.l.b16 %v2361
        %v2564 = vunpack.c.h.b16 %v2361
        %v2565 = vunpack.c.l.b16 %v2362
        %v2566 = vunpack.c.h.b16 %v2362
        %v2567 = vunpack.c.l.b16 %v2363
        %v2568 = vunpack.c.h.b16 %v2363
        %v2569 = vunpack.c.l.b16 %v2364
        %v2570 = vunpack.c.h.b16 %v2364
        %v2571 = vunpack.c.l.b16 %v2365
        %v2572 = vunpack.c.h.b16 %v2365
        %v2573 = vunpack.c.l.b16 %v2366
        %v2574 = vunpack.c.h.b16 %v2366
        %v2575 = vunpack.c.l.b16 %v2367
        %v2576 = vunpack.c.h.b16 %v2367
        %v2577 = vunpack.c.l.b16 %v2368
        %v2578 = vunpack.c.h.b16 %v2368
        %v2579 = vunpack.c.l.b16 %v2369
        %v2580 = vunpack.c.h.b16 %v2369
        %v2581 = vunpack.c.l.b16 %v2370
        %v2582 = vunpack.c.h.b16 %v2370
        %v2583 = vunpack.c.l.b16 %v2371
        %v2584 = vunpack.c.h.b16 %v2371
        %v2585 = vunpack.c.l.b16 %v2372
        %v2586 = vunpack.c.h.b16 %v2372
        %v2587 = vpack.c.b16 %v2463, %v2459
        %v2588 = vpack.c.b16 %v2464, %v2460
        %v2589 = vpack.c.b16 %v2465, %v2461
        %v2590 = vpack.c.b16 %v2466, %v2462
        %v2591 = vpack.c.b16 %v2471, %v2467
        %v2592 = vpack.c.b16 %v2472, %v2468
        %v2593 = vpack.c.b16 %v2473, %v2469
        %v2594 = vpack.c.b16 %v2474, %v2470
        %v2595 = vpack.c.b16 %v2479, %v2475
        %v2596 = vpack.c.b16 %v2480, %v2476
        %v2597 = vpack.c.b16 %v2481, %v2477
        %v2598 = vpack.c.b16 %v2482, %v2478
        %v2599 = vpack.c.b16 %v2487, %v2483
        %v2600 = vpack.c.b16 %v2488, %v2484
        %v2601 = vpack.c.b16 %v2489, %v2485
        %v2602 = vpack.c.b16 %v2490, %v2486
        %v2603 = vpack.c.b16 %v2495, %v2491
        %v2604 = vpack.c.b16 %v2496, %v2492
        %v2605 = vpack.c.b16 %v2497, %v2493
        %v2606 = vpack.c.b16 %v2498, %v2494
        %v2607 = vpack.c.b16 %v2503, %v2499
        %v2608 = vpack.c.b16 %v2504, %v2500
        %v2609 = vpack.c.b16 %v2505, %v2501
        %v2610 = vpack.c.b16 %v2506, %v2502
        %v2611 = vpack.c.b16 %v2511, %v2507
        %v2612 = vpack.c.b16 %v2512, %v2508
        %v2613 = vpack.c.b16 %v2513, %v2509
        %v2614 = vpack.c.b16 %v2514, %v2510
        %v2615 = vpack.c.b16 %v2519, %v2515
        %v2616 = vpack.c.b16 %v2520, %v2516
        %v2617 = vpack.c.b16 %v2521, %v2517
        %v2618 = vpack.c.b16 %v2522, %v2518
        %v2619 = vpack.c.b16 %v2527, %v2523
        %v2620 = vpack.c.b16 %v2528, %v2524
        %v2621 = vpack.c.b16 %v2529, %v2525
        %v2622 = vpack.c.b16 %v2530, %v2526
        %v2623 = vpack.c.b16 %v2535, %v2531
        %v2624 = vpack.c.b16 %v2536, %v2532
        %v2625 = vpack.c.b16 %v2537, %v2533
        %v2626 = vpack.c.b16 %v2538, %v2534
        %v2627 = vpack.c.b16 %v2543, %v2539
        %v2628 = vpack.c.b16 %v2544, %v2540
        %v2629 = vpack.c.b16 %v2545, %v2541
        %v2630 = vpack.c.b16 %v2546, %v2542
        %v2631 = vpack.c.b16 %v2551, %v2547
        %v2632 = vpack.c.b16 %v2552, %v2548
        %v2633 = vpack.c.b16 %v2553, %v2549
        %v2634 = vpack.c.b16 %v2554, %v2550
        %v2635 = vpack.c.b16 %v2559, %v2555
        %v2636 = vpack.c.b16 %v2560, %v2556
        %v2637 = vpack.c.b16 %v2561, %v2557
        %v2638 = vpack.c.b16 %v2562, %v2558
        %v2639 = vpack.c.b16 %v2567, %v2563
        %v2640 = vpack.c.b16 %v2568, %v2564
        %v2641 = vpack.c.b16 %v2569, %v2565
        %v2642 = vpack.c.b16 %v2570, %v2566
        %v2643 = vpack.c.b16 %v2575, %v2571
        %v2644 = vpack.c.b16 %v2576, %v2572
        %v2645 = vpack.c.b16 %v2577, %v2573
        %v2646 = vpack.c.b16 %v2578, %v2574
        %v2647 = vpack.c.b16 %v2583, %v2579
        %v2648 = vpack.c.b16 %v2584, %v2580
        %v2649 = vpack.c.b16 %v2585, %v2581
        %v2650 = vpack.c.b16 %v2586, %v2582
        %2715 = vmatprep.subr.bf16.mxu0 %v2588
        %2716 = vmatpush1.bf16.msra.mxu0 %v2587
        %2717 = vmatprep.subr.bf16.mxu0 %v2592
        %2718 = vmatpush1.bf16.msra.mxu0 %v2591
        %2719 = vmatprep.subr.bf16.mxu0 %v2596
        %2720 = vmatpush1.bf16.msra.mxu0 %v2595
        %2721 = vmatprep.subr.bf16.mxu0 %v2600
        %2722 = vmatpush1.bf16.msra.mxu0 %v2599
        %2723 = vmatprep.subr.bf16.mxu0 %v2604
        %2724 = vmatpush1.bf16.msra.mxu0 %v2603
        %2725 = vmatprep.subr.bf16.mxu0 %v2608
        %2726 = vmatpush1.bf16.msra.mxu0 %v2607
        %2727 = vmatprep.subr.bf16.mxu0 %v2612
        %2728 = vmatpush1.bf16.msra.mxu0 %v2611
        %2729 = vmatprep.subr.bf16.mxu0 %v2616
        %2730 = vmatpush1.bf16.msra.mxu0 %v2615
        %2731 = vmatprep.subr.bf16.mxu0 %v2620
        %2732 = vmatpush1.bf16.msra.mxu0 %v2619
        %2733 = vmatprep.subr.bf16.mxu0 %v2624
        %2734 = vmatpush1.bf16.msra.mxu0 %v2623
        %2735 = vmatprep.subr.bf16.mxu0 %v2628
        %2736 = vmatpush1.bf16.msra.mxu0 %v2627
        %2737 = vmatprep.subr.bf16.mxu0 %v2632
        %2738 = vmatpush1.bf16.msra.mxu0 %v2631
        %2739 = vmatprep.subr.bf16.mxu0 %v2636
        %2740 = vmatpush1.bf16.msra.mxu0 %v2635
        %2741 = vmatprep.subr.bf16.mxu0 %v2640
        %2742 = vmatpush1.bf16.msra.mxu0 %v2639
        %2743 = vmatprep.subr.bf16.mxu0 %v2644
        %2744 = vmatpush1.bf16.msra.mxu0 %v2643
        %2745 = vmatprep.subr.bf16.mxu0 %v2648
        %2746 = vmatpush1.bf16.msra.mxu0 %v2647
        %2747 = vmatprep.mubr.bf16.mxu0 %v2306
        %2748 = vmatmul.mubr.bf16.gmra.mrb[0].mxu0 %v2305
        %v2749 = vpop.f32.mrb[0].mxu0
        %v2750 = vadd.f32 %v2378, %v2749
        %v2751 = vpop.f32.mrb[0].mxu0
        %v2752 = vadd.f32 %v2382, %v2751
        %v2753 = vpop.f32.mrb[0].mxu0
        %v2754 = vadd.f32 %v2378, %v2753
        %v2755 = vpop.f32.mrb[0].mxu0
        %v2756 = vadd.f32 %v2382, %v2755
        %2757 = vmatprep.mubr.bf16.mxu0 %v2308
        %2758 = vmatmul.mubr.bf16.gmra.mrb[0].mxu0 %v2307
        %v2759 = vpop.f32.mrb[0].mxu0
        %v2760 = vadd.f32 %v2378, %v2759
        %v2761 = vpop.f32.mrb[0].mxu0
        %v2762 = vadd.f32 %v2382, %v2761
        %v2763 = vpop.f32.mrb[0].mxu0
        %v2764 = vadd.f32 %v2378, %v2763
        %v2765 = vpop.f32.mrb[0].mxu0
        %v2766 = vadd.f32 %v2382, %v2765
        %2767 = vdwg.mxu0
        %2768 = vmatprep.subr.bf16.mxu0 %v2590
        %2769 = vmatpush1.bf16.msra.mxu0 %v2589
        %2770 = vmatprep.subr.bf16.mxu0 %v2594
        %2771 = vmatpush1.bf16.msra.mxu0 %v2593
        %2772 = vmatprep.subr.bf16.mxu0 %v2598
        %2773 = vmatpush1.bf16.msra.mxu0 %v2597
        %2774 = vmatprep.subr.bf16.mxu0 %v2602
        %2775 = vmatpush1.bf16.msra.mxu0 %v2601
        %2776 = vmatprep.subr.bf16.mxu0 %v2606
        %2777 = vmatpush1.bf16.msra.mxu0 %v2605
        %2778 = vmatprep.subr.bf16.mxu0 %v2610
        %2779 = vmatpush1.bf16.msra.mxu0 %v2609
        %2780 = vmatprep.subr.bf16.mxu0 %v2614
        %2781 = vmatpush1.bf16.msra.mxu0 %v2613
        %2782 = vmatprep.subr.bf16.mxu0 %v2618
        %2783 = vmatpush1.bf16.msra.mxu0 %v2617
        %2784 = vmatprep.subr.bf16.mxu0 %v2622
        %2785 = vmatpush1.bf16.msra.mxu0 %v2621
        %2786 = vmatprep.subr.bf16.mxu0 %v2626
        %2787 = vmatpush1.bf16.msra.mxu0 %v2625
        %2788 = vmatprep.subr.bf16.mxu0 %v2630
        %2789 = vmatpush1.bf16.msra.mxu0 %v2629
        %2790 = vmatprep.subr.bf16.mxu0 %v2634
        %2791 = vmatpush1.bf16.msra.mxu0 %v2633
        %2792 = vmatprep.subr.bf16.mxu0 %v2638
        %2793 = vmatpush1.bf16.msra.mxu0 %v2637
        %2794 = vmatprep.subr.bf16.mxu0 %v2642
        %2795 = vmatpush1.bf16.msra.mxu0 %v2641
        %2796 = vmatprep.subr.bf16.mxu0 %v2646
        %2797 = vmatpush1.bf16.msra.mxu0 %v2645
        %2798 = vmatprep.subr.bf16.mxu0 %v2650
        %2799 = vmatpush1.bf16.msra.mxu0 %v2649
        %2800 = vmatprep.mubr.bf16.mxu0 %v2306
        %2801 = vmatmul.mubr.bf16.gmra.mrb[0].mxu0 %v2305
        %v2802 = vpop.f32.mrb[0].mxu0
        %v2803 = vadd.f32 %v2386, %v2802
        %v2804 = vpop.f32.mrb[0].mxu0
        %v2805 = vadd.f32 %v2390, %v2804
        %v2806 = vpop.f32.mrb[0].mxu0
        %v2807 = vadd.f32 %v2386, %v2806
        %v2808 = vpop.f32.mrb[0].mxu0
        %v2809 = vadd.f32 %v2390, %v2808
        %2810 = vmatprep.mubr.bf16.mxu0 %v2308
        %2811 = vmatmul.mubr.bf16.gmra.mrb[0].mxu0 %v2307
        %v2812 = vpop.f32.mrb[0].mxu0
        %v2813 = vadd.f32 %v2386, %v2812
        %v2814 = vpop.f32.mrb[0].mxu0
        %v2815 = vadd.f32 %v2390, %v2814
        %v2816 = vpop.f32.mrb[0].mxu0
        %v2817 = vadd.f32 %v2386, %v2816
        %v2818 = vpop.f32.mrb[0].mxu0
        %v2819 = vadd.f32 %v2390, %v2818
        %2820 = vdwg.mxu0
        %v2821 = vmax.f32 %v2750, 0.0
        %v2822 = vmax.f32 %v2752, 0.0
        %v2823 = vmax.f32 %v2803, 0.0
        %v2824 = vmax.f32 %v2805, 0.0
        %v2825 = vmax.f32 %v2754, 0.0
        %v2826 = vmax.f32 %v2756, 0.0
        %v2827 = vmax.f32 %v2807, 0.0
        %v2828 = vmax.f32 %v2809, 0.0
        %v2829 = vmax.f32 %v2760, 0.0
        %v2830 = vmax.f32 %v2762, 0.0
        %v2831 = vmax.f32 %v2813, 0.0
        %v2832 = vmax.f32 %v2815, 0.0
        %v2833 = vmax.f32 %v2764, 0.0
        %v2834 = vmax.f32 %v2766, 0.0
        %v2835 = vmax.f32 %v2817, 0.0
        %v2836 = vmax.f32 %v2819, 0.0
        %v2837 = vpack.c.bf16 %v2825, %v2821
        %v2838 = vpack.c.bf16 %v2826, %v2822
        %v2839 = vpack.c.bf16 %v2827, %v2823
        %v2840 = vpack.c.bf16 %v2828, %v2824
        %v2841 = vpack.c.bf16 %v2833, %v2829
        %v2842 = vpack.c.bf16 %v2834, %v2830
        %v2843 = vpack.c.bf16 %v2835, %v2831
        %v2844 = vpack.c.bf16 %v2836, %v2832
        %v2845 = vld [vmem:[%s652] sm:$0xff]
        %v2846 = vld [vmem:[%s652 + $0x8] sm:$0xff]
        %v2847 = vld [vmem:[%s652 + $0x10] sm:$0xff]
        %v2848 = vld [vmem:[%s652 + $0x18] sm:$0xff]
        %v2849 = vld [vmem:[%s652 + $0x20] sm:$0xff]
        %v2850 = vld [vmem:[%s652 + $0x28] sm:$0xff]
        %v2851 = vld [vmem:[%s652 + $0x30] sm:$0xff]
        %v2852 = vld [vmem:[%s652 + $0x38] sm:$0xff]
        %v2853 = vld [vmem:[%s652 + $0x40] sm:$0xff]
        %v2854 = vld [vmem:[%s652 + $0x48] sm:$0xff]
        %v2855 = vld [vmem:[%s652 + $0x50] sm:$0xff]
        %v2856 = vld [vmem:[%s652 + $0x58] sm:$0xff]
        %v2857 = vld [vmem:[%s652 + $0x60] sm:$0xff]
        %v2858 = vld [vmem:[%s652 + $0x68] sm:$0xff]
        %v2859 = vld [vmem:[%s652 + $0x70] sm:$0xff]
        %v2860 = vld [vmem:[%s652 + $0x78] sm:$0xff]
        %v2861 = vld [vmem:[%s652 + $0x80] sm:$0xff]
        %v2862 = vld [vmem:[%s652 + $0x88] sm:$0xff]
        %v2863 = vld [vmem:[%s652 + $0x90] sm:$0xff]
        %v2864 = vld [vmem:[%s652 + $0x98] sm:$0xff]
        %v2865 = vld [vmem:[%s652 + $0xa0] sm:$0xff]
        %v2866 = vld [vmem:[%s652 + $0xa8] sm:$0xff]
        %v2867 = vld [vmem:[%s652 + $0xb0] sm:$0xff]
        %v2868 = vld [vmem:[%s652 + $0xb8] sm:$0xff]
        %v2869 = vld [vmem:[%s652 + $0xc0] sm:$0xff]
        %v2870 = vld [vmem:[%s652 + $0xc8] sm:$0xff]
        %v2871 = vld [vmem:[%s652 + $0xd0] sm:$0xff]
        %v2872 = vld [vmem:[%s652 + $0xd8] sm:$0xff]
        %v2873 = vld [vmem:[%s652 + $0xe0] sm:$0xff]
        %v2874 = vld [vmem:[%s652 + $0xe8] sm:$0xff]
        %v2875 = vld [vmem:[%s652 + $0xf0] sm:$0xff]
        %v2876 = vld [vmem:[%s652 + $0xf8] sm:$0xff]
        %v2877 = vld [vmem:[%s652 + $0x100] sm:$0xff]
        %v2878 = vld [vmem:[%s652 + $0x108] sm:$0xff]
        %v2879 = vld [vmem:[%s652 + $0x110] sm:$0xff]
        %v2880 = vld [vmem:[%s652 + $0x118] sm:$0xff]
        %v2881 = vld [vmem:[%s652 + $0x120] sm:$0xff]
        %v2882 = vld [vmem:[%s652 + $0x128] sm:$0xff]
        %v2883 = vld [vmem:[%s652 + $0x130] sm:$0xff]
        %v2884 = vld [vmem:[%s652 + $0x138] sm:$0xff]
        %v2885 = vld [vmem:[%s652 + $0x140] sm:$0xff]
        %v2886 = vld [vmem:[%s652 + $0x148] sm:$0xff]
        %v2887 = vld [vmem:[%s652 + $0x150] sm:$0xff]
        %v2888 = vld [vmem:[%s652 + $0x158] sm:$0xff]
        %v2889 = vld [vmem:[%s652 + $0x160] sm:$0xff]
        %v2890 = vld [vmem:[%s652 + $0x168] sm:$0xff]
        %v2891 = vld [vmem:[%s652 + $0x170] sm:$0xff]
        %v2892 = vld [vmem:[%s652 + $0x178] sm:$0xff]
        %v2893 = vld [vmem:[%s652 + $0x180] sm:$0xff]
        %v2894 = vld [vmem:[%s652 + $0x188] sm:$0xff]
        %v2895 = vld [vmem:[%s652 + $0x190] sm:$0xff]
        %v2896 = vld [vmem:[%s652 + $0x198] sm:$0xff]
        %v2897 = vld [vmem:[%s652 + $0x1a0] sm:$0xff]
        %v2898 = vld [vmem:[%s652 + $0x1a8] sm:$0xff]
        %v2899 = vld [vmem:[%s652 + $0x1b0] sm:$0xff]
        %v2900 = vld [vmem:[%s652 + $0x1b8] sm:$0xff]
        %v2901 = vld [vmem:[%s652 + $0x1c0] sm:$0xff]
        %v2902 = vld [vmem:[%s652 + $0x1c8] sm:$0xff]
        %v2903 = vld [vmem:[%s652 + $0x1d0] sm:$0xff]
        %v2904 = vld [vmem:[%s652 + $0x1d8] sm:$0xff]
        %v2905 = vld [vmem:[%s652 + $0x1e0] sm:$0xff]
        %v2906 = vld [vmem:[%s652 + $0x1e8] sm:$0xff]
        %v2907 = vld [vmem:[%s652 + $0x1f0] sm:$0xff]
        %v2908 = vld [vmem:[%s652 + $0x1f8] sm:$0xff]
        %v2909 = vld [vmem:[%s656] sm:$0x3]
        %v2911 = vlaneseq
        %v2912 = vshrl.u32 %v2911, 7
        %v2913 = vsub.s32 0, %v2912
        %v2914 = vrot.slane %v2909, %v2913
        %v2915 = vlaneseq
        %v2916 = vshrl.u32 %v2915, 7
        %v2917 = vsub.s32 1, %v2916
        %v2918 = vrot.slane %v2909, %v2917
        %v2985 = vunpack.c.l.b16 %v2845
        %v2986 = vunpack.c.h.b16 %v2845
        %v2987 = vunpack.c.l.b16 %v2846
        %v2988 = vunpack.c.h.b16 %v2846
        %v2989 = vunpack.c.l.b16 %v2847
        %v2990 = vunpack.c.h.b16 %v2847
        %v2991 = vunpack.c.l.b16 %v2848
        %v2992 = vunpack.c.h.b16 %v2848
        %v2993 = vunpack.c.l.b16 %v2849
        %v2994 = vunpack.c.h.b16 %v2849
        %v2995 = vunpack.c.l.b16 %v2850
        %v2996 = vunpack.c.h.b16 %v2850
        %v2997 = vunpack.c.l.b16 %v2851
        %v2998 = vunpack.c.h.b16 %v2851
        %v2999 = vunpack.c.l.b16 %v2852
        %v3000 = vunpack.c.h.b16 %v2852
        %v3001 = vunpack.c.l.b16 %v2853
        %v3002 = vunpack.c.h.b16 %v2853
        %v3003 = vunpack.c.l.b16 %v2854
        %v3004 = vunpack.c.h.b16 %v2854
        %v3005 = vunpack.c.l.b16 %v2855
        %v3006 = vunpack.c.h.b16 %v2855
        %v3007 = vunpack.c.l.b16 %v2856
        %v3008 = vunpack.c.h.b16 %v2856
        %v3009 = vunpack.c.l.b16 %v2857
        %v3010 = vunpack.c.h.b16 %v2857
        %v3011 = vunpack.c.l.b16 %v2858
        %v3012 = vunpack.c.h.b16 %v2858
        %v3013 = vunpack.c.l.b16 %v2859
        %v3014 = vunpack.c.h.b16 %v2859
        %v3015 = vunpack.c.l.b16 %v2860
        %v3016 = vunpack.c.h.b16 %v2860
        %v3017 = vunpack.c.l.b16 %v2861
        %v3018 = vunpack.c.h.b16 %v2861
        %v3019 = vunpack.c.l.b16 %v2862
        %v3020 = vunpack.c.h.b16 %v2862
        %v3021 = vunpack.c.l.b16 %v2863
        %v3022 = vunpack.c.h.b16 %v2863
        %v3023 = vunpack.c.l.b16 %v2864
        %v3024 = vunpack.c.h.b16 %v2864
        %v3025 = vunpack.c.l.b16 %v2865
        %v3026 = vunpack.c.h.b16 %v2865
        %v3027 = vunpack.c.l.b16 %v2866
        %v3028 = vunpack.c.h.b16 %v2866
        %v3029 = vunpack.c.l.b16 %v2867
        %v3030 = vunpack.c.h.b16 %v2867
        %v3031 = vunpack.c.l.b16 %v2868
        %v3032 = vunpack.c.h.b16 %v2868
        %v3033 = vunpack.c.l.b16 %v2869
        %v3034 = vunpack.c.h.b16 %v2869
        %v3035 = vunpack.c.l.b16 %v2870
        %v3036 = vunpack.c.h.b16 %v2870
        %v3037 = vunpack.c.l.b16 %v2871
        %v3038 = vunpack.c.h.b16 %v2871
        %v3039 = vunpack.c.l.b16 %v2872
        %v3040 = vunpack.c.h.b16 %v2872
        %v3041 = vunpack.c.l.b16 %v2873
        %v3042 = vunpack.c.h.b16 %v2873
        %v3043 = vunpack.c.l.b16 %v2874
        %v3044 = vunpack.c.h.b16 %v2874
        %v3045 = vunpack.c.l.b16 %v2875
        %v3046 = vunpack.c.h.b16 %v2875
        %v3047 = vunpack.c.l.b16 %v2876
        %v3048 = vunpack.c.h.b16 %v2876
        %v3049 = vunpack.c.l.b16 %v2877
        %v3050 = vunpack.c.h.b16 %v2877
        %v3051 = vunpack.c.l.b16 %v2878
        %v3052 = vunpack.c.h.b16 %v2878
        %v3053 = vunpack.c.l.b16 %v2879
        %v3054 = vunpack.c.h.b16 %v2879
        %v3055 = vunpack.c.l.b16 %v2880
        %v3056 = vunpack.c.h.b16 %v2880
        %v3057 = vunpack.c.l.b16 %v2881
        %v3058 = vunpack.c.h.b16 %v2881
        %v3059 = vunpack.c.l.b16 %v2882
        %v3060 = vunpack.c.h.b16 %v2882
        %v3061 = vunpack.c.l.b16 %v2883
        %v3062 = vunpack.c.h.b16 %v2883
        %v3063 = vunpack.c.l.b16 %v2884
        %v3064 = vunpack.c.h.b16 %v2884
        %v3065 = vunpack.c.l.b16 %v2885
        %v3066 = vunpack.c.h.b16 %v2885
        %v3067 = vunpack.c.l.b16 %v2886
        %v3068 = vunpack.c.h.b16 %v2886
        %v3069 = vunpack.c.l.b16 %v2887
        %v3070 = vunpack.c.h.b16 %v2887
        %v3071 = vunpack.c.l.b16 %v2888
        %v3072 = vunpack.c.h.b16 %v2888
        %v3073 = vunpack.c.l.b16 %v2889
        %v3074 = vunpack.c.h.b16 %v2889
        %v3075 = vunpack.c.l.b16 %v2890
        %v3076 = vunpack.c.h.b16 %v2890
        %v3077 = vunpack.c.l.b16 %v2891
        %v3078 = vunpack.c.h.b16 %v2891
        %v3079 = vunpack.c.l.b16 %v2892
        %v3080 = vunpack.c.h.b16 %v2892
        %v3081 = vunpack.c.l.b16 %v2893
        %v3082 = vunpack.c.h.b16 %v2893
        %v3083 = vunpack.c.l.b16 %v2894
        %v3084 = vunpack.c.h.b16 %v2894
        %v3085 = vunpack.c.l.b16 %v2895
        %v3086 = vunpack.c.h.b16 %v2895
        %v3087 = vunpack.c.l.b16 %v2896
        %v3088 = vunpack.c.h.b16 %v2896
        %v3089 = vunpack.c.l.b16 %v2897
        %v3090 = vunpack.c.h.b16 %v2897
        %v3091 = vunpack.c.l.b16 %v2898
        %v3092 = vunpack.c.h.b16 %v2898
        %v3093 = vunpack.c.l.b16 %v2899
        %v3094 = vunpack.c.h.b16 %v2899
        %v3095 = vunpack.c.l.b16 %v2900
        %v3096 = vunpack.c.h.b16 %v2900
        %v3097 = vunpack.c.l.b16 %v2901
        %v3098 = vunpack.c.h.b16 %v2901
        %v3099 = vunpack.c.l.b16 %v2902
        %v3100 = vunpack.c.h.b16 %v2902
        %v3101 = vunpack.c.l.b16 %v2903
        %v3102 = vunpack.c.h.b16 %v2903
        %v3103 = vunpack.c.l.b16 %v2904
        %v3104 = vunpack.c.h.b16 %v2904
        %v3105 = vunpack.c.l.b16 %v2905
        %v3106 = vunpack.c.h.b16 %v2905
        %v3107 = vunpack.c.l.b16 %v2906
        %v3108 = vunpack.c.h.b16 %v2906
        %v3109 = vunpack.c.l.b16 %v2907
        %v3110 = vunpack.c.h.b16 %v2907
        %v3111 = vunpack.c.l.b16 %v2908
        %v3112 = vunpack.c.h.b16 %v2908
        %v3113 = vpack.c.b16 %v2987, %v2985
        %v3114 = vpack.c.b16 %v2988, %v2986
        %v3115 = vpack.c.b16 %v2991, %v2989
        %v3116 = vpack.c.b16 %v2992, %v2990
        %v3117 = vpack.c.b16 %v2995, %v2993
        %v3118 = vpack.c.b16 %v2996, %v2994
        %v3119 = vpack.c.b16 %v2999, %v2997
        %v3120 = vpack.c.b16 %v3000, %v2998
        %v3121 = vpack.c.b16 %v3003, %v3001
        %v3122 = vpack.c.b16 %v3004, %v3002
        %v3123 = vpack.c.b16 %v3007, %v3005
        %v3124 = vpack.c.b16 %v3008, %v3006
        %v3125 = vpack.c.b16 %v3011, %v3009
        %v3126 = vpack.c.b16 %v3012, %v3010
        %v3127 = vpack.c.b16 %v3015, %v3013
        %v3128 = vpack.c.b16 %v3016, %v3014
        %v3129 = vpack.c.b16 %v3019, %v3017
        %v3130 = vpack.c.b16 %v3020, %v3018
        %v3131 = vpack.c.b16 %v3023, %v3021
        %v3132 = vpack.c.b16 %v3024, %v3022
        %v3133 = vpack.c.b16 %v3027, %v3025
        %v3134 = vpack.c.b16 %v3028, %v3026
        %v3135 = vpack.c.b16 %v3031, %v3029
        %v3136 = vpack.c.b16 %v3032, %v3030
        %v3137 = vpack.c.b16 %v3035, %v3033
        %v3138 = vpack.c.b16 %v3036, %v3034
        %v3139 = vpack.c.b16 %v3039, %v3037
        %v3140 = vpack.c.b16 %v3040, %v3038
        %v3141 = vpack.c.b16 %v3043, %v3041
        %v3142 = vpack.c.b16 %v3044, %v3042
        %v3143 = vpack.c.b16 %v3047, %v3045
        %v3144 = vpack.c.b16 %v3048, %v3046
        %v3145 = vpack.c.b16 %v3051, %v3049
        %v3146 = vpack.c.b16 %v3052, %v3050
        %v3147 = vpack.c.b16 %v3055, %v3053
        %v3148 = vpack.c.b16 %v3056, %v3054
        %v3149 = vpack.c.b16 %v3059, %v3057
        %v3150 = vpack.c.b16 %v3060, %v3058
        %v3151 = vpack.c.b16 %v3063, %v3061
        %v3152 = vpack.c.b16 %v3064, %v3062
        %v3153 = vpack.c.b16 %v3067, %v3065
        %v3154 = vpack.c.b16 %v3068, %v3066
        %v3155 = vpack.c.b16 %v3071, %v3069
        %v3156 = vpack.c.b16 %v3072, %v3070
        %v3157 = vpack.c.b16 %v3075, %v3073
        %v3158 = vpack.c.b16 %v3076, %v3074
        %v3159 = vpack.c.b16 %v3079, %v3077
        %v3160 = vpack.c.b16 %v3080, %v3078
        %v3161 = vpack.c.b16 %v3083, %v3081
        %v3162 = vpack.c.b16 %v3084, %v3082
        %v3163 = vpack.c.b16 %v3087, %v3085
        %v3164 = vpack.c.b16 %v3088, %v3086
        %v3165 = vpack.c.b16 %v3091, %v3089
        %v3166 = vpack.c.b16 %v3092, %v3090
        %v3167 = vpack.c.b16 %v3095, %v3093
        %v3168 = vpack.c.b16 %v3096, %v3094
        %v3169 = vpack.c.b16 %v3099, %v3097
        %v3170 = vpack.c.b16 %v3100, %v3098
        %v3171 = vpack.c.b16 %v3103, %v3101
        %v3172 = vpack.c.b16 %v3104, %v3102
        %v3173 = vpack.c.b16 %v3107, %v3105
        %v3174 = vpack.c.b16 %v3108, %v3106
        %v3175 = vpack.c.b16 %v3111, %v3109
        %v3176 = vpack.c.b16 %v3112, %v3110
        %3241 = vmatprep.subr.bf16.mxu0 %v3114
        %3242 = vmatpush1.bf16.msra.mxu0 %v3113
        %3243 = vmatprep.subr.bf16.mxu0 %v3116
        %3244 = vmatpush1.bf16.msra.mxu0 %v3115
        %3245 = vmatprep.subr.bf16.mxu0 %v3118
        %3246 = vmatpush1.bf16.msra.mxu0 %v3117
        %3247 = vmatprep.subr.bf16.mxu0 %v3120
        %3248 = vmatpush1.bf16.msra.mxu0 %v3119
        %3249 = vmatprep.subr.bf16.mxu0 %v3122
        %3250 = vmatpush1.bf16.msra.mxu0 %v3121
        %3251 = vmatprep.subr.bf16.mxu0 %v3124
        %3252 = vmatpush1.bf16.msra.mxu0 %v3123
        %3253 = vmatprep.subr.bf16.mxu0 %v3126
        %3254 = vmatpush1.bf16.msra.mxu0 %v3125
        %3255 = vmatprep.subr.bf16.mxu0 %v3128
        %3256 = vmatpush1.bf16.msra.mxu0 %v3127
        %3257 = vmatprep.subr.bf16.mxu0 %v3130
        %3258 = vmatpush1.bf16.msra.mxu0 %v3129
        %3259 = vmatprep.subr.bf16.mxu0 %v3132
        %3260 = vmatpush1.bf16.msra.mxu0 %v3131
        %3261 = vmatprep.subr.bf16.mxu0 %v3134
        %3262 = vmatpush1.bf16.msra.mxu0 %v3133
        %3263 = vmatprep.subr.bf16.mxu0 %v3136
        %3264 = vmatpush1.bf16.msra.mxu0 %v3135
        %3265 = vmatprep.subr.bf16.mxu0 %v3138
        %3266 = vmatpush1.bf16.msra.mxu0 %v3137
        %3267 = vmatprep.subr.bf16.mxu0 %v3140
        %3268 = vmatpush1.bf16.msra.mxu0 %v3139
        %3269 = vmatprep.subr.bf16.mxu0 %v3142
        %3270 = vmatpush1.bf16.msra.mxu0 %v3141
        %3271 = vmatprep.subr.bf16.mxu0 %v3144
        %3272 = vmatpush1.bf16.msra.mxu0 %v3143
        %3273 = vmatprep.mubr.bf16.mxu0 %v2838
        %3274 = vmatmul.mubr.bf16.gmra.mrb[0].mxu0 %v2837
        %v3275 = vpop.f32.mrb[0].mxu0
        %v3276 = vadd.f32 %v2914, %v3275
        %v3277 = vpop.f32.mrb[0].mxu0
        %v3278 = vadd.f32 %v2918, %v3277
        %v3279 = vpop.f32.mrb[0].mxu0
        %v3280 = vadd.f32 %v2914, %v3279
        %v3281 = vpop.f32.mrb[0].mxu0
        %v3282 = vadd.f32 %v2918, %v3281
        %3283 = vmatprep.mubr.bf16.mxu0 %v2842
        %3284 = vmatmul.mubr.bf16.gmra.mrb[0].mxu0 %v2841
        %v3285 = vpop.f32.mrb[0].mxu0
        %v3286 = vadd.f32 %v2914, %v3285
        %v3287 = vpop.f32.mrb[0].mxu0
        %v3288 = vadd.f32 %v2918, %v3287
        %v3289 = vpop.f32.mrb[0].mxu0
        %v3290 = vadd.f32 %v2914, %v3289
        %v3291 = vpop.f32.mrb[0].mxu0
        %v3292 = vadd.f32 %v2918, %v3291
        %3293 = vdwg.mxu0
        %3294 = vmatprep.subr.bf16.mxu0 %v3146
        %3295 = vmatpush1.bf16.msra.mxu0 %v3145
        %3296 = vmatprep.subr.bf16.mxu0 %v3148
        %3297 = vmatpush1.bf16.msra.mxu0 %v3147
        %3298 = vmatprep.subr.bf16.mxu0 %v3150
        %3299 = vmatpush1.bf16.msra.mxu0 %v3149
        %3300 = vmatprep.subr.bf16.mxu0 %v3152
        %3301 = vmatpush1.bf16.msra.mxu0 %v3151
        %3302 = vmatprep.subr.bf16.mxu0 %v3154
        %3303 = vmatpush1.bf16.msra.mxu0 %v3153
        %3304 = vmatprep.subr.bf16.mxu0 %v3156
        %3305 = vmatpush1.bf16.msra.mxu0 %v3155
        %3306 = vmatprep.subr.bf16.mxu0 %v3158
        %3307 = vmatpush1.bf16.msra.mxu0 %v3157
        %3308 = vmatprep.subr.bf16.mxu0 %v3160
        %3309 = vmatpush1.bf16.msra.mxu0 %v3159
        %3310 = vmatprep.subr.bf16.mxu0 %v3162
        %3311 = vmatpush1.bf16.msra.mxu0 %v3161
        %3312 = vmatprep.subr.bf16.mxu0 %v3164
        %3313 = vmatpush1.bf16.msra.mxu0 %v3163
        %3314 = vmatprep.subr.bf16.mxu0 %v3166
        %3315 = vmatpush1.bf16.msra.mxu0 %v3165
        %3316 = vmatprep.subr.bf16.mxu0 %v3168
        %3317 = vmatpush1.bf16.msra.mxu0 %v3167
        %3318 = vmatprep.subr.bf16.mxu0 %v3170
        %3319 = vmatpush1.bf16.msra.mxu0 %v3169
        %3320 = vmatprep.subr.bf16.mxu0 %v3172
        %3321 = vmatpush1.bf16.msra.mxu0 %v3171
        %3322 = vmatprep.subr.bf16.mxu0 %v3174
        %3323 = vmatpush1.bf16.msra.mxu0 %v3173
        %3324 = vmatprep.subr.bf16.mxu0 %v3176
        %3325 = vmatpush1.bf16.msra.mxu0 %v3175
        %3326 = vmatprep.mubr.bf16.mxu0 %v2840
        %3327 = vmatmul.mubr.bf16.gmra.mrb[0].mxu0 %v2839
        %v3328 = vpop.f32.mrb[0].mxu0
        %v3329 = vadd.f32 %v3276, %v3328
        %v3330 = vpop.f32.mrb[0].mxu0
        %v3331 = vadd.f32 %v3278, %v3330
        %v3332 = vpop.f32.mrb[0].mxu0
        %v3333 = vadd.f32 %v3280, %v3332
        %v3334 = vpop.f32.mrb[0].mxu0
        %v3335 = vadd.f32 %v3282, %v3334
        %3336 = vmatprep.mubr.bf16.mxu0 %v2844
        %3337 = vmatmul.mubr.bf16.gmra.mrb[0].mxu0 %v2843
        %v3338 = vpop.f32.mrb[0].mxu0
        %v3339 = vadd.f32 %v3286, %v3338
        %v3340 = vpop.f32.mrb[0].mxu0
        %v3341 = vadd.f32 %v3288, %v3340
        %v3342 = vpop.f32.mrb[0].mxu0
        %v3343 = vadd.f32 %v3290, %v3342
        %v3344 = vpop.f32.mrb[0].mxu0
        %v3345 = vadd.f32 %v3292, %v3344
        %3346 = vdwg.mxu0
        %v3347 = vadd.f32 %v2297, %v3329
        %v3348 = vadd.f32 %v2298, %v3331
        %v3349 = vadd.f32 %v2299, %v3333
        %v3350 = vadd.f32 %v2300, %v3335
        %v3351 = vadd.f32 %v2301, %v3339
        %v3352 = vadd.f32 %v2302, %v3341
        %v3353 = vadd.f32 %v2303, %v3343
        %v3354 = vadd.f32 %v2304, %v3345
        %v3355 = vld [vmem:[%s660] sm:$0x3]
        %v3356 = vld [vmem:[%s664] sm:$0x3]
        %v3357 = vadd.f32 %v3347, %v3348
        %3358 = vadd.xlane.f32.xlu0 %v3357
        %v3359 = vpop.xlane.xlu0 %3358
        %v3360 = vadd.f32 %v3349, %v3350
        %3361 = vadd.xlane.f32.xlu0 %v3360
        %v3362 = vpop.xlane.xlu0 %3361
        %v3363 = vadd.f32 %v3351, %v3352
        %3364 = vadd.xlane.f32.xlu0 %v3363
        %v3365 = vpop.xlane.xlu0 %3364
        %v3366 = vadd.f32 %v3353, %v3354
        %3367 = vadd.xlane.f32.xlu0 %v3366
        %v3368 = vpop.xlane.xlu0 %3367
        %v3369 = vmul.f32 %v3359, %v2202
        %v3370 = vmul.f32 %v3362, %v2202
        %v3371 = vmul.f32 %v3365, %v2202
        %v3372 = vmul.f32 %v3368, %v2202
        %v3373 = vmul.f32 %v3347, %v3347
        %v3374 = vmul.f32 %v3348, %v3348
        %v3375 = vmul.f32 %v3349, %v3349
        %v3376 = vmul.f32 %v3350, %v3350
        %v3377 = vmul.f32 %v3351, %v3351
        %v3378 = vmul.f32 %v3352, %v3352
        %v3379 = vmul.f32 %v3353, %v3353
        %v3380 = vmul.f32 %v3354, %v3354
        %v3381 = vadd.f32 %v3373, %v3374
        %3382 = vadd.xlane.f32.xlu0 %v3381
        %v3383 = vpop.xlane.xlu0 %3382
        %v3384 = vadd.f32 %v3375, %v3376
        %3385 = vadd.xlane.f32.xlu0 %v3384
        %v3386 = vpop.xlane.xlu0 %3385
        %v3387 = vadd.f32 %v3377, %v3378
        %3388 = vadd.xlane.f32.xlu0 %v3387
        %v3389 = vpop.xlane.xlu0 %3388
        %v3390 = vadd.f32 %v3379, %v3380
        %3391 = vadd.xlane.f32.xlu0 %v3390
        %v3392 = vpop.xlane.xlu0 %3391
        %v3393 = vmul.f32 %v3383, %v2202
        %v3394 = vmul.f32 %v3386, %v2202
        %v3395 = vmul.f32 %v3389, %v2202
        %v3396 = vmul.f32 %v3392, %v2202
        %v3397 = vmul.f32 %v3369, %v3369
        %v3398 = vmul.f32 %v3370, %v3370
        %v3399 = vmul.f32 %v3371, %v3371
        %v3400 = vmul.f32 %v3372, %v3372
        %v3401 = vsub.f32 %v3393, %v3397
        %v3402 = vsub.f32 %v3394, %v3398
        %v3403 = vsub.f32 %v3395, %v3399
        %v3404 = vsub.f32 %v3396, %v3400
        %v3405 = vmax.f32 %v3401, 0.0
        %v3406 = vmax.f32 %v3402, 0.0
        %v3407 = vmax.f32 %v3403, 0.0
        %v3408 = vmax.f32 %v3404, 0.0
        %v3409 = vsub.f32 %v3347, %v3369
        %v3410 = vsub.f32 %v3348, %v3369
        %v3411 = vsub.f32 %v3349, %v3370
        %v3412 = vsub.f32 %v3350, %v3370
        %v3413 = vsub.f32 %v3351, %v3371
        %v3414 = vsub.f32 %v3352, %v3371
        %v3415 = vsub.f32 %v3353, %v3372
        %v3416 = vsub.f32 %v3354, %v3372
        %v3417 = vadd.f32 %v3405, 1e-05
        %v3418 = vadd.f32 %v3406, 1e-05
        %v3419 = vadd.f32 %v3407, 1e-05
        %v3420 = vadd.f32 %v3408, 1e-05
        %v3421 = vrsqrt.pop %v3417
        %v3422 = vrsqrt.pop %v3418
        %v3423 = vrsqrt.pop %v3419
        %v3424 = vrsqrt.pop %v3420
        %v3425 = vmul.f32 %v3409, %v3421
        %v3426 = vmul.f32 %v3410, %v3421
        %v3427 = vmul.f32 %v3411, %v3422
        %v3428 = vmul.f32 %v3412, %v3422
        %v3429 = vmul.f32 %v3413, %v3423
        %v3430 = vmul.f32 %v3414, %v3423
        %v3431 = vmul.f32 %v3415, %v3424
        %v3432 = vmul.f32 %v3416, %v3424
        %v3434 = vlaneseq
        %v3435 = vshrl.u32 %v3434, 7
        %v3436 = vsub.s32 0, %v3435
        %v3437 = vrot.slane %v3355, %v3436
        %v3438 = vlaneseq
        %v3439 = vshrl.u32 %v3438, 7
        %v3440 = vsub.s32 1, %v3439
        %v3441 = vrot.slane %v3355, %v3440
        %v3444 = vmul.f32 %v3425, %v3437
        %v3445 = vmul.f32 %v3426, %v3441
        %v3446 = vmul.f32 %v3427, %v3437
        %v3447 = vmul.f32 %v3428, %v3441
        %v3448 = vmul.f32 %v3429, %v3437
        %v3449 = vmul.f32 %v3430, %v3441
        %v3450 = vmul.f32 %v3431, %v3437
        %v3451 = vmul.f32 %v3432, %v3441
        %v3453 = vlaneseq
        %v3454 = vshrl.u32 %v3453, 7
        %v3455 = vsub.s32 0, %v3454
        %v3456 = vrot.slane %v3356, %v3455
        %v3457 = vlaneseq
        %v3458 = vshrl.u32 %v3457, 7
        %v3459 = vsub.s32 1, %v3458
        %v3460 = vrot.slane %v3356, %v3459
        %v3463 = vadd.f32 %v3444, %v3456
        %v3464 = vadd.f32 %v3445, %v3460
        %v3465 = vadd.f32 %v3446, %v3456
        %v3466 = vadd.f32 %v3447, %v3460
        %v3467 = vadd.f32 %v3448, %v3456
        %v3468 = vadd.f32 %v3449, %v3460
        %v3469 = vadd.f32 %v3450, %v3456
        %v3470 = vadd.f32 %v3451, %v3460
        %3471 = vst [vmem:[#allocation2] sm:$0xff] %v3463
        %3472 = vst [vmem:[#allocation2 + $0x8] sm:$0xff] %v3464
        %3473 = vst [vmem:[#allocation2 + $0x10] sm:$0xff] %v3465
        %3474 = vst [vmem:[#allocation2 + $0x18] sm:$0xff] %v3466
        %3475 = vst [vmem:[#allocation2 + $0x20] sm:$0xff] %v3467
        %3476 = vst [vmem:[#allocation2 + $0x28] sm:$0xff] %v3468
        %3477 = vst [vmem:[#allocation2 + $0x30] sm:$0xff] %v3469
        %3478 = vst [vmem:[#allocation2 + $0x38] sm:$0xff] %v3470
        %p3479 = scmp.eq.s32.totalorder %s30, 1
        // Predicated region
        $region77: #{encoder_forward.1} parent=71 // pred_check
          %p3480 = pneg %p3479
        $region78: #{encoder_forward.1} parent=71 // pred_check_branch
          %3482 = sbr.rel (%p3480) target = $region80
        $region79: #{encoder_forward.1} parent=71 // pred_region
          %3483 = vst [vmem:[#allocation4] sm:$0xff] %v3463
          %3484 = vst [vmem:[#allocation4 + $0x8] sm:$0xff] %v3464
          %3485 = vst [vmem:[#allocation4 + $0x10] sm:$0xff] %v3465
          %3486 = vst [vmem:[#allocation4 + $0x18] sm:$0xff] %v3466
          %3487 = vst [vmem:[#allocation4 + $0x20] sm:$0xff] %v3467
          %3488 = vst [vmem:[#allocation4 + $0x28] sm:$0xff] %v3468
          %3489 = vst [vmem:[#allocation4 + $0x30] sm:$0xff] %v3469
          %3490 = vst [vmem:[#allocation4 + $0x38] sm:$0xff] %v3470
        $region80: #{encoder_forward.1} parent=71 // pred_fallthru
          _
        // Predicated region
        $region81: #{encoder_forward.1} parent=71 // pred_check
          %p3491 = pneg %p393
        $region82: #{encoder_forward.1} parent=71 // pred_check_branch
          %3493 = sbr.rel (%p3491) target = $region84
        $region83: #{encoder_forward.1} parent=71 // pred_region
          %s3494 = smul.u32 2, %s29
          %s3496 = ssub.s32 1024, 1024
          %3497 = vsyncadd [#allocation5], %s3496
          %s3498 = smul.addr %s3494, 4
          %s3499 = smul.addr %s3498, 128
          %s3500 = scalar_lea.hbm %s13, %s3499
          %s3501 = sshll.u32 [#allocation4], 4
          %s3502 = int_to_ptr.vmem [resolvable:$true] %s3501
          %3507 = dma.vmem_to_hbm [thread:$0]  %s3502, 1024, %s3500, [#allocation5], 256, 256, 16
        $region84: #{encoder_forward.1} parent=71 // pred_fallthru
          _
        // Predicated region
        $region85: #{encoder_forward.1} parent=71 // pred_check
          %p3508 = pneg %p393
        $region86: #{encoder_forward.1} parent=71 // pred_check_branch
          %3510 = sbr.rel (%p3508) target = $region88
        $region87: #{encoder_forward.1} parent=71 // pred_region
          %3511 = dma.done [#allocation5], 1024
        $region88: #{encoder_forward.1} parent=71 // pred_fallthru
          _
      $region72: #{encoder_forward.1} parent=5 // pred_fallthru
        _
      %p3512 = scmp.le.s32.totalorder 2, %s20
      // Predicated region
      $region89: #{encoder_forward.1} parent=5 // pred_check
        %p3513 = pneg %p3512
      $region90: #{encoder_forward.1} parent=5 // pred_check_branch
        %3515 = sbr.rel (%p3513) target = $region92
      $region91: #{encoder_forward.1} parent=5 // pred_region
        %s3516 = ssub.s32 %s20, 2
      $region92: #{encoder_forward.1} parent=5 // pred_fallthru
        _
    $region6: #{encoder_forward.1} parent=1 // loop_footer
      %s24 = sadd.s32 1, %s20
    $region7: #{encoder_forward.1} parent=1 // loop_footer_branch
      %19 = sbr.rel target = $region3
    $region8: #{encoder_forward.1} parent=1 // loop_exit
      _
    %3517 = vsyncpa [#allocation5], 1
    %s3518 = scalar_lea.sflag [#allocation5], 1
    %3519 = vsyncpa %s3518, 1

</llo_original>
